<compile_context>
chip_gen: v5e
topology: v5e:2x2
jax: 0.10.0
libtpu: 0.0.40
codegen_flags: <defaults>
</compile_context>

<pallas_src>
import jax
import jax.numpy as jnp
from jax.experimental import pallas as pl
from jax.experimental.pallas import tpu as pltpu

# ------------------------- problem sizes (small) ----------------------------
BATCH = 8             # >= 8 fills the f32 sublane dim (was 2: weight-DMA bound)
EMB_DIM = 32          # embedding_dim
STATE_DIM = 16        # state_dim
ACTION_DIM = 8        # action_dim
SEQ_LEN = 8           # action-history length
ACT_EMB = 64          # nn.Embedding embedding_dim
NUM_EMB = ACTION_DIM + 1
NUM_EMB_PAD = 16      # pad one-hot width for clean bf16 tiling
LSTM_H = 128          # LSTM hidden size
OUT_PAD = 128         # lane-dense fc2 output width (sliced to ACTION_DIM outside)
LN_EPS = 1e-5

BF16 = jnp.bfloat16
F32 = jnp.float32


# ------------------------------ kernel helpers -------------------------------
def _layernorm(x, w, b):
    mu = jnp.mean(x, axis=-1, keepdims=True)
    xc = x - mu
    var = jnp.mean(xc * xc, axis=-1, keepdims=True)
    return xc * jax.lax.rsqrt(var + LN_EPS) * w + b


def _gate_split(gates):
    # gates packed [i, f, g, o] along last dim (PyTorch order), f32
    i = jax.nn.sigmoid(gates[:, 0 * LSTM_H:1 * LSTM_H])
    f = jax.nn.sigmoid(gates[:, 1 * LSTM_H:2 * LSTM_H])
    g = jnp.tanh(gates[:, 2 * LSTM_H:3 * LSTM_H])
    o = jax.nn.sigmoid(gates[:, 3 * LSTM_H:4 * LSTM_H])
    return i, f, g, o


# --------------------------------- kernel ------------------------------------
def qnetwork_kernel(
    # activations
    onehot_ref, emb_ref, state_ref,
    # early-used weights (auto-DMA'd to VMEM before body runs)
    w_e1, b_e1, w_e2, b_e2, ln_e_w, ln_e_b,
    w_s1, b_s1, w_s2, b_s2, ln_s_w, ln_s_b,
    w_emb_ih1, b_l1, b_l2, ln_a_w, ln_a_b,
    b_f1, b_f2,
    # late-used weights left in HBM (manual async DMA below)
    w_hh1_hbm, w_ih2_hbm, w_hh2_hbm, w_f1e_hbm, w_f1s_hbm, w_f1a_hbm, w_f2_hbm,
    # output
    out_ref,
    # scratch
    w_hh1_buf, w_ih2_buf, w_hh2_buf, w_f1e_buf, w_f1s_buf, w_f1a_buf, w_f2_buf,
    dma_sems,
):
    bsz = emb_ref.shape[0]
    seq = onehot_ref.shape[0] // bsz

    # ---- prologue: stream the late-used weights while the early math runs ----
    # Issue order == use order (single DMA queue executes in order).
    cp_ih2 = pltpu.make_async_copy(w_ih2_hbm, w_ih2_buf, dma_sems.at[0]); cp_ih2.start()
    cp_hh1 = pltpu.make_async_copy(w_hh1_hbm, w_hh1_buf, dma_sems.at[1]); cp_hh1.start()
    cp_hh2 = pltpu.make_async_copy(w_hh2_hbm, w_hh2_buf, dma_sems.at[2]); cp_hh2.start()
    cp_f1e = pltpu.make_async_copy(w_f1e_hbm, w_f1e_buf, dma_sems.at[3]); cp_f1e.start()
    cp_f1s = pltpu.make_async_copy(w_f1s_hbm, w_f1s_buf, dma_sems.at[4]); cp_f1s.start()
    cp_f1a = pltpu.make_async_copy(w_f1a_hbm, w_f1a_buf, dma_sems.at[5]); cp_f1a.start()
    cp_f2  = pltpu.make_async_copy(w_f2_hbm,  w_f2_buf,  dma_sems.at[6]); cp_f2.start()

    # ---- embedding branch: Linear->ReLU->Linear->ReLU->LayerNorm(256) ----
    e = jnp.maximum(
        jnp.dot(emb_ref[...].astype(BF16), w_e1[...],
                preferred_element_type=F32) + b_e1[...], 0.0)
    e = jnp.maximum(
        jnp.dot(e.astype(BF16), w_e2[...],
                preferred_element_type=F32) + b_e2[...], 0.0)
    e = _layernorm(e, ln_e_w[...], ln_e_b[...])

    # ---- state branch: Linear->ReLU->Linear->ReLU->LayerNorm(128) ----
    s = jnp.maximum(
        jnp.dot(state_ref[...].astype(BF16), w_s1[...],
                preferred_element_type=F32) + b_s1[...], 0.0)
    s = jnp.maximum(
        jnp.dot(s.astype(BF16), w_s2[...],
                preferred_element_type=F32) + b_s2[...], 0.0)
    s = _layernorm(s, ln_s_w[...], ln_s_b[...])

    # ---- action branch: one-hot x (table@W_ih1) gives all per-step layer-1
    #      input-gate pre-activations in one matmul, off the serial chain.
    xproj = jnp.dot(onehot_ref[...], w_emb_ih1[...],
                    preferred_element_type=F32)                     # (T*B, 4H)
    B1 = b_l1[...]
    B2 = b_l2[...]

    # ---- t = 0: hidden/cell are zero -> skip both h @ W_hh matmuls ----
    g1 = xproj[0:bsz, :] + B1
    i1, _, gg1, o1 = _gate_split(g1)
    c1 = i1 * gg1
    h1 = o1 * jnp.tanh(c1)

    cp_ih2.wait()
    W_ih2 = w_ih2_buf[...]
    g2 = jnp.dot(h1.astype(BF16), W_ih2, preferred_element_type=F32) + B2
    i2, _, gg2, o2 = _gate_split(g2)
    c2 = i2 * gg2
    h2 = o2 * jnp.tanh(c2)

    cp_hh1.wait()
    cp_hh2.wait()
    W_hh1 = w_hh1_buf[...]
    W_hh2 = w_hh2_buf[...]

    # ---- t = 1 .. T-1 (short static trip count -> unrolled) ----
    for t in range(1, seq):
        g1 = (xproj[t * bsz:(t + 1) * bsz, :]
              + jnp.dot(h1.astype(BF16), W_hh1, preferred_element_type=F32)
              + B1)
        i1, f1, gg1, o1 = _gate_split(g1)
        c1 = f1 * c1 + i1 * gg1
        h1 = o1 * jnp.tanh(c1)

        # layer-2 gates: h2 @ W_hh2 depends only on h2[t-1]; h1 @ W_ih2 on the
        # fresh h1[t]. Split dots keep the serial chain at K=128 (helps v5e).
        g2 = (jnp.dot(h2.astype(BF16), W_hh2, preferred_element_type=F32)
              + jnp.dot(h1.astype(BF16), W_ih2, preferred_element_type=F32)
              + B2)
        i2, f2, gg2, o2 = _gate_split(g2)
        c2 = f2 * c2 + i2 * gg2
        h2 = o2 * jnp.tanh(c2)

    a = _layernorm(h2, ln_a_w[...], ln_a_b[...])

    # ---- head: fc1 split per branch (no (B,512) concat), then fc2 ----
    cp_f1e.wait(); cp_f1s.wait(); cp_f1a.wait()
    x = jnp.maximum(
        jnp.dot(e.astype(BF16), w_f1e_buf[...], preferred_element_type=F32)
        + jnp.dot(s.astype(BF16), w_f1s_buf[...], preferred_element_type=F32)
        + jnp.dot(a.astype(BF16), w_f1a_buf[...], preferred_element_type=F32)
        + b_f1[...], 0.0)

    cp_f2.wait()
    out_ref[...] = (
        jnp.dot(x.astype(BF16), w_f2_buf[...], preferred_element_type=F32)
        + b_f2[...])


# ------------------------------ parameter setup -------------------------------
VMEM_PARAM_ORDER = [
    "w_e1", "b_e1", "w_e2", "b_e2", "ln_e_w", "ln_e_b",
    "w_s1", "b_s1", "w_s2", "b_s2", "ln_s_w", "ln_s_b",
    "w_emb_ih1", "b_l1", "b_l2", "ln_a_w", "ln_a_b",
    "b_f1", "b_f2",
]
HBM_PARAM_ORDER = ["w_hh1", "w_ih2", "w_hh2", "w_f1_e", "w_f1_s", "w_f1_a", "w_f2"]


def init_params(key):
    def u(k, shape):
        return jax.random.uniform(k, shape, dtype=F32, minval=-0.1, maxval=0.1)

    keys = iter(jax.random.split(key, 24))
    p = {}
    # embedding branch
    p["w_e1"] = u(next(keys), (EMB_DIM, 512)).astype(BF16)
    p["b_e1"] = u(next(keys), (1, 512))
    p["w_e2"] = u(next(keys), (512, 256)).astype(BF16)
    p["b_e2"] = u(next(keys), (1, 256))
    p["ln_e_w"] = jnp.ones((1, 256), F32)
    p["ln_e_b"] = jnp.zeros((1, 256), F32)
    # state branch
    p["w_s1"] = u(next(keys), (STATE_DIM, 128)).astype(BF16)
    p["b_s1"] = u(next(keys), (1, 128))
    p["w_s2"] = u(next(keys), (128, 128)).astype(BF16)
    p["b_s2"] = u(next(keys), (1, 128))
    p["ln_s_w"] = jnp.ones((1, 128), F32)
    p["ln_s_b"] = jnp.zeros((1, 128), F32)
    # nn.Embedding(action_dim + 1, 64) table folded (in f32) into W_ih1:
    # onehot @ (table @ W_ih1) == (onehot @ table) @ W_ih1 == emb @ W_ih1.
    table = u(next(keys), (NUM_EMB, ACT_EMB))
    table_pad = jnp.zeros((NUM_EMB_PAD, ACT_EMB), F32).at[:NUM_EMB].set(table)
    w_ih1 = u(next(keys), (ACT_EMB, 4 * LSTM_H))
    p["w_emb_ih1"] = jnp.dot(table_pad, w_ih1).astype(BF16)          # (16, 512)
    # LSTM layer 1 recurrent weight; fused bias = b_ih + b_hh
    p["w_hh1"] = u(next(keys), (LSTM_H, 4 * LSTM_H)).astype(BF16)
    p["b_l1"] = u(next(keys), (1, 4 * LSTM_H))
    # LSTM layer 2: kept split (input side / recurrent side); fused bias
    p["w_ih2"] = u(next(keys), (LSTM_H, 4 * LSTM_H)).astype(BF16)
    p["w_hh2"] = u(next(keys), (LSTM_H, 4 * LSTM_H)).astype(BF16)
    p["b_l2"] = u(next(keys), (1, 4 * LSTM_H))
    p["ln_a_w"] = jnp.ones((1, 128), F32)
    p["ln_a_b"] = jnp.zeros((1, 128), F32)
    # head: fc1 (512 -> 256) split along input dim per branch (e:256, s:128, a:128)
    w_f1 = u(next(keys), (512, 256))
    p["w_f1_e"] = w_f1[:256].astype(BF16)
    p["w_f1_s"] = w_f1[256:384].astype(BF16)
    p["w_f1_a"] = w_f1[384:].astype(BF16)
    p["b_f1"] = u(next(keys), (1, 256))
    # fc2 padded to 128 output lanes (lane-dense store; sliced outside)
    w_f2 = u(next(keys), (256, ACTION_DIM))
    b_f2 = u(next(keys), (1, ACTION_DIM))
    p["w_f2"] = jnp.zeros((256, OUT_PAD), F32).at[:, :ACTION_DIM].set(w_f2).astype(BF16)
    p["b_f2"] = jnp.zeros((1, OUT_PAD), F32).at[:, :ACTION_DIM].set(b_f2)
    return p


# --------------------------------- wrapper ------------------------------------
def qnetwork_forward(embedding, state_info, action_history, params):
    bsz, seq = action_history.shape
    # Time-major one-hot ids so each step's xproj slice is contiguous rows.
    ids_tm = jnp.transpose(action_history, (1, 0)).reshape(-1)
    onehot = jax.nn.one_hot(ids_tm, NUM_EMB_PAD, dtype=BF16)          # (T*B, 16)

    acts = [onehot, embedding, state_info]
    vmem_params = [params[k] for k in VMEM_PARAM_ORDER]
    hbm_params = [params[k] for k in HBM_PARAM_ORDER]
    inputs = acts + vmem_params + hbm_params

    in_specs = (
        [pl.BlockSpec(memory_space=pltpu.MemorySpace.VMEM)]
        * (len(acts) + len(vmem_params))
        + [pl.BlockSpec(memory_space=pl.ANY)] * len(hbm_params)
    )

    out = pl.pallas_call(
        qnetwork_kernel,
        out_shape=jax.ShapeDtypeStruct((bsz, OUT_PAD), jnp.float32),
        in_specs=in_specs,
        out_specs=pl.BlockSpec(memory_space=pltpu.MemorySpace.VMEM),
        scratch_shapes=[
            pltpu.VMEM((LSTM_H, 4 * LSTM_H), BF16),   # w_hh1
            pltpu.VMEM((LSTM_H, 4 * LSTM_H), BF16),   # w_ih2
            pltpu.VMEM((LSTM_H, 4 * LSTM_H), BF16),   # w_hh2
            pltpu.VMEM((256, 256), BF16),             # w_f1_e
            pltpu.VMEM((128, 256), BF16),             # w_f1_s
            pltpu.VMEM((128, 256), BF16),             # w_f1_a
            pltpu.VMEM((256, OUT_PAD), BF16),         # w_f2
            pltpu.SemaphoreType.DMA((7,)),
        ],
    )(*inputs)
    return out[:, :ACTION_DIM]


# ----------------------------------- main -------------------------------------
if __name__ == "__main__":
    root = jax.random.PRNGKey(0)
    k_params, k_emb, k_state, k_act = jax.random.split(root, 4)

    params = init_params(k_params)
    embedding = jax.random.normal(k_emb, (BATCH, EMB_DIM), dtype=jnp.float32)
    state_info = jax.random.normal(k_state, (BATCH, STATE_DIM), dtype=jnp.float32)
    action_history = jax.random.randint(
        k_act, (BATCH, SEQ_LEN), minval=0, maxval=NUM_EMB, dtype=jnp.int32)

    out = qnetwork_forward(embedding, state_info, action_history, params)
    out = jax.block_until_ready(out)
    assert out.shape == (BATCH, ACTION_DIM)
    assert jnp.all(jnp.isfinite(out))
    print("KERNEL_OK")
</pallas_src>

<mosaic_0001>
module attributes {stable_mosaic.version = 11 : i64} {
  func.func @qnetwork_kernel(%arg0: memref<64x16xbf16, #tpu.memory_space<vmem>>, %arg1: memref<8x32xf32, #tpu.memory_space<vmem>>, %arg2: memref<8x16xf32, #tpu.memory_space<vmem>>, %arg3: memref<32x512xbf16, #tpu.memory_space<vmem>>, %arg4: memref<1x512xf32, #tpu.memory_space<vmem>>, %arg5: memref<512x256xbf16, #tpu.memory_space<vmem>>, %arg6: memref<1x256xf32, #tpu.memory_space<vmem>>, %arg7: memref<1x256xf32, #tpu.memory_space<vmem>>, %arg8: memref<1x256xf32, #tpu.memory_space<vmem>>, %arg9: memref<16x128xbf16, #tpu.memory_space<vmem>>, %arg10: memref<1x128xf32, #tpu.memory_space<vmem>>, %arg11: memref<128x128xbf16, #tpu.memory_space<vmem>>, %arg12: memref<1x128xf32, #tpu.memory_space<vmem>>, %arg13: memref<1x128xf32, #tpu.memory_space<vmem>>, %arg14: memref<1x128xf32, #tpu.memory_space<vmem>>, %arg15: memref<16x512xbf16, #tpu.memory_space<vmem>>, %arg16: memref<1x512xf32, #tpu.memory_space<vmem>>, %arg17: memref<1x512xf32, #tpu.memory_space<vmem>>, %arg18: memref<1x128xf32, #tpu.memory_space<vmem>>, %arg19: memref<1x128xf32, #tpu.memory_space<vmem>>, %arg20: memref<1x256xf32, #tpu.memory_space<vmem>>, %arg21: memref<1x128xf32, #tpu.memory_space<vmem>>, %arg22: memref<128x512xbf16, #tpu.memory_space<any>>, %arg23: memref<128x512xbf16, #tpu.memory_space<any>>, %arg24: memref<128x512xbf16, #tpu.memory_space<any>>, %arg25: memref<256x256xbf16, #tpu.memory_space<any>>, %arg26: memref<128x256xbf16, #tpu.memory_space<any>>, %arg27: memref<128x256xbf16, #tpu.memory_space<any>>, %arg28: memref<256x128xbf16, #tpu.memory_space<any>>, %arg29: memref<8x128xf32, #tpu.memory_space<vmem>>, %arg30: memref<128x512xbf16, #tpu.memory_space<vmem>>, %arg31: memref<128x512xbf16, #tpu.memory_space<vmem>>, %arg32: memref<128x512xbf16, #tpu.memory_space<vmem>>, %arg33: memref<256x256xbf16, #tpu.memory_space<vmem>>, %arg34: memref<128x256xbf16, #tpu.memory_space<vmem>>, %arg35: memref<128x256xbf16, #tpu.memory_space<vmem>>, %arg36: memref<256x128xbf16, #tpu.memory_space<vmem>>, %arg37: memref<7x!tpu.dma_semaphore, #tpu.memory_space<semaphore_mem>>) attributes {dimension_semantics = [], scalar_prefetch = 0 : i64, scratch_operands = 8 : i64, tpu.core_type = #tpu.core_type<tc>} {
    %c0_i32 = arith.constant 0 : i32
    %0 = tpu.memref_slice %arg37[%c0_i32] : memref<7x!tpu.dma_semaphore, #tpu.memory_space<semaphore_mem>> -> memref<1x!tpu.dma_semaphore, #tpu.memory_space<semaphore_mem>>
    %1 = tpu.memref_squeeze %0 : memref<1x!tpu.dma_semaphore, #tpu.memory_space<semaphore_mem>> -> memref<!tpu.dma_semaphore, #tpu.memory_space<semaphore_mem>>
    tpu.enqueue_dma source(%arg23 : memref<128x512xbf16, #tpu.memory_space<any>>) target(%arg31 : memref<128x512xbf16, #tpu.memory_space<vmem>>) target_semaphore(%1 : memref<!tpu.dma_semaphore, #tpu.memory_space<semaphore_mem>>)
    %c1_i32 = arith.constant 1 : i32
    %2 = tpu.memref_slice %arg37[%c1_i32] : memref<7x!tpu.dma_semaphore, #tpu.memory_space<semaphore_mem>> -> memref<1x!tpu.dma_semaphore, #tpu.memory_space<semaphore_mem>>
    %3 = tpu.memref_squeeze %2 : memref<1x!tpu.dma_semaphore, #tpu.memory_space<semaphore_mem>> -> memref<!tpu.dma_semaphore, #tpu.memory_space<semaphore_mem>>
    tpu.enqueue_dma source(%arg22 : memref<128x512xbf16, #tpu.memory_space<any>>) target(%arg30 : memref<128x512xbf16, #tpu.memory_space<vmem>>) target_semaphore(%3 : memref<!tpu.dma_semaphore, #tpu.memory_space<semaphore_mem>>)
    %c2_i32 = arith.constant 2 : i32
    %4 = tpu.memref_slice %arg37[%c2_i32] : memref<7x!tpu.dma_semaphore, #tpu.memory_space<semaphore_mem>> -> memref<1x!tpu.dma_semaphore, #tpu.memory_space<semaphore_mem>>
    %5 = tpu.memref_squeeze %4 : memref<1x!tpu.dma_semaphore, #tpu.memory_space<semaphore_mem>> -> memref<!tpu.dma_semaphore, #tpu.memory_space<semaphore_mem>>
    tpu.enqueue_dma source(%arg24 : memref<128x512xbf16, #tpu.memory_space<any>>) target(%arg32 : memref<128x512xbf16, #tpu.memory_space<vmem>>) target_semaphore(%5 : memref<!tpu.dma_semaphore, #tpu.memory_space<semaphore_mem>>)
    %c3_i32 = arith.constant 3 : i32
    %6 = tpu.memref_slice %arg37[%c3_i32] : memref<7x!tpu.dma_semaphore, #tpu.memory_space<semaphore_mem>> -> memref<1x!tpu.dma_semaphore, #tpu.memory_space<semaphore_mem>>
    %7 = tpu.memref_squeeze %6 : memref<1x!tpu.dma_semaphore, #tpu.memory_space<semaphore_mem>> -> memref<!tpu.dma_semaphore, #tpu.memory_space<semaphore_mem>>
    tpu.enqueue_dma source(%arg25 : memref<256x256xbf16, #tpu.memory_space<any>>) target(%arg33 : memref<256x256xbf16, #tpu.memory_space<vmem>>) target_semaphore(%7 : memref<!tpu.dma_semaphore, #tpu.memory_space<semaphore_mem>>)
    %c4_i32 = arith.constant 4 : i32
    %8 = tpu.memref_slice %arg37[%c4_i32] : memref<7x!tpu.dma_semaphore, #tpu.memory_space<semaphore_mem>> -> memref<1x!tpu.dma_semaphore, #tpu.memory_space<semaphore_mem>>
    %9 = tpu.memref_squeeze %8 : memref<1x!tpu.dma_semaphore, #tpu.memory_space<semaphore_mem>> -> memref<!tpu.dma_semaphore, #tpu.memory_space<semaphore_mem>>
    tpu.enqueue_dma source(%arg26 : memref<128x256xbf16, #tpu.memory_space<any>>) target(%arg34 : memref<128x256xbf16, #tpu.memory_space<vmem>>) target_semaphore(%9 : memref<!tpu.dma_semaphore, #tpu.memory_space<semaphore_mem>>)
    %c5_i32 = arith.constant 5 : i32
    %10 = tpu.memref_slice %arg37[%c5_i32] : memref<7x!tpu.dma_semaphore, #tpu.memory_space<semaphore_mem>> -> memref<1x!tpu.dma_semaphore, #tpu.memory_space<semaphore_mem>>
    %11 = tpu.memref_squeeze %10 : memref<1x!tpu.dma_semaphore, #tpu.memory_space<semaphore_mem>> -> memref<!tpu.dma_semaphore, #tpu.memory_space<semaphore_mem>>
    tpu.enqueue_dma source(%arg27 : memref<128x256xbf16, #tpu.memory_space<any>>) target(%arg35 : memref<128x256xbf16, #tpu.memory_space<vmem>>) target_semaphore(%11 : memref<!tpu.dma_semaphore, #tpu.memory_space<semaphore_mem>>)
    %c6_i32 = arith.constant 6 : i32
    %12 = tpu.memref_slice %arg37[%c6_i32] : memref<7x!tpu.dma_semaphore, #tpu.memory_space<semaphore_mem>> -> memref<1x!tpu.dma_semaphore, #tpu.memory_space<semaphore_mem>>
    %13 = tpu.memref_squeeze %12 : memref<1x!tpu.dma_semaphore, #tpu.memory_space<semaphore_mem>> -> memref<!tpu.dma_semaphore, #tpu.memory_space<semaphore_mem>>
    tpu.enqueue_dma source(%arg28 : memref<256x128xbf16, #tpu.memory_space<any>>) target(%arg36 : memref<256x128xbf16, #tpu.memory_space<vmem>>) target_semaphore(%13 : memref<!tpu.dma_semaphore, #tpu.memory_space<semaphore_mem>>)
    %c0 = arith.constant 0 : index
    %c0_0 = arith.constant 0 : index
    %14 = vector.load %arg1[%c0, %c0_0] : memref<8x32xf32, #tpu.memory_space<vmem>>, vector<8x32xf32>
    %15 = arith.truncf %14 : vector<8x32xf32> to vector<8x32xbf16>
    %c0_1 = arith.constant 0 : index
    %c0_2 = arith.constant 0 : index
    %16 = vector.load %arg3[%c0_1, %c0_2] : memref<32x512xbf16, #tpu.memory_space<vmem>>, vector<32x512xbf16>
    %cst = arith.constant dense<0.000000e+00> : vector<8x512xf32>
    %17 = tpu.matmul %15, %16, %cst {dimension_numbers = #tpu.dot_dimension_numbers<[1], [0], [0], [1], [0, 0, 1, 1], [], []>} : vector<8x32xbf16>, vector<32x512xbf16>, vector<8x512xf32> -> vector<8x512xf32>
    %c0_3 = arith.constant 0 : index
    %c0_4 = arith.constant 0 : index
    %18 = vector.load %arg4[%c0_3, %c0_4] : memref<1x512xf32, #tpu.memory_space<vmem>>, vector<1x512xf32>
    %19 = vector.broadcast %18 : vector<1x512xf32> to vector<8x512xf32>
    %20 = arith.addf %17, %19 : vector<8x512xf32>
    %cst_5 = arith.constant 0.000000e+00 : f32
    %21 = vector.broadcast %cst_5 : f32 to vector<8x512xf32>
    %22 = arith.maximumf %20, %21 : vector<8x512xf32>
    %23 = arith.truncf %22 : vector<8x512xf32> to vector<8x512xbf16>
    %c0_6 = arith.constant 0 : index
    %c0_7 = arith.constant 0 : index
    %24 = vector.load %arg5[%c0_6, %c0_7] : memref<512x256xbf16, #tpu.memory_space<vmem>>, vector<512x256xbf16>
    %cst_8 = arith.constant dense<0.000000e+00> : vector<8x256xf32>
    %25 = tpu.matmul %23, %24, %cst_8 {dimension_numbers = #tpu.dot_dimension_numbers<[1], [0], [0], [1], [0, 0, 1, 1], [], []>} : vector<8x512xbf16>, vector<512x256xbf16>, vector<8x256xf32> -> vector<8x256xf32>
    %c0_9 = arith.constant 0 : index
    %c0_10 = arith.constant 0 : index
    %26 = vector.load %arg6[%c0_9, %c0_10] : memref<1x256xf32, #tpu.memory_space<vmem>>, vector<1x256xf32>
    %27 = vector.broadcast %26 : vector<1x256xf32> to vector<8x256xf32>
    %28 = arith.addf %25, %27 : vector<8x256xf32>
    %cst_11 = arith.constant 0.000000e+00 : f32
    %29 = vector.broadcast %cst_11 : f32 to vector<8x256xf32>
    %30 = arith.maximumf %28, %29 : vector<8x256xf32>
    %c0_12 = arith.constant 0 : index
    %c0_13 = arith.constant 0 : index
    %31 = vector.load %arg7[%c0_12, %c0_13] : memref<1x256xf32, #tpu.memory_space<vmem>>, vector<1x256xf32>
    %c0_14 = arith.constant 0 : index
    %c0_15 = arith.constant 0 : index
    %32 = vector.load %arg8[%c0_14, %c0_15] : memref<1x256xf32, #tpu.memory_space<vmem>>, vector<1x256xf32>
    %cst_16 = arith.constant dense<0.000000e+00> : vector<8xf32>
    %33 = vector.multi_reduction <add>, %30, %cst_16 [1] : vector<8x256xf32> to vector<8xf32>
    %34 = vector.shape_cast %33 : vector<8xf32> to vector<8x1xf32>
    %cst_17 = arith.constant 2.560000e+02 : f32
    %35 = vector.broadcast %cst_17 : f32 to vector<8x1xf32>
    %36 = arith.divf %34, %35 : vector<8x1xf32>
    %37 = vector.broadcast %36 : vector<8x1xf32> to vector<8x256xf32>
    %38 = arith.subf %30, %37 : vector<8x256xf32>
    %39 = arith.mulf %38, %38 : vector<8x256xf32>
    %cst_18 = arith.constant dense<0.000000e+00> : vector<8xf32>
    %40 = vector.multi_reduction <add>, %39, %cst_18 [1] : vector<8x256xf32> to vector<8xf32>
    %41 = vector.shape_cast %40 : vector<8xf32> to vector<8x1xf32>
    %cst_19 = arith.constant 2.560000e+02 : f32
    %42 = vector.broadcast %cst_19 : f32 to vector<8x1xf32>
    %43 = arith.divf %41, %42 : vector<8x1xf32>
    %cst_20 = arith.constant 9.99999974E-6 : f32
    %44 = vector.broadcast %cst_20 : f32 to vector<8x1xf32>
    %45 = arith.addf %43, %44 : vector<8x1xf32>
    %46 = math.rsqrt %45 : vector<8x1xf32>
    %47 = vector.broadcast %46 : vector<8x1xf32> to vector<8x256xf32>
    %48 = arith.mulf %38, %47 : vector<8x256xf32>
    %49 = vector.broadcast %31 : vector<1x256xf32> to vector<8x256xf32>
    %50 = arith.mulf %48, %49 : vector<8x256xf32>
    %51 = vector.broadcast %32 : vector<1x256xf32> to vector<8x256xf32>
    %52 = arith.addf %50, %51 : vector<8x256xf32>
    %c0_21 = arith.constant 0 : index
    %c0_22 = arith.constant 0 : index
    %53 = vector.load %arg2[%c0_21, %c0_22] : memref<8x16xf32, #tpu.memory_space<vmem>>, vector<8x16xf32>
    %54 = arith.truncf %53 : vector<8x16xf32> to vector<8x16xbf16>
    %c0_23 = arith.constant 0 : index
    %c0_24 = arith.constant 0 : index
    %55 = vector.load %arg9[%c0_23, %c0_24] : memref<16x128xbf16, #tpu.memory_space<vmem>>, vector<16x128xbf16>
    %cst_25 = arith.constant dense<0.000000e+00> : vector<8x128xf32>
    %56 = tpu.matmul %54, %55, %cst_25 {dimension_numbers = #tpu.dot_dimension_numbers<[1], [0], [0], [1], [0, 0, 1, 1], [], []>} : vector<8x16xbf16>, vector<16x128xbf16>, vector<8x128xf32> -> vector<8x128xf32>
    %c0_26 = arith.constant 0 : index
    %c0_27 = arith.constant 0 : index
    %57 = vector.load %arg10[%c0_26, %c0_27] : memref<1x128xf32, #tpu.memory_space<vmem>>, vector<1x128xf32>
    %58 = vector.broadcast %57 : vector<1x128xf32> to vector<8x128xf32>
    %59 = arith.addf %56, %58 : vector<8x128xf32>
    %cst_28 = arith.constant 0.000000e+00 : f32
    %60 = vector.broadcast %cst_28 : f32 to vector<8x128xf32>
    %61 = arith.maximumf %59, %60 : vector<8x128xf32>
    %62 = arith.truncf %61 : vector<8x128xf32> to vector<8x128xbf16>
    %c0_29 = arith.constant 0 : index
    %c0_30 = arith.constant 0 : index
    %63 = vector.load %arg11[%c0_29, %c0_30] : memref<128x128xbf16, #tpu.memory_space<vmem>>, vector<128x128xbf16>
    %cst_31 = arith.constant dense<0.000000e+00> : vector<8x128xf32>
    %64 = tpu.matmul %62, %63, %cst_31 {dimension_numbers = #tpu.dot_dimension_numbers<[1], [0], [0], [1], [0, 0, 1, 1], [], []>} : vector<8x128xbf16>, vector<128x128xbf16>, vector<8x128xf32> -> vector<8x128xf32>
    %c0_32 = arith.constant 0 : index
    %c0_33 = arith.constant 0 : index
    %65 = vector.load %arg12[%c0_32, %c0_33] : memref<1x128xf32, #tpu.memory_space<vmem>>, vector<1x128xf32>
    %66 = vector.broadcast %65 : vector<1x128xf32> to vector<8x128xf32>
    %67 = arith.addf %64, %66 : vector<8x128xf32>
    %cst_34 = arith.constant 0.000000e+00 : f32
    %68 = vector.broadcast %cst_34 : f32 to vector<8x128xf32>
    %69 = arith.maximumf %67, %68 : vector<8x128xf32>
    %c0_35 = arith.constant 0 : index
    %c0_36 = arith.constant 0 : index
    %70 = vector.load %arg13[%c0_35, %c0_36] : memref<1x128xf32, #tpu.memory_space<vmem>>, vector<1x128xf32>
    %c0_37 = arith.constant 0 : index
    %c0_38 = arith.constant 0 : index
    %71 = vector.load %arg14[%c0_37, %c0_38] : memref<1x128xf32, #tpu.memory_space<vmem>>, vector<1x128xf32>
    %cst_39 = arith.constant dense<0.000000e+00> : vector<8xf32>
    %72 = vector.multi_reduction <add>, %69, %cst_39 [1] : vector<8x128xf32> to vector<8xf32>
    %73 = vector.shape_cast %72 : vector<8xf32> to vector<8x1xf32>
    %cst_40 = arith.constant 1.280000e+02 : f32
    %74 = vector.broadcast %cst_40 : f32 to vector<8x1xf32>
    %75 = arith.divf %73, %74 : vector<8x1xf32>
    %76 = vector.broadcast %75 : vector<8x1xf32> to vector<8x128xf32>
    %77 = arith.subf %69, %76 : vector<8x128xf32>
    %78 = arith.mulf %77, %77 : vector<8x128xf32>
    %cst_41 = arith.constant dense<0.000000e+00> : vector<8xf32>
    %79 = vector.multi_reduction <add>, %78, %cst_41 [1] : vector<8x128xf32> to vector<8xf32>
    %80 = vector.shape_cast %79 : vector<8xf32> to vector<8x1xf32>
    %cst_42 = arith.constant 1.280000e+02 : f32
    %81 = vector.broadcast %cst_42 : f32 to vector<8x1xf32>
    %82 = arith.divf %80, %81 : vector<8x1xf32>
    %cst_43 = arith.constant 9.99999974E-6 : f32
    %83 = vector.broadcast %cst_43 : f32 to vector<8x1xf32>
    %84 = arith.addf %82, %83 : vector<8x1xf32>
    %85 = math.rsqrt %84 : vector<8x1xf32>
    %86 = vector.broadcast %85 : vector<8x1xf32> to vector<8x128xf32>
    %87 = arith.mulf %77, %86 : vector<8x128xf32>
    %88 = vector.broadcast %70 : vector<1x128xf32> to vector<8x128xf32>
    %89 = arith.mulf %87, %88 : vector<8x128xf32>
    %90 = vector.broadcast %71 : vector<1x128xf32> to vector<8x128xf32>
    %91 = arith.addf %89, %90 : vector<8x128xf32>
    %c0_44 = arith.constant 0 : index
    %c0_45 = arith.constant 0 : index
    %92 = vector.load %arg0[%c0_44, %c0_45] : memref<64x16xbf16, #tpu.memory_space<vmem>>, vector<64x16xbf16>
    %c0_46 = arith.constant 0 : index
    %c0_47 = arith.constant 0 : index
    %93 = vector.load %arg15[%c0_46, %c0_47] : memref<16x512xbf16, #tpu.memory_space<vmem>>, vector<16x512xbf16>
    %cst_48 = arith.constant dense<0.000000e+00> : vector<64x512xf32>
    %94 = tpu.matmul %92, %93, %cst_48 {dimension_numbers = #tpu.dot_dimension_numbers<[1], [0], [0], [1], [0, 0, 1, 1], [], []>} : vector<64x16xbf16>, vector<16x512xbf16>, vector<64x512xf32> -> vector<64x512xf32>
    %c0_49 = arith.constant 0 : index
    %c0_50 = arith.constant 0 : index
    %95 = vector.load %arg16[%c0_49, %c0_50] : memref<1x512xf32, #tpu.memory_space<vmem>>, vector<1x512xf32>
    %c0_51 = arith.constant 0 : index
    %c0_52 = arith.constant 0 : index
    %96 = vector.load %arg17[%c0_51, %c0_52] : memref<1x512xf32, #tpu.memory_space<vmem>>, vector<1x512xf32>
    %97 = vector.extract_strided_slice %94 {offsets = [0, 0], sizes = [8, 512], strides = [1, 1]} : vector<64x512xf32> to vector<8x512xf32>
    %98 = vector.broadcast %95 : vector<1x512xf32> to vector<8x512xf32>
    %99 = arith.addf %97, %98 : vector<8x512xf32>
    %100 = vector.extract_strided_slice %99 {offsets = [0, 0], sizes = [8, 128], strides = [1, 1]} : vector<8x512xf32> to vector<8x128xf32>
    %101 = arith.negf %100 : vector<8x128xf32>
    %102 = math.exp %101 : vector<8x128xf32>
    %cst_53 = arith.constant 1.000000e+00 : f32
    %103 = vector.broadcast %cst_53 : f32 to vector<8x128xf32>
    %104 = arith.addf %103, %102 : vector<8x128xf32>
    %105 = arith.divf %103, %104 : vector<8x128xf32>
    %106 = vector.extract_strided_slice %99 {offsets = [0, 256], sizes = [8, 128], strides = [1, 1]} : vector<8x512xf32> to vector<8x128xf32>
    %107 = math.tanh %106 : vector<8x128xf32>
    %108 = vector.extract_strided_slice %99 {offsets = [0, 384], sizes = [8, 128], strides = [1, 1]} : vector<8x512xf32> to vector<8x128xf32>
    %109 = arith.negf %108 : vector<8x128xf32>
    %110 = math.exp %109 : vector<8x128xf32>
    %cst_54 = arith.constant 1.000000e+00 : f32
    %111 = vector.broadcast %cst_54 : f32 to vector<8x128xf32>
    %112 = arith.addf %111, %110 : vector<8x128xf32>
    %113 = arith.divf %111, %112 : vector<8x128xf32>
    %114 = arith.mulf %105, %107 : vector<8x128xf32>
    %115 = math.tanh %114 : vector<8x128xf32>
    %116 = arith.mulf %113, %115 : vector<8x128xf32>
    %c0_i32_55 = arith.constant 0 : i32
    %117 = tpu.memref_slice %arg37[%c0_i32_55] : memref<7x!tpu.dma_semaphore, #tpu.memory_space<semaphore_mem>> -> memref<1x!tpu.dma_semaphore, #tpu.memory_space<semaphore_mem>>
    %118 = tpu.memref_squeeze %117 : memref<1x!tpu.dma_semaphore, #tpu.memory_space<semaphore_mem>> -> memref<!tpu.dma_semaphore, #tpu.memory_space<semaphore_mem>>
    tpu.wait_dma2 semaphore(%118 : memref<!tpu.dma_semaphore, #tpu.memory_space<semaphore_mem>>) src(%arg23 : memref<128x512xbf16, #tpu.memory_space<any>>) dst(%arg31 : memref<128x512xbf16, #tpu.memory_space<vmem>>)
    %c0_56 = arith.constant 0 : index
    %c0_57 = arith.constant 0 : index
    %119 = vector.load %arg31[%c0_56, %c0_57] : memref<128x512xbf16, #tpu.memory_space<vmem>>, vector<128x512xbf16>
    %120 = arith.truncf %116 : vector<8x128xf32> to vector<8x128xbf16>
    %cst_58 = arith.constant dense<0.000000e+00> : vector<8x512xf32>
    %121 = tpu.matmul %120, %119, %cst_58 {dimension_numbers = #tpu.dot_dimension_numbers<[1], [0], [0], [1], [0, 0, 1, 1], [], []>} : vector<8x128xbf16>, vector<128x512xbf16>, vector<8x512xf32> -> vector<8x512xf32>
    %122 = vector.broadcast %96 : vector<1x512xf32> to vector<8x512xf32>
    %123 = arith.addf %121, %122 : vector<8x512xf32>
    %124 = vector.extract_strided_slice %123 {offsets = [0, 0], sizes = [8, 128], strides = [1, 1]} : vector<8x512xf32> to vector<8x128xf32>
    %125 = arith.negf %124 : vector<8x128xf32>
    %126 = math.exp %125 : vector<8x128xf32>
    %cst_59 = arith.constant 1.000000e+00 : f32
    %127 = vector.broadcast %cst_59 : f32 to vector<8x128xf32>
    %128 = arith.addf %127, %126 : vector<8x128xf32>
    %129 = arith.divf %127, %128 : vector<8x128xf32>
    %130 = vector.extract_strided_slice %123 {offsets = [0, 256], sizes = [8, 128], strides = [1, 1]} : vector<8x512xf32> to vector<8x128xf32>
    %131 = math.tanh %130 : vector<8x128xf32>
    %132 = vector.extract_strided_slice %123 {offsets = [0, 384], sizes = [8, 128], strides = [1, 1]} : vector<8x512xf32> to vector<8x128xf32>
    %133 = arith.negf %132 : vector<8x128xf32>
    %134 = math.exp %133 : vector<8x128xf32>
    %cst_60 = arith.constant 1.000000e+00 : f32
    %135 = vector.broadcast %cst_60 : f32 to vector<8x128xf32>
    %136 = arith.addf %135, %134 : vector<8x128xf32>
    %137 = arith.divf %135, %136 : vector<8x128xf32>
    %138 = arith.mulf %129, %131 : vector<8x128xf32>
    %139 = math.tanh %138 : vector<8x128xf32>
    %140 = arith.mulf %137, %139 : vector<8x128xf32>
    %c1_i32_61 = arith.constant 1 : i32
    %141 = tpu.memref_slice %arg37[%c1_i32_61] : memref<7x!tpu.dma_semaphore, #tpu.memory_space<semaphore_mem>> -> memref<1x!tpu.dma_semaphore, #tpu.memory_space<semaphore_mem>>
    %142 = tpu.memref_squeeze %141 : memref<1x!tpu.dma_semaphore, #tpu.memory_space<semaphore_mem>> -> memref<!tpu.dma_semaphore, #tpu.memory_space<semaphore_mem>>
    tpu.wait_dma2 semaphore(%142 : memref<!tpu.dma_semaphore, #tpu.memory_space<semaphore_mem>>) src(%arg22 : memref<128x512xbf16, #tpu.memory_space<any>>) dst(%arg30 : memref<128x512xbf16, #tpu.memory_space<vmem>>)
    %c2_i32_62 = arith.constant 2 : i32
    %143 = tpu.memref_slice %arg37[%c2_i32_62] : memref<7x!tpu.dma_semaphore, #tpu.memory_space<semaphore_mem>> -> memref<1x!tpu.dma_semaphore, #tpu.memory_space<semaphore_mem>>
    %144 = tpu.memref_squeeze %143 : memref<1x!tpu.dma_semaphore, #tpu.memory_space<semaphore_mem>> -> memref<!tpu.dma_semaphore, #tpu.memory_space<semaphore_mem>>
    tpu.wait_dma2 semaphore(%144 : memref<!tpu.dma_semaphore, #tpu.memory_space<semaphore_mem>>) src(%arg24 : memref<128x512xbf16, #tpu.memory_space<any>>) dst(%arg32 : memref<128x512xbf16, #tpu.memory_space<vmem>>)
    %c0_63 = arith.constant 0 : index
    %c0_64 = arith.constant 0 : index
    %145 = vector.load %arg30[%c0_63, %c0_64] : memref<128x512xbf16, #tpu.memory_space<vmem>>, vector<128x512xbf16>
    %c0_65 = arith.constant 0 : index
    %c0_66 = arith.constant 0 : index
    %146 = vector.load %arg32[%c0_65, %c0_66] : memref<128x512xbf16, #tpu.memory_space<vmem>>, vector<128x512xbf16>
    %147 = vector.extract_strided_slice %94 {offsets = [8, 0], sizes = [8, 512], strides = [1, 1]} : vector<64x512xf32> to vector<8x512xf32>
    %148 = arith.truncf %116 : vector<8x128xf32> to vector<8x128xbf16>
    %cst_67 = arith.constant dense<0.000000e+00> : vector<8x512xf32>
    %149 = tpu.matmul %148, %145, %cst_67 {dimension_numbers = #tpu.dot_dimension_numbers<[1], [0], [0], [1], [0, 0, 1, 1], [], []>} : vector<8x128xbf16>, vector<128x512xbf16>, vector<8x512xf32> -> vector<8x512xf32>
    %150 = arith.addf %147, %149 : vector<8x512xf32>
    %151 = vector.broadcast %95 : vector<1x512xf32> to vector<8x512xf32>
    %152 = arith.addf %150, %151 : vector<8x512xf32>
    %153 = vector.extract_strided_slice %152 {offsets = [0, 0], sizes = [8, 128], strides = [1, 1]} : vector<8x512xf32> to vector<8x128xf32>
    %154 = arith.negf %153 : vector<8x128xf32>
    %155 = math.exp %154 : vector<8x128xf32>
    %cst_68 = arith.constant 1.000000e+00 : f32
    %156 = vector.broadcast %cst_68 : f32 to vector<8x128xf32>
    %157 = arith.addf %156, %155 : vector<8x128xf32>
    %158 = arith.divf %156, %157 : vector<8x128xf32>
    %159 = vector.extract_strided_slice %152 {offsets = [0, 128], sizes = [8, 128], strides = [1, 1]} : vector<8x512xf32> to vector<8x128xf32>
    %160 = arith.negf %159 : vector<8x128xf32>
    %161 = math.exp %160 : vector<8x128xf32>
    %cst_69 = arith.constant 1.000000e+00 : f32
    %162 = vector.broadcast %cst_69 : f32 to vector<8x128xf32>
    %163 = arith.addf %162, %161 : vector<8x128xf32>
    %164 = arith.divf %162, %163 : vector<8x128xf32>
    %165 = vector.extract_strided_slice %152 {offsets = [0, 256], sizes = [8, 128], strides = [1, 1]} : vector<8x512xf32> to vector<8x128xf32>
    %166 = math.tanh %165 : vector<8x128xf32>
    %167 = vector.extract_strided_slice %152 {offsets = [0, 384], sizes = [8, 128], strides = [1, 1]} : vector<8x512xf32> to vector<8x128xf32>
    %168 = arith.negf %167 : vector<8x128xf32>
    %169 = math.exp %168 : vector<8x128xf32>
    %cst_70 = arith.constant 1.000000e+00 : f32
    %170 = vector.broadcast %cst_70 : f32 to vector<8x128xf32>
    %171 = arith.addf %170, %169 : vector<8x128xf32>
    %172 = arith.divf %170, %171 : vector<8x128xf32>
    %173 = arith.mulf %164, %114 : vector<8x128xf32>
    %174 = arith.mulf %158, %166 : vector<8x128xf32>
    %175 = arith.addf %173, %174 : vector<8x128xf32>
    %176 = math.tanh %175 : vector<8x128xf32>
    %177 = arith.mulf %172, %176 : vector<8x128xf32>
    %178 = arith.truncf %140 : vector<8x128xf32> to vector<8x128xbf16>
    %cst_71 = arith.constant dense<0.000000e+00> : vector<8x512xf32>
    %179 = tpu.matmul %178, %146, %cst_71 {dimension_numbers = #tpu.dot_dimension_numbers<[1], [0], [0], [1], [0, 0, 1, 1], [], []>} : vector<8x128xbf16>, vector<128x512xbf16>, vector<8x512xf32> -> vector<8x512xf32>
    %180 = arith.truncf %177 : vector<8x128xf32> to vector<8x128xbf16>
    %cst_72 = arith.constant dense<0.000000e+00> : vector<8x512xf32>
    %181 = tpu.matmul %180, %119, %cst_72 {dimension_numbers = #tpu.dot_dimension_numbers<[1], [0], [0], [1], [0, 0, 1, 1], [], []>} : vector<8x128xbf16>, vector<128x512xbf16>, vector<8x512xf32> -> vector<8x512xf32>
    %182 = arith.addf %179, %181 : vector<8x512xf32>
    %183 = vector.broadcast %96 : vector<1x512xf32> to vector<8x512xf32>
    %184 = arith.addf %182, %183 : vector<8x512xf32>
    %185 = vector.extract_strided_slice %184 {offsets = [0, 0], sizes = [8, 128], strides = [1, 1]} : vector<8x512xf32> to vector<8x128xf32>
    %186 = arith.negf %185 : vector<8x128xf32>
    %187 = math.exp %186 : vector<8x128xf32>
    %cst_73 = arith.constant 1.000000e+00 : f32
    %188 = vector.broadcast %cst_73 : f32 to vector<8x128xf32>
    %189 = arith.addf %188, %187 : vector<8x128xf32>
    %190 = arith.divf %188, %189 : vector<8x128xf32>
    %191 = vector.extract_strided_slice %184 {offsets = [0, 128], sizes = [8, 128], strides = [1, 1]} : vector<8x512xf32> to vector<8x128xf32>
    %192 = arith.negf %191 : vector<8x128xf32>
    %193 = math.exp %192 : vector<8x128xf32>
    %cst_74 = arith.constant 1.000000e+00 : f32
    %194 = vector.broadcast %cst_74 : f32 to vector<8x128xf32>
    %195 = arith.addf %194, %193 : vector<8x128xf32>
    %196 = arith.divf %194, %195 : vector<8x128xf32>
    %197 = vector.extract_strided_slice %184 {offsets = [0, 256], sizes = [8, 128], strides = [1, 1]} : vector<8x512xf32> to vector<8x128xf32>
    %198 = math.tanh %197 : vector<8x128xf32>
    %199 = vector.extract_strided_slice %184 {offsets = [0, 384], sizes = [8, 128], strides = [1, 1]} : vector<8x512xf32> to vector<8x128xf32>
    %200 = arith.negf %199 : vector<8x128xf32>
    %201 = math.exp %200 : vector<8x128xf32>
    %cst_75 = arith.constant 1.000000e+00 : f32
    %202 = vector.broadcast %cst_75 : f32 to vector<8x128xf32>
    %203 = arith.addf %202, %201 : vector<8x128xf32>
    %204 = arith.divf %202, %203 : vector<8x128xf32>
    %205 = arith.mulf %196, %138 : vector<8x128xf32>
    %206 = arith.mulf %190, %198 : vector<8x128xf32>
    %207 = arith.addf %205, %206 : vector<8x128xf32>
    %208 = math.tanh %207 : vector<8x128xf32>
    %209 = arith.mulf %204, %208 : vector<8x128xf32>
    %210 = vector.extract_strided_slice %94 {offsets = [16, 0], sizes = [8, 512], strides = [1, 1]} : vector<64x512xf32> to vector<8x512xf32>
    %211 = arith.truncf %177 : vector<8x128xf32> to vector<8x128xbf16>
    %cst_76 = arith.constant dense<0.000000e+00> : vector<8x512xf32>
    %212 = tpu.matmul %211, %145, %cst_76 {dimension_numbers = #tpu.dot_dimension_numbers<[1], [0], [0], [1], [0, 0, 1, 1], [], []>} : vector<8x128xbf16>, vector<128x512xbf16>, vector<8x512xf32> -> vector<8x512xf32>
    %213 = arith.addf %210, %212 : vector<8x512xf32>
    %214 = vector.broadcast %95 : vector<1x512xf32> to vector<8x512xf32>
    %215 = arith.addf %213, %214 : vector<8x512xf32>
    %216 = vector.extract_strided_slice %215 {offsets = [0, 0], sizes = [8, 128], strides = [1, 1]} : vector<8x512xf32> to vector<8x128xf32>
    %217 = arith.negf %216 : vector<8x128xf32>
    %218 = math.exp %217 : vector<8x128xf32>
    %cst_77 = arith.constant 1.000000e+00 : f32
    %219 = vector.broadcast %cst_77 : f32 to vector<8x128xf32>
    %220 = arith.addf %219, %218 : vector<8x128xf32>
    %221 = arith.divf %219, %220 : vector<8x128xf32>
    %222 = vector.extract_strided_slice %215 {offsets = [0, 128], sizes = [8, 128], strides = [1, 1]} : vector<8x512xf32> to vector<8x128xf32>
    %223 = arith.negf %222 : vector<8x128xf32>
    %224 = math.exp %223 : vector<8x128xf32>
    %cst_78 = arith.constant 1.000000e+00 : f32
    %225 = vector.broadcast %cst_78 : f32 to vector<8x128xf32>
    %226 = arith.addf %225, %224 : vector<8x128xf32>
    %227 = arith.divf %225, %226 : vector<8x128xf32>
    %228 = vector.extract_strided_slice %215 {offsets = [0, 256], sizes = [8, 128], strides = [1, 1]} : vector<8x512xf32> to vector<8x128xf32>
    %229 = math.tanh %228 : vector<8x128xf32>
    %230 = vector.extract_strided_slice %215 {offsets = [0, 384], sizes = [8, 128], strides = [1, 1]} : vector<8x512xf32> to vector<8x128xf32>
    %231 = arith.negf %230 : vector<8x128xf32>
    %232 = math.exp %231 : vector<8x128xf32>
    %cst_79 = arith.constant 1.000000e+00 : f32
    %233 = vector.broadcast %cst_79 : f32 to vector<8x128xf32>
    %234 = arith.addf %233, %232 : vector<8x128xf32>
    %235 = arith.divf %233, %234 : vector<8x128xf32>
    %236 = arith.mulf %227, %175 : vector<8x128xf32>
    %237 = arith.mulf %221, %229 : vector<8x128xf32>
    %238 = arith.addf %236, %237 : vector<8x128xf32>
    %239 = math.tanh %238 : vector<8x128xf32>
    %240 = arith.mulf %235, %239 : vector<8x128xf32>
    %241 = arith.truncf %209 : vector<8x128xf32> to vector<8x128xbf16>
    %cst_80 = arith.constant dense<0.000000e+00> : vector<8x512xf32>
    %242 = tpu.matmul %241, %146, %cst_80 {dimension_numbers = #tpu.dot_dimension_numbers<[1], [0], [0], [1], [0, 0, 1, 1], [], []>} : vector<8x128xbf16>, vector<128x512xbf16>, vector<8x512xf32> -> vector<8x512xf32>
    %243 = arith.truncf %240 : vector<8x128xf32> to vector<8x128xbf16>
    %cst_81 = arith.constant dense<0.000000e+00> : vector<8x512xf32>
    %244 = tpu.matmul %243, %119, %cst_81 {dimension_numbers = #tpu.dot_dimension_numbers<[1], [0], [0], [1], [0, 0, 1, 1], [], []>} : vector<8x128xbf16>, vector<128x512xbf16>, vector<8x512xf32> -> vector<8x512xf32>
    %245 = arith.addf %242, %244 : vector<8x512xf32>
    %246 = vector.broadcast %96 : vector<1x512xf32> to vector<8x512xf32>
    %247 = arith.addf %245, %246 : vector<8x512xf32>
    %248 = vector.extract_strided_slice %247 {offsets = [0, 0], sizes = [8, 128], strides = [1, 1]} : vector<8x512xf32> to vector<8x128xf32>
    %249 = arith.negf %248 : vector<8x128xf32>
    %250 = math.exp %249 : vector<8x128xf32>
    %cst_82 = arith.constant 1.000000e+00 : f32
    %251 = vector.broadcast %cst_82 : f32 to vector<8x128xf32>
    %252 = arith.addf %251, %250 : vector<8x128xf32>
    %253 = arith.divf %251, %252 : vector<8x128xf32>
    %254 = vector.extract_strided_slice %247 {offsets = [0, 128], sizes = [8, 128], strides = [1, 1]} : vector<8x512xf32> to vector<8x128xf32>
    %255 = arith.negf %254 : vector<8x128xf32>
    %256 = math.exp %255 : vector<8x128xf32>
    %cst_83 = arith.constant 1.000000e+00 : f32
    %257 = vector.broadcast %cst_83 : f32 to vector<8x128xf32>
    %258 = arith.addf %257, %256 : vector<8x128xf32>
    %259 = arith.divf %257, %258 : vector<8x128xf32>
    %260 = vector.extract_strided_slice %247 {offsets = [0, 256], sizes = [8, 128], strides = [1, 1]} : vector<8x512xf32> to vector<8x128xf32>
    %261 = math.tanh %260 : vector<8x128xf32>
    %262 = vector.extract_strided_slice %247 {offsets = [0, 384], sizes = [8, 128], strides = [1, 1]} : vector<8x512xf32> to vector<8x128xf32>
    %263 = arith.negf %262 : vector<8x128xf32>
    %264 = math.exp %263 : vector<8x128xf32>
    %cst_84 = arith.constant 1.000000e+00 : f32
    %265 = vector.broadcast %cst_84 : f32 to vector<8x128xf32>
    %266 = arith.addf %265, %264 : vector<8x128xf32>
    %267 = arith.divf %265, %266 : vector<8x128xf32>
    %268 = arith.mulf %259, %207 : vector<8x128xf32>
    %269 = arith.mulf %253, %261 : vector<8x128xf32>
    %270 = arith.addf %268, %269 : vector<8x128xf32>
    %271 = math.tanh %270 : vector<8x128xf32>
    %272 = arith.mulf %267, %271 : vector<8x128xf32>
    %273 = vector.extract_strided_slice %94 {offsets = [24, 0], sizes = [8, 512], strides = [1, 1]} : vector<64x512xf32> to vector<8x512xf32>
    %274 = arith.truncf %240 : vector<8x128xf32> to vector<8x128xbf16>
    %cst_85 = arith.constant dense<0.000000e+00> : vector<8x512xf32>
    %275 = tpu.matmul %274, %145, %cst_85 {dimension_numbers = #tpu.dot_dimension_numbers<[1], [0], [0], [1], [0, 0, 1, 1], [], []>} : vector<8x128xbf16>, vector<128x512xbf16>, vector<8x512xf32> -> vector<8x512xf32>
    %276 = arith.addf %273, %275 : vector<8x512xf32>
    %277 = vector.broadcast %95 : vector<1x512xf32> to vector<8x512xf32>
    %278 = arith.addf %276, %277 : vector<8x512xf32>
    %279 = vector.extract_strided_slice %278 {offsets = [0, 0], sizes = [8, 128], strides = [1, 1]} : vector<8x512xf32> to vector<8x128xf32>
    %280 = arith.negf %279 : vector<8x128xf32>
    %281 = math.exp %280 : vector<8x128xf32>
    %cst_86 = arith.constant 1.000000e+00 : f32
    %282 = vector.broadcast %cst_86 : f32 to vector<8x128xf32>
    %283 = arith.addf %282, %281 : vector<8x128xf32>
    %284 = arith.divf %282, %283 : vector<8x128xf32>
    %285 = vector.extract_strided_slice %278 {offsets = [0, 128], sizes = [8, 128], strides = [1, 1]} : vector<8x512xf32> to vector<8x128xf32>
    %286 = arith.negf %285 : vector<8x128xf32>
    %287 = math.exp %286 : vector<8x128xf32>
    %cst_87 = arith.constant 1.000000e+00 : f32
    %288 = vector.broadcast %cst_87 : f32 to vector<8x128xf32>
    %289 = arith.addf %288, %287 : vector<8x128xf32>
    %290 = arith.divf %288, %289 : vector<8x128xf32>
    %291 = vector.extract_strided_slice %278 {offsets = [0, 256], sizes = [8, 128], strides = [1, 1]} : vector<8x512xf32> to vector<8x128xf32>
    %292 = math.tanh %291 : vector<8x128xf32>
    %293 = vector.extract_strided_slice %278 {offsets = [0, 384], sizes = [8, 128], strides = [1, 1]} : vector<8x512xf32> to vector<8x128xf32>
    %294 = arith.negf %293 : vector<8x128xf32>
    %295 = math.exp %294 : vector<8x128xf32>
    %cst_88 = arith.constant 1.000000e+00 : f32
    %296 = vector.broadcast %cst_88 : f32 to vector<8x128xf32>
    %297 = arith.addf %296, %295 : vector<8x128xf32>
    %298 = arith.divf %296, %297 : vector<8x128xf32>
    %299 = arith.mulf %290, %238 : vector<8x128xf32>
    %300 = arith.mulf %284, %292 : vector<8x128xf32>
    %301 = arith.addf %299, %300 : vector<8x128xf32>
    %302 = math.tanh %301 : vector<8x128xf32>
    %303 = arith.mulf %298, %302 : vector<8x128xf32>
    %304 = arith.truncf %272 : vector<8x128xf32> to vector<8x128xbf16>
    %cst_89 = arith.constant dense<0.000000e+00> : vector<8x512xf32>
    %305 = tpu.matmul %304, %146, %cst_89 {dimension_numbers = #tpu.dot_dimension_numbers<[1], [0], [0], [1], [0, 0, 1, 1], [], []>} : vector<8x128xbf16>, vector<128x512xbf16>, vector<8x512xf32> -> vector<8x512xf32>
    %306 = arith.truncf %303 : vector<8x128xf32> to vector<8x128xbf16>
    %cst_90 = arith.constant dense<0.000000e+00> : vector<8x512xf32>
    %307 = tpu.matmul %306, %119, %cst_90 {dimension_numbers = #tpu.dot_dimension_numbers<[1], [0], [0], [1], [0, 0, 1, 1], [], []>} : vector<8x128xbf16>, vector<128x512xbf16>, vector<8x512xf32> -> vector<8x512xf32>
    %308 = arith.addf %305, %307 : vector<8x512xf32>
    %309 = vector.broadcast %96 : vector<1x512xf32> to vector<8x512xf32>
    %310 = arith.addf %308, %309 : vector<8x512xf32>
    %311 = vector.extract_strided_slice %310 {offsets = [0, 0], sizes = [8, 128], strides = [1, 1]} : vector<8x512xf32> to vector<8x128xf32>
    %312 = arith.negf %311 : vector<8x128xf32>
    %313 = math.exp %312 : vector<8x128xf32>
    %cst_91 = arith.constant 1.000000e+00 : f32
    %314 = vector.broadcast %cst_91 : f32 to vector<8x128xf32>
    %315 = arith.addf %314, %313 : vector<8x128xf32>
    %316 = arith.divf %314, %315 : vector<8x128xf32>
    %317 = vector.extract_strided_slice %310 {offsets = [0, 128], sizes = [8, 128], strides = [1, 1]} : vector<8x512xf32> to vector<8x128xf32>
    %318 = arith.negf %317 : vector<8x128xf32>
    %319 = math.exp %318 : vector<8x128xf32>
    %cst_92 = arith.constant 1.000000e+00 : f32
    %320 = vector.broadcast %cst_92 : f32 to vector<8x128xf32>
    %321 = arith.addf %320, %319 : vector<8x128xf32>
    %322 = arith.divf %320, %321 : vector<8x128xf32>
    %323 = vector.extract_strided_slice %310 {offsets = [0, 256], sizes = [8, 128], strides = [1, 1]} : vector<8x512xf32> to vector<8x128xf32>
    %324 = math.tanh %323 : vector<8x128xf32>
    %325 = vector.extract_strided_slice %310 {offsets = [0, 384], sizes = [8, 128], strides = [1, 1]} : vector<8x512xf32> to vector<8x128xf32>
    %326 = arith.negf %325 : vector<8x128xf32>
    %327 = math.exp %326 : vector<8x128xf32>
    %cst_93 = arith.constant 1.000000e+00 : f32
    %328 = vector.broadcast %cst_93 : f32 to vector<8x128xf32>
    %329 = arith.addf %328, %327 : vector<8x128xf32>
    %330 = arith.divf %328, %329 : vector<8x128xf32>
    %331 = arith.mulf %322, %270 : vector<8x128xf32>
    %332 = arith.mulf %316, %324 : vector<8x128xf32>
    %333 = arith.addf %331, %332 : vector<8x128xf32>
    %334 = math.tanh %333 : vector<8x128xf32>
    %335 = arith.mulf %330, %334 : vector<8x128xf32>
    %336 = vector.extract_strided_slice %94 {offsets = [32, 0], sizes = [8, 512], strides = [1, 1]} : vector<64x512xf32> to vector<8x512xf32>
    %337 = arith.truncf %303 : vector<8x128xf32> to vector<8x128xbf16>
    %cst_94 = arith.constant dense<0.000000e+00> : vector<8x512xf32>
    %338 = tpu.matmul %337, %145, %cst_94 {dimension_numbers = #tpu.dot_dimension_numbers<[1], [0], [0], [1], [0, 0, 1, 1], [], []>} : vector<8x128xbf16>, vector<128x512xbf16>, vector<8x512xf32> -> vector<8x512xf32>
    %339 = arith.addf %336, %338 : vector<8x512xf32>
    %340 = vector.broadcast %95 : vector<1x512xf32> to vector<8x512xf32>
    %341 = arith.addf %339, %340 : vector<8x512xf32>
    %342 = vector.extract_strided_slice %341 {offsets = [0, 0], sizes = [8, 128], strides = [1, 1]} : vector<8x512xf32> to vector<8x128xf32>
    %343 = arith.negf %342 : vector<8x128xf32>
    %344 = math.exp %343 : vector<8x128xf32>
    %cst_95 = arith.constant 1.000000e+00 : f32
    %345 = vector.broadcast %cst_95 : f32 to vector<8x128xf32>
    %346 = arith.addf %345, %344 : vector<8x128xf32>
    %347 = arith.divf %345, %346 : vector<8x128xf32>
    %348 = vector.extract_strided_slice %341 {offsets = [0, 128], sizes = [8, 128], strides = [1, 1]} : vector<8x512xf32> to vector<8x128xf32>
    %349 = arith.negf %348 : vector<8x128xf32>
    %350 = math.exp %349 : vector<8x128xf32>
    %cst_96 = arith.constant 1.000000e+00 : f32
    %351 = vector.broadcast %cst_96 : f32 to vector<8x128xf32>
    %352 = arith.addf %351, %350 : vector<8x128xf32>
    %353 = arith.divf %351, %352 : vector<8x128xf32>
    %354 = vector.extract_strided_slice %341 {offsets = [0, 256], sizes = [8, 128], strides = [1, 1]} : vector<8x512xf32> to vector<8x128xf32>
    %355 = math.tanh %354 : vector<8x128xf32>
    %356 = vector.extract_strided_slice %341 {offsets = [0, 384], sizes = [8, 128], strides = [1, 1]} : vector<8x512xf32> to vector<8x128xf32>
    %357 = arith.negf %356 : vector<8x128xf32>
    %358 = math.exp %357 : vector<8x128xf32>
    %cst_97 = arith.constant 1.000000e+00 : f32
    %359 = vector.broadcast %cst_97 : f32 to vector<8x128xf32>
    %360 = arith.addf %359, %358 : vector<8x128xf32>
    %361 = arith.divf %359, %360 : vector<8x128xf32>
    %362 = arith.mulf %353, %301 : vector<8x128xf32>
    %363 = arith.mulf %347, %355 : vector<8x128xf32>
    %364 = arith.addf %362, %363 : vector<8x128xf32>
    %365 = math.tanh %364 : vector<8x128xf32>
    %366 = arith.mulf %361, %365 : vector<8x128xf32>
    %367 = arith.truncf %335 : vector<8x128xf32> to vector<8x128xbf16>
    %cst_98 = arith.constant dense<0.000000e+00> : vector<8x512xf32>
    %368 = tpu.matmul %367, %146, %cst_98 {dimension_numbers = #tpu.dot_dimension_numbers<[1], [0], [0], [1], [0, 0, 1, 1], [], []>} : vector<8x128xbf16>, vector<128x512xbf16>, vector<8x512xf32> -> vector<8x512xf32>
    %369 = arith.truncf %366 : vector<8x128xf32> to vector<8x128xbf16>
    %cst_99 = arith.constant dense<0.000000e+00> : vector<8x512xf32>
    %370 = tpu.matmul %369, %119, %cst_99 {dimension_numbers = #tpu.dot_dimension_numbers<[1], [0], [0], [1], [0, 0, 1, 1], [], []>} : vector<8x128xbf16>, vector<128x512xbf16>, vector<8x512xf32> -> vector<8x512xf32>
    %371 = arith.addf %368, %370 : vector<8x512xf32>
    %372 = vector.broadcast %96 : vector<1x512xf32> to vector<8x512xf32>
    %373 = arith.addf %371, %372 : vector<8x512xf32>
    %374 = vector.extract_strided_slice %373 {offsets = [0, 0], sizes = [8, 128], strides = [1, 1]} : vector<8x512xf32> to vector<8x128xf32>
    %375 = arith.negf %374 : vector<8x128xf32>
    %376 = math.exp %375 : vector<8x128xf32>
    %cst_100 = arith.constant 1.000000e+00 : f32
    %377 = vector.broadcast %cst_100 : f32 to vector<8x128xf32>
    %378 = arith.addf %377, %376 : vector<8x128xf32>
    %379 = arith.divf %377, %378 : vector<8x128xf32>
    %380 = vector.extract_strided_slice %373 {offsets = [0, 128], sizes = [8, 128], strides = [1, 1]} : vector<8x512xf32> to vector<8x128xf32>
    %381 = arith.negf %380 : vector<8x128xf32>
    %382 = math.exp %381 : vector<8x128xf32>
    %cst_101 = arith.constant 1.000000e+00 : f32
    %383 = vector.broadcast %cst_101 : f32 to vector<8x128xf32>
    %384 = arith.addf %383, %382 : vector<8x128xf32>
    %385 = arith.divf %383, %384 : vector<8x128xf32>
    %386 = vector.extract_strided_slice %373 {offsets = [0, 256], sizes = [8, 128], strides = [1, 1]} : vector<8x512xf32> to vector<8x128xf32>
    %387 = math.tanh %386 : vector<8x128xf32>
    %388 = vector.extract_strided_slice %373 {offsets = [0, 384], sizes = [8, 128], strides = [1, 1]} : vector<8x512xf32> to vector<8x128xf32>
    %389 = arith.negf %388 : vector<8x128xf32>
    %390 = math.exp %389 : vector<8x128xf32>
    %cst_102 = arith.constant 1.000000e+00 : f32
    %391 = vector.broadcast %cst_102 : f32 to vector<8x128xf32>
    %392 = arith.addf %391, %390 : vector<8x128xf32>
    %393 = arith.divf %391, %392 : vector<8x128xf32>
    %394 = arith.mulf %385, %333 : vector<8x128xf32>
    %395 = arith.mulf %379, %387 : vector<8x128xf32>
    %396 = arith.addf %394, %395 : vector<8x128xf32>
    %397 = math.tanh %396 : vector<8x128xf32>
    %398 = arith.mulf %393, %397 : vector<8x128xf32>
    %399 = vector.extract_strided_slice %94 {offsets = [40, 0], sizes = [8, 512], strides = [1, 1]} : vector<64x512xf32> to vector<8x512xf32>
    %400 = arith.truncf %366 : vector<8x128xf32> to vector<8x128xbf16>
    %cst_103 = arith.constant dense<0.000000e+00> : vector<8x512xf32>
    %401 = tpu.matmul %400, %145, %cst_103 {dimension_numbers = #tpu.dot_dimension_numbers<[1], [0], [0], [1], [0, 0, 1, 1], [], []>} : vector<8x128xbf16>, vector<128x512xbf16>, vector<8x512xf32> -> vector<8x512xf32>
    %402 = arith.addf %399, %401 : vector<8x512xf32>
    %403 = vector.broadcast %95 : vector<1x512xf32> to vector<8x512xf32>
    %404 = arith.addf %402, %403 : vector<8x512xf32>
    %405 = vector.extract_strided_slice %404 {offsets = [0, 0], sizes = [8, 128], strides = [1, 1]} : vector<8x512xf32> to vector<8x128xf32>
    %406 = arith.negf %405 : vector<8x128xf32>
    %407 = math.exp %406 : vector<8x128xf32>
    %cst_104 = arith.constant 1.000000e+00 : f32
    %408 = vector.broadcast %cst_104 : f32 to vector<8x128xf32>
    %409 = arith.addf %408, %407 : vector<8x128xf32>
    %410 = arith.divf %408, %409 : vector<8x128xf32>
    %411 = vector.extract_strided_slice %404 {offsets = [0, 128], sizes = [8, 128], strides = [1, 1]} : vector<8x512xf32> to vector<8x128xf32>
    %412 = arith.negf %411 : vector<8x128xf32>
    %413 = math.exp %412 : vector<8x128xf32>
    %cst_105 = arith.constant 1.000000e+00 : f32
    %414 = vector.broadcast %cst_105 : f32 to vector<8x128xf32>
    %415 = arith.addf %414, %413 : vector<8x128xf32>
    %416 = arith.divf %414, %415 : vector<8x128xf32>
    %417 = vector.extract_strided_slice %404 {offsets = [0, 256], sizes = [8, 128], strides = [1, 1]} : vector<8x512xf32> to vector<8x128xf32>
    %418 = math.tanh %417 : vector<8x128xf32>
    %419 = vector.extract_strided_slice %404 {offsets = [0, 384], sizes = [8, 128], strides = [1, 1]} : vector<8x512xf32> to vector<8x128xf32>
    %420 = arith.negf %419 : vector<8x128xf32>
    %421 = math.exp %420 : vector<8x128xf32>
    %cst_106 = arith.constant 1.000000e+00 : f32
    %422 = vector.broadcast %cst_106 : f32 to vector<8x128xf32>
    %423 = arith.addf %422, %421 : vector<8x128xf32>
    %424 = arith.divf %422, %423 : vector<8x128xf32>
    %425 = arith.mulf %416, %364 : vector<8x128xf32>
    %426 = arith.mulf %410, %418 : vector<8x128xf32>
    %427 = arith.addf %425, %426 : vector<8x128xf32>
    %428 = math.tanh %427 : vector<8x128xf32>
    %429 = arith.mulf %424, %428 : vector<8x128xf32>
    %430 = arith.truncf %398 : vector<8x128xf32> to vector<8x128xbf16>
    %cst_107 = arith.constant dense<0.000000e+00> : vector<8x512xf32>
    %431 = tpu.matmul %430, %146, %cst_107 {dimension_numbers = #tpu.dot_dimension_numbers<[1], [0], [0], [1], [0, 0, 1, 1], [], []>} : vector<8x128xbf16>, vector<128x512xbf16>, vector<8x512xf32> -> vector<8x512xf32>
    %432 = arith.truncf %429 : vector<8x128xf32> to vector<8x128xbf16>
    %cst_108 = arith.constant dense<0.000000e+00> : vector<8x512xf32>
    %433 = tpu.matmul %432, %119, %cst_108 {dimension_numbers = #tpu.dot_dimension_numbers<[1], [0], [0], [1], [0, 0, 1, 1], [], []>} : vector<8x128xbf16>, vector<128x512xbf16>, vector<8x512xf32> -> vector<8x512xf32>
    %434 = arith.addf %431, %433 : vector<8x512xf32>
    %435 = vector.broadcast %96 : vector<1x512xf32> to vector<8x512xf32>
    %436 = arith.addf %434, %435 : vector<8x512xf32>
    %437 = vector.extract_strided_slice %436 {offsets = [0, 0], sizes = [8, 128], strides = [1, 1]} : vector<8x512xf32> to vector<8x128xf32>
    %438 = arith.negf %437 : vector<8x128xf32>
    %439 = math.exp %438 : vector<8x128xf32>
    %cst_109 = arith.constant 1.000000e+00 : f32
    %440 = vector.broadcast %cst_109 : f32 to vector<8x128xf32>
    %441 = arith.addf %440, %439 : vector<8x128xf32>
    %442 = arith.divf %440, %441 : vector<8x128xf32>
    %443 = vector.extract_strided_slice %436 {offsets = [0, 128], sizes = [8, 128], strides = [1, 1]} : vector<8x512xf32> to vector<8x128xf32>
    %444 = arith.negf %443 : vector<8x128xf32>
    %445 = math.exp %444 : vector<8x128xf32>
    %cst_110 = arith.constant 1.000000e+00 : f32
    %446 = vector.broadcast %cst_110 : f32 to vector<8x128xf32>
    %447 = arith.addf %446, %445 : vector<8x128xf32>
    %448 = arith.divf %446, %447 : vector<8x128xf32>
    %449 = vector.extract_strided_slice %436 {offsets = [0, 256], sizes = [8, 128], strides = [1, 1]} : vector<8x512xf32> to vector<8x128xf32>
    %450 = math.tanh %449 : vector<8x128xf32>
    %451 = vector.extract_strided_slice %436 {offsets = [0, 384], sizes = [8, 128], strides = [1, 1]} : vector<8x512xf32> to vector<8x128xf32>
    %452 = arith.negf %451 : vector<8x128xf32>
    %453 = math.exp %452 : vector<8x128xf32>
    %cst_111 = arith.constant 1.000000e+00 : f32
    %454 = vector.broadcast %cst_111 : f32 to vector<8x128xf32>
    %455 = arith.addf %454, %453 : vector<8x128xf32>
    %456 = arith.divf %454, %455 : vector<8x128xf32>
    %457 = arith.mulf %448, %396 : vector<8x128xf32>
    %458 = arith.mulf %442, %450 : vector<8x128xf32>
    %459 = arith.addf %457, %458 : vector<8x128xf32>
    %460 = math.tanh %459 : vector<8x128xf32>
    %461 = arith.mulf %456, %460 : vector<8x128xf32>
    %462 = vector.extract_strided_slice %94 {offsets = [48, 0], sizes = [8, 512], strides = [1, 1]} : vector<64x512xf32> to vector<8x512xf32>
    %463 = arith.truncf %429 : vector<8x128xf32> to vector<8x128xbf16>
    %cst_112 = arith.constant dense<0.000000e+00> : vector<8x512xf32>
    %464 = tpu.matmul %463, %145, %cst_112 {dimension_numbers = #tpu.dot_dimension_numbers<[1], [0], [0], [1], [0, 0, 1, 1], [], []>} : vector<8x128xbf16>, vector<128x512xbf16>, vector<8x512xf32> -> vector<8x512xf32>
    %465 = arith.addf %462, %464 : vector<8x512xf32>
    %466 = vector.broadcast %95 : vector<1x512xf32> to vector<8x512xf32>
    %467 = arith.addf %465, %466 : vector<8x512xf32>
    %468 = vector.extract_strided_slice %467 {offsets = [0, 0], sizes = [8, 128], strides = [1, 1]} : vector<8x512xf32> to vector<8x128xf32>
    %469 = arith.negf %468 : vector<8x128xf32>
    %470 = math.exp %469 : vector<8x128xf32>
    %cst_113 = arith.constant 1.000000e+00 : f32
    %471 = vector.broadcast %cst_113 : f32 to vector<8x128xf32>
    %472 = arith.addf %471, %470 : vector<8x128xf32>
    %473 = arith.divf %471, %472 : vector<8x128xf32>
    %474 = vector.extract_strided_slice %467 {offsets = [0, 128], sizes = [8, 128], strides = [1, 1]} : vector<8x512xf32> to vector<8x128xf32>
    %475 = arith.negf %474 : vector<8x128xf32>
    %476 = math.exp %475 : vector<8x128xf32>
    %cst_114 = arith.constant 1.000000e+00 : f32
    %477 = vector.broadcast %cst_114 : f32 to vector<8x128xf32>
    %478 = arith.addf %477, %476 : vector<8x128xf32>
    %479 = arith.divf %477, %478 : vector<8x128xf32>
    %480 = vector.extract_strided_slice %467 {offsets = [0, 256], sizes = [8, 128], strides = [1, 1]} : vector<8x512xf32> to vector<8x128xf32>
    %481 = math.tanh %480 : vector<8x128xf32>
    %482 = vector.extract_strided_slice %467 {offsets = [0, 384], sizes = [8, 128], strides = [1, 1]} : vector<8x512xf32> to vector<8x128xf32>
    %483 = arith.negf %482 : vector<8x128xf32>
    %484 = math.exp %483 : vector<8x128xf32>
    %cst_115 = arith.constant 1.000000e+00 : f32
    %485 = vector.broadcast %cst_115 : f32 to vector<8x128xf32>
    %486 = arith.addf %485, %484 : vector<8x128xf32>
    %487 = arith.divf %485, %486 : vector<8x128xf32>
    %488 = arith.mulf %479, %427 : vector<8x128xf32>
    %489 = arith.mulf %473, %481 : vector<8x128xf32>
    %490 = arith.addf %488, %489 : vector<8x128xf32>
    %491 = math.tanh %490 : vector<8x128xf32>
    %492 = arith.mulf %487, %491 : vector<8x128xf32>
    %493 = arith.truncf %461 : vector<8x128xf32> to vector<8x128xbf16>
    %cst_116 = arith.constant dense<0.000000e+00> : vector<8x512xf32>
    %494 = tpu.matmul %493, %146, %cst_116 {dimension_numbers = #tpu.dot_dimension_numbers<[1], [0], [0], [1], [0, 0, 1, 1], [], []>} : vector<8x128xbf16>, vector<128x512xbf16>, vector<8x512xf32> -> vector<8x512xf32>
    %495 = arith.truncf %492 : vector<8x128xf32> to vector<8x128xbf16>
    %cst_117 = arith.constant dense<0.000000e+00> : vector<8x512xf32>
    %496 = tpu.matmul %495, %119, %cst_117 {dimension_numbers = #tpu.dot_dimension_numbers<[1], [0], [0], [1], [0, 0, 1, 1], [], []>} : vector<8x128xbf16>, vector<128x512xbf16>, vector<8x512xf32> -> vector<8x512xf32>
    %497 = arith.addf %494, %496 : vector<8x512xf32>
    %498 = vector.broadcast %96 : vector<1x512xf32> to vector<8x512xf32>
    %499 = arith.addf %497, %498 : vector<8x512xf32>
    %500 = vector.extract_strided_slice %499 {offsets = [0, 0], sizes = [8, 128], strides = [1, 1]} : vector<8x512xf32> to vector<8x128xf32>
    %501 = arith.negf %500 : vector<8x128xf32>
    %502 = math.exp %501 : vector<8x128xf32>
    %cst_118 = arith.constant 1.000000e+00 : f32
    %503 = vector.broadcast %cst_118 : f32 to vector<8x128xf32>
    %504 = arith.addf %503, %502 : vector<8x128xf32>
    %505 = arith.divf %503, %504 : vector<8x128xf32>
    %506 = vector.extract_strided_slice %499 {offsets = [0, 128], sizes = [8, 128], strides = [1, 1]} : vector<8x512xf32> to vector<8x128xf32>
    %507 = arith.negf %506 : vector<8x128xf32>
    %508 = math.exp %507 : vector<8x128xf32>
    %cst_119 = arith.constant 1.000000e+00 : f32
    %509 = vector.broadcast %cst_119 : f32 to vector<8x128xf32>
    %510 = arith.addf %509, %508 : vector<8x128xf32>
    %511 = arith.divf %509, %510 : vector<8x128xf32>
    %512 = vector.extract_strided_slice %499 {offsets = [0, 256], sizes = [8, 128], strides = [1, 1]} : vector<8x512xf32> to vector<8x128xf32>
    %513 = math.tanh %512 : vector<8x128xf32>
    %514 = vector.extract_strided_slice %499 {offsets = [0, 384], sizes = [8, 128], strides = [1, 1]} : vector<8x512xf32> to vector<8x128xf32>
    %515 = arith.negf %514 : vector<8x128xf32>
    %516 = math.exp %515 : vector<8x128xf32>
    %cst_120 = arith.constant 1.000000e+00 : f32
    %517 = vector.broadcast %cst_120 : f32 to vector<8x128xf32>
    %518 = arith.addf %517, %516 : vector<8x128xf32>
    %519 = arith.divf %517, %518 : vector<8x128xf32>
    %520 = arith.mulf %511, %459 : vector<8x128xf32>
    %521 = arith.mulf %505, %513 : vector<8x128xf32>
    %522 = arith.addf %520, %521 : vector<8x128xf32>
    %523 = math.tanh %522 : vector<8x128xf32>
    %524 = arith.mulf %519, %523 : vector<8x128xf32>
    %525 = vector.extract_strided_slice %94 {offsets = [56, 0], sizes = [8, 512], strides = [1, 1]} : vector<64x512xf32> to vector<8x512xf32>
    %526 = arith.truncf %492 : vector<8x128xf32> to vector<8x128xbf16>
    %cst_121 = arith.constant dense<0.000000e+00> : vector<8x512xf32>
    %527 = tpu.matmul %526, %145, %cst_121 {dimension_numbers = #tpu.dot_dimension_numbers<[1], [0], [0], [1], [0, 0, 1, 1], [], []>} : vector<8x128xbf16>, vector<128x512xbf16>, vector<8x512xf32> -> vector<8x512xf32>
    %528 = arith.addf %525, %527 : vector<8x512xf32>
    %529 = vector.broadcast %95 : vector<1x512xf32> to vector<8x512xf32>
    %530 = arith.addf %528, %529 : vector<8x512xf32>
    %531 = vector.extract_strided_slice %530 {offsets = [0, 0], sizes = [8, 128], strides = [1, 1]} : vector<8x512xf32> to vector<8x128xf32>
    %532 = arith.negf %531 : vector<8x128xf32>
    %533 = math.exp %532 : vector<8x128xf32>
    %cst_122 = arith.constant 1.000000e+00 : f32
    %534 = vector.broadcast %cst_122 : f32 to vector<8x128xf32>
    %535 = arith.addf %534, %533 : vector<8x128xf32>
    %536 = arith.divf %534, %535 : vector<8x128xf32>
    %537 = vector.extract_strided_slice %530 {offsets = [0, 128], sizes = [8, 128], strides = [1, 1]} : vector<8x512xf32> to vector<8x128xf32>
    %538 = arith.negf %537 : vector<8x128xf32>
    %539 = math.exp %538 : vector<8x128xf32>
    %cst_123 = arith.constant 1.000000e+00 : f32
    %540 = vector.broadcast %cst_123 : f32 to vector<8x128xf32>
    %541 = arith.addf %540, %539 : vector<8x128xf32>
    %542 = arith.divf %540, %541 : vector<8x128xf32>
    %543 = vector.extract_strided_slice %530 {offsets = [0, 256], sizes = [8, 128], strides = [1, 1]} : vector<8x512xf32> to vector<8x128xf32>
    %544 = math.tanh %543 : vector<8x128xf32>
    %545 = vector.extract_strided_slice %530 {offsets = [0, 384], sizes = [8, 128], strides = [1, 1]} : vector<8x512xf32> to vector<8x128xf32>
    %546 = arith.negf %545 : vector<8x128xf32>
    %547 = math.exp %546 : vector<8x128xf32>
    %cst_124 = arith.constant 1.000000e+00 : f32
    %548 = vector.broadcast %cst_124 : f32 to vector<8x128xf32>
    %549 = arith.addf %548, %547 : vector<8x128xf32>
    %550 = arith.divf %548, %549 : vector<8x128xf32>
    %551 = arith.mulf %542, %490 : vector<8x128xf32>
    %552 = arith.mulf %536, %544 : vector<8x128xf32>
    %553 = arith.addf %551, %552 : vector<8x128xf32>
    %554 = math.tanh %553 : vector<8x128xf32>
    %555 = arith.mulf %550, %554 : vector<8x128xf32>
    %556 = arith.truncf %524 : vector<8x128xf32> to vector<8x128xbf16>
    %cst_125 = arith.constant dense<0.000000e+00> : vector<8x512xf32>
    %557 = tpu.matmul %556, %146, %cst_125 {dimension_numbers = #tpu.dot_dimension_numbers<[1], [0], [0], [1], [0, 0, 1, 1], [], []>} : vector<8x128xbf16>, vector<128x512xbf16>, vector<8x512xf32> -> vector<8x512xf32>
    %558 = arith.truncf %555 : vector<8x128xf32> to vector<8x128xbf16>
    %cst_126 = arith.constant dense<0.000000e+00> : vector<8x512xf32>
    %559 = tpu.matmul %558, %119, %cst_126 {dimension_numbers = #tpu.dot_dimension_numbers<[1], [0], [0], [1], [0, 0, 1, 1], [], []>} : vector<8x128xbf16>, vector<128x512xbf16>, vector<8x512xf32> -> vector<8x512xf32>
    %560 = arith.addf %557, %559 : vector<8x512xf32>
    %561 = vector.broadcast %96 : vector<1x512xf32> to vector<8x512xf32>
    %562 = arith.addf %560, %561 : vector<8x512xf32>
    %563 = vector.extract_strided_slice %562 {offsets = [0, 0], sizes = [8, 128], strides = [1, 1]} : vector<8x512xf32> to vector<8x128xf32>
    %564 = arith.negf %563 : vector<8x128xf32>
    %565 = math.exp %564 : vector<8x128xf32>
    %cst_127 = arith.constant 1.000000e+00 : f32
    %566 = vector.broadcast %cst_127 : f32 to vector<8x128xf32>
    %567 = arith.addf %566, %565 : vector<8x128xf32>
    %568 = arith.divf %566, %567 : vector<8x128xf32>
    %569 = vector.extract_strided_slice %562 {offsets = [0, 128], sizes = [8, 128], strides = [1, 1]} : vector<8x512xf32> to vector<8x128xf32>
    %570 = arith.negf %569 : vector<8x128xf32>
    %571 = math.exp %570 : vector<8x128xf32>
    %cst_128 = arith.constant 1.000000e+00 : f32
    %572 = vector.broadcast %cst_128 : f32 to vector<8x128xf32>
    %573 = arith.addf %572, %571 : vector<8x128xf32>
    %574 = arith.divf %572, %573 : vector<8x128xf32>
    %575 = vector.extract_strided_slice %562 {offsets = [0, 256], sizes = [8, 128], strides = [1, 1]} : vector<8x512xf32> to vector<8x128xf32>
    %576 = math.tanh %575 : vector<8x128xf32>
    %577 = vector.extract_strided_slice %562 {offsets = [0, 384], sizes = [8, 128], strides = [1, 1]} : vector<8x512xf32> to vector<8x128xf32>
    %578 = arith.negf %577 : vector<8x128xf32>
    %579 = math.exp %578 : vector<8x128xf32>
    %cst_129 = arith.constant 1.000000e+00 : f32
    %580 = vector.broadcast %cst_129 : f32 to vector<8x128xf32>
    %581 = arith.addf %580, %579 : vector<8x128xf32>
    %582 = arith.divf %580, %581 : vector<8x128xf32>
    %583 = arith.mulf %574, %522 : vector<8x128xf32>
    %584 = arith.mulf %568, %576 : vector<8x128xf32>
    %585 = arith.addf %583, %584 : vector<8x128xf32>
    %586 = math.tanh %585 : vector<8x128xf32>
    %587 = arith.mulf %582, %586 : vector<8x128xf32>
    %c0_130 = arith.constant 0 : index
    %c0_131 = arith.constant 0 : index
    %588 = vector.load %arg18[%c0_130, %c0_131] : memref<1x128xf32, #tpu.memory_space<vmem>>, vector<1x128xf32>
    %c0_132 = arith.constant 0 : index
    %c0_133 = arith.constant 0 : index
    %589 = vector.load %arg19[%c0_132, %c0_133] : memref<1x128xf32, #tpu.memory_space<vmem>>, vector<1x128xf32>
    %cst_134 = arith.constant dense<0.000000e+00> : vector<8xf32>
    %590 = vector.multi_reduction <add>, %587, %cst_134 [1] : vector<8x128xf32> to vector<8xf32>
    %591 = vector.shape_cast %590 : vector<8xf32> to vector<8x1xf32>
    %cst_135 = arith.constant 1.280000e+02 : f32
    %592 = vector.broadcast %cst_135 : f32 to vector<8x1xf32>
    %593 = arith.divf %591, %592 : vector<8x1xf32>
    %594 = vector.broadcast %593 : vector<8x1xf32> to vector<8x128xf32>
    %595 = arith.subf %587, %594 : vector<8x128xf32>
    %596 = arith.mulf %595, %595 : vector<8x128xf32>
    %cst_136 = arith.constant dense<0.000000e+00> : vector<8xf32>
    %597 = vector.multi_reduction <add>, %596, %cst_136 [1] : vector<8x128xf32> to vector<8xf32>
    %598 = vector.shape_cast %597 : vector<8xf32> to vector<8x1xf32>
    %cst_137 = arith.constant 1.280000e+02 : f32
    %599 = vector.broadcast %cst_137 : f32 to vector<8x1xf32>
    %600 = arith.divf %598, %599 : vector<8x1xf32>
    %cst_138 = arith.constant 9.99999974E-6 : f32
    %601 = vector.broadcast %cst_138 : f32 to vector<8x1xf32>
    %602 = arith.addf %600, %601 : vector<8x1xf32>
    %603 = math.rsqrt %602 : vector<8x1xf32>
    %604 = vector.broadcast %603 : vector<8x1xf32> to vector<8x128xf32>
    %605 = arith.mulf %595, %604 : vector<8x128xf32>
    %606 = vector.broadcast %588 : vector<1x128xf32> to vector<8x128xf32>
    %607 = arith.mulf %605, %606 : vector<8x128xf32>
    %608 = vector.broadcast %589 : vector<1x128xf32> to vector<8x128xf32>
    %609 = arith.addf %607, %608 : vector<8x128xf32>
    %c3_i32_139 = arith.constant 3 : i32
    %610 = tpu.memref_slice %arg37[%c3_i32_139] : memref<7x!tpu.dma_semaphore, #tpu.memory_space<semaphore_mem>> -> memref<1x!tpu.dma_semaphore, #tpu.memory_space<semaphore_mem>>
    %611 = tpu.memref_squeeze %610 : memref<1x!tpu.dma_semaphore, #tpu.memory_space<semaphore_mem>> -> memref<!tpu.dma_semaphore, #tpu.memory_space<semaphore_mem>>
    tpu.wait_dma2 semaphore(%611 : memref<!tpu.dma_semaphore, #tpu.memory_space<semaphore_mem>>) src(%arg25 : memref<256x256xbf16, #tpu.memory_space<any>>) dst(%arg33 : memref<256x256xbf16, #tpu.memory_space<vmem>>)
    %c4_i32_140 = arith.constant 4 : i32
    %612 = tpu.memref_slice %arg37[%c4_i32_140] : memref<7x!tpu.dma_semaphore, #tpu.memory_space<semaphore_mem>> -> memref<1x!tpu.dma_semaphore, #tpu.memory_space<semaphore_mem>>
    %613 = tpu.memref_squeeze %612 : memref<1x!tpu.dma_semaphore, #tpu.memory_space<semaphore_mem>> -> memref<!tpu.dma_semaphore, #tpu.memory_space<semaphore_mem>>
    tpu.wait_dma2 semaphore(%613 : memref<!tpu.dma_semaphore, #tpu.memory_space<semaphore_mem>>) src(%arg26 : memref<128x256xbf16, #tpu.memory_space<any>>) dst(%arg34 : memref<128x256xbf16, #tpu.memory_space<vmem>>)
    %c5_i32_141 = arith.constant 5 : i32
    %614 = tpu.memref_slice %arg37[%c5_i32_141] : memref<7x!tpu.dma_semaphore, #tpu.memory_space<semaphore_mem>> -> memref<1x!tpu.dma_semaphore, #tpu.memory_space<semaphore_mem>>
    %615 = tpu.memref_squeeze %614 : memref<1x!tpu.dma_semaphore, #tpu.memory_space<semaphore_mem>> -> memref<!tpu.dma_semaphore, #tpu.memory_space<semaphore_mem>>
    tpu.wait_dma2 semaphore(%615 : memref<!tpu.dma_semaphore, #tpu.memory_space<semaphore_mem>>) src(%arg27 : memref<128x256xbf16, #tpu.memory_space<any>>) dst(%arg35 : memref<128x256xbf16, #tpu.memory_space<vmem>>)
    %616 = arith.truncf %52 : vector<8x256xf32> to vector<8x256xbf16>
    %c0_142 = arith.constant 0 : index
    %c0_143 = arith.constant 0 : index
    %617 = vector.load %arg33[%c0_142, %c0_143] : memref<256x256xbf16, #tpu.memory_space<vmem>>, vector<256x256xbf16>
    %cst_144 = arith.constant dense<0.000000e+00> : vector<8x256xf32>
    %618 = tpu.matmul %616, %617, %cst_144 {dimension_numbers = #tpu.dot_dimension_numbers<[1], [0], [0], [1], [0, 0, 1, 1], [], []>} : vector<8x256xbf16>, vector<256x256xbf16>, vector<8x256xf32> -> vector<8x256xf32>
    %619 = arith.truncf %91 : vector<8x128xf32> to vector<8x128xbf16>
    %c0_145 = arith.constant 0 : index
    %c0_146 = arith.constant 0 : index
    %620 = vector.load %arg34[%c0_145, %c0_146] : memref<128x256xbf16, #tpu.memory_space<vmem>>, vector<128x256xbf16>
    %cst_147 = arith.constant dense<0.000000e+00> : vector<8x256xf32>
    %621 = tpu.matmul %619, %620, %cst_147 {dimension_numbers = #tpu.dot_dimension_numbers<[1], [0], [0], [1], [0, 0, 1, 1], [], []>} : vector<8x128xbf16>, vector<128x256xbf16>, vector<8x256xf32> -> vector<8x256xf32>
    %622 = arith.addf %618, %621 : vector<8x256xf32>
    %623 = arith.truncf %609 : vector<8x128xf32> to vector<8x128xbf16>
    %c0_148 = arith.constant 0 : index
    %c0_149 = arith.constant 0 : index
    %624 = vector.load %arg35[%c0_148, %c0_149] : memref<128x256xbf16, #tpu.memory_space<vmem>>, vector<128x256xbf16>
    %cst_150 = arith.constant dense<0.000000e+00> : vector<8x256xf32>
    %625 = tpu.matmul %623, %624, %cst_150 {dimension_numbers = #tpu.dot_dimension_numbers<[1], [0], [0], [1], [0, 0, 1, 1], [], []>} : vector<8x128xbf16>, vector<128x256xbf16>, vector<8x256xf32> -> vector<8x256xf32>
    %626 = arith.addf %622, %625 : vector<8x256xf32>
    %c0_151 = arith.constant 0 : index
    %c0_152 = arith.constant 0 : index
    %627 = vector.load %arg20[%c0_151, %c0_152] : memref<1x256xf32, #tpu.memory_space<vmem>>, vector<1x256xf32>
    %628 = vector.broadcast %627 : vector<1x256xf32> to vector<8x256xf32>
    %629 = arith.addf %626, %628 : vector<8x256xf32>
    %cst_153 = arith.constant 0.000000e+00 : f32
    %630 = vector.broadcast %cst_153 : f32 to vector<8x256xf32>
    %631 = arith.maximumf %629, %630 : vector<8x256xf32>
    %c6_i32_154 = arith.constant 6 : i32
    %632 = tpu.memref_slice %arg37[%c6_i32_154] : memref<7x!tpu.dma_semaphore, #tpu.memory_space<semaphore_mem>> -> memref<1x!tpu.dma_semaphore, #tpu.memory_space<semaphore_mem>>
    %633 = tpu.memref_squeeze %632 : memref<1x!tpu.dma_semaphore, #tpu.memory_space<semaphore_mem>> -> memref<!tpu.dma_semaphore, #tpu.memory_space<semaphore_mem>>
    tpu.wait_dma2 semaphore(%633 : memref<!tpu.dma_semaphore, #tpu.memory_space<semaphore_mem>>) src(%arg28 : memref<256x128xbf16, #tpu.memory_space<any>>) dst(%arg36 : memref<256x128xbf16, #tpu.memory_space<vmem>>)
    %634 = arith.truncf %631 : vector<8x256xf32> to vector<8x256xbf16>
    %c0_155 = arith.constant 0 : index
    %c0_156 = arith.constant 0 : index
    %635 = vector.load %arg36[%c0_155, %c0_156] : memref<256x128xbf16, #tpu.memory_space<vmem>>, vector<256x128xbf16>
    %cst_157 = arith.constant dense<0.000000e+00> : vector<8x128xf32>
    %636 = tpu.matmul %634, %635, %cst_157 {dimension_numbers = #tpu.dot_dimension_numbers<[1], [0], [0], [1], [0, 0, 1, 1], [], []>} : vector<8x256xbf16>, vector<256x128xbf16>, vector<8x128xf32> -> vector<8x128xf32>
    %c0_158 = arith.constant 0 : index
    %c0_159 = arith.constant 0 : index
    %637 = vector.load %arg21[%c0_158, %c0_159] : memref<1x128xf32, #tpu.memory_space<vmem>>, vector<1x128xf32>
    %638 = vector.broadcast %637 : vector<1x128xf32> to vector<8x128xf32>
    %639 = arith.addf %636, %638 : vector<8x128xf32>
    %c0_160 = arith.constant 0 : index
    %c0_161 = arith.constant 0 : index
    %640 = vector.load %arg29[%c0_160, %c0_161] : memref<8x128xf32, #tpu.memory_space<vmem>>, vector<8x128xf32>
    tpu.vector_store %arg29[%c0_160, %c0_161], %639 {strides = array<i32>} : memref<8x128xf32, #tpu.memory_space<vmem>>, vector<8x128xf32>,
    return
  }
}

</mosaic_0001>

<llo_original>
// kernel: tpu_custom_call.1
$region0: #{tpu_custom_call.1}
  #allocation0 [shape = 'u32[]', space=smem, size = 0x4, offset = 0x4, fixed_abs, tag = 'smem constant byte address 0x4 - core index']
  #allocation1 [shape = 'u32[72,128]{1,0:T(1,128)}', space=vmem, size = 0x9000, scoped, tag = 'internal scratch']
  #allocation2 [shape = 'bf16[128,512]{1,0:T(8,128)(2,1)}', space=vmem, size = 0x20000, scoped, tag = 'scratch operand']
  #allocation3 [shape = 'bf16[128,512]{1,0:T(8,128)(2,1)}', space=vmem, size = 0x20000, scoped, tag = 'scratch operand']
  #allocation4 [shape = 'bf16[128,512]{1,0:T(8,128)(2,1)}', space=vmem, size = 0x20000, scoped, tag = 'scratch operand']
  #allocation5 [shape = 'bf16[256,256]{1,0:T(8,128)(2,1)}', space=vmem, size = 0x20000, scoped, tag = 'scratch operand']
  #allocation6 [shape = 'bf16[128,256]{1,0:T(8,128)(2,1)}', space=vmem, size = 0x10000, scoped, tag = 'scratch operand']
  #allocation7 [shape = 'bf16[128,256]{1,0:T(8,128)(2,1)}', space=vmem, size = 0x10000, scoped, tag = 'scratch operand']
  #allocation8 [shape = 'bf16[256,128]{1,0:T(8,128)(2,1)}', space=vmem, size = 0x10000, scoped, tag = 'scratch operand']
  #allocation9 [shape = 's32[7]{0}', space=sflag, size = 0x1c, scoped, tag = 'scratch operand']
  #allocation34 [shape = 's32[]', space=sflag, size = 0x4, offset = 0, fixed_abs, tag = 'sflag constant byte address 0x0 - dummy sync flag']
  #allocation35 [shape = 's32[]', space=sflag, size = 0x4, offset = 0, fixed_abs, tag = 'sflag constant byte address 0x0 - dummy sync flag']
  #allocation36 [shape = 'u32[]', space=smem, size = 0x4, offset = 0x44, fixed_abs, tag = 'smem constant byte address 0x44 - assertion arg 0']
  #allocation37 [shape = 'u32[]', space=smem, size = 0x4, offset = 0x48, fixed_abs, tag = 'smem constant byte address 0x48 - assertion arg 1']
  #allocation38 [shape = 's32[]', space=sflag, size = 0x4, offset = 0, fixed_abs, tag = 'sflag constant byte address 0x0 - dummy sync flag']
  #allocation39 [shape = 's32[]', space=sflag, size = 0x4, offset = 0, fixed_abs, tag = 'sflag constant byte address 0x0 - dummy sync flag']
  #allocation40 [shape = 's32[]', space=sflag, size = 0x4, offset = 0, fixed_abs, tag = 'sflag constant byte address 0x0 - dummy sync flag']
  #allocation41 [shape = 's32[]', space=sflag, size = 0x4, offset = 0, fixed_abs, tag = 'sflag constant byte address 0x0 - dummy sync flag']
  #allocation42 [shape = 's32[]', space=sflag, size = 0x4, offset = 0, fixed_abs, tag = 'sflag constant byte address 0x0 - dummy sync flag']
  #allocation43 [shape = 's32[]', space=sflag, size = 0x4, offset = 0, fixed_abs, tag = 'sflag constant byte address 0x0 - dummy sync flag']
  #allocation44 [shape = 's32[]', space=sflag, size = 0x4, offset = 0, fixed_abs, tag = 'sflag constant byte address 0x0 - dummy sync flag']
  #allocation45 [shape = 's32[]', space=sflag, size = 0x4, offset = 0, fixed_abs, tag = 'sflag constant byte address 0x0 - dummy sync flag']
  #allocation46 [shape = 's32[]', space=sflag, size = 0x4, offset = 0, fixed_abs, tag = 'sflag constant byte address 0x0 - dummy sync flag']
  #allocation47 [shape = 's32[]', space=sflag, size = 0x4, offset = 0, fixed_abs, tag = 'sflag constant byte address 0x0 - dummy sync flag']
  #allocation48 [shape = 's32[]', space=sflag, size = 0x4, offset = 0, fixed_abs, tag = 'sflag constant byte address 0x0 - dummy sync flag']
  #allocation49 [shape = 's32[]', space=sflag, size = 0x4, offset = 0, fixed_abs, tag = 'sflag constant byte address 0x0 - dummy sync flag']
  %s0 = inlined_call_operand.smem [shape: u32[30], index: -1, kind: input, shape index: {}]
  %s1 = sld [smem:[%s0]]
  %s2 = scalar_lea.smem %s0, 1
  %s3 = sld [smem:[%s2]]
  %s4 = scalar_lea.smem %s0, 2
  %s5 = sld [smem:[%s4]]
  %s6 = scalar_lea.smem %s0, 3
  %s7 = sld [smem:[%s6]]
  %s8 = scalar_lea.smem %s0, 4
  %s9 = sld [smem:[%s8]]
  %s10 = scalar_lea.smem %s0, 5
  %s11 = sld [smem:[%s10]]
  %s12 = scalar_lea.smem %s0, 6
  %s13 = sld [smem:[%s12]]
  %s14 = scalar_lea.smem %s0, 7
  %s15 = sld [smem:[%s14]]
  %s16 = scalar_lea.smem %s0, 8
  %s17 = sld [smem:[%s16]]
  %s18 = scalar_lea.smem %s0, 9
  %s19 = sld [smem:[%s18]]
  %s20 = scalar_lea.smem %s0, 10
  %s21 = sld [smem:[%s20]]
  %s22 = scalar_lea.smem %s0, 11
  %s23 = sld [smem:[%s22]]
  %s24 = scalar_lea.smem %s0, 12
  %s25 = sld [smem:[%s24]]
  %s26 = scalar_lea.smem %s0, 13
  %s27 = sld [smem:[%s26]]
  %s28 = scalar_lea.smem %s0, 14
  %s29 = sld [smem:[%s28]]
  %s30 = scalar_lea.smem %s0, 15
  %s31 = sld [smem:[%s30]]
  %s32 = scalar_lea.smem %s0, 16
  %s33 = sld [smem:[%s32]]
  %s34 = scalar_lea.smem %s0, 17
  %s35 = sld [smem:[%s34]]
  %s36 = scalar_lea.smem %s0, 18
  %s37 = sld [smem:[%s36]]
  %s38 = scalar_lea.smem %s0, 19
  %s39 = sld [smem:[%s38]]
  %s40 = scalar_lea.smem %s0, 20
  %s41 = sld [smem:[%s40]]
  %s42 = scalar_lea.smem %s0, 21
  %s43 = sld [smem:[%s42]]
  %s44 = scalar_lea.smem %s0, 22
  %s45 = sld [smem:[%s44]]
  %s46 = scalar_lea.smem %s0, 23
  %s47 = sld [smem:[%s46]]
  %s48 = scalar_lea.smem %s0, 24
  %s49 = sld [smem:[%s48]]
  %s50 = scalar_lea.smem %s0, 25
  %s51 = sld [smem:[%s50]]
  %s52 = scalar_lea.smem %s0, 26
  %s53 = sld [smem:[%s52]]
  %s54 = scalar_lea.smem %s0, 27
  %s55 = sld [smem:[%s54]]
  %s56 = scalar_lea.smem %s0, 28
  %s57 = sld [smem:[%s56]]
  %s58 = scalar_lea.smem %s0, 29
  %s59 = sld [smem:[%s58]]
  %s60 = sld [smem:[#allocation0]]
  $region182: #{tpu_custom_call.1} parent=0
    _
  %s62 = ssub.s32 1, %s60
  %s63 = scalar_select 0, %s62, %s60
  $region1: #{tpu_custom_call.1} parent=0
    #allocation10 [shape = 'u8[32768]{0}', space=vmem, size = 0x8000, scoped, tag = 'input window, operand 3, single buffered']
    #allocation11 [shape = 's32[1]{0}', space=sflag, size = 0x4, scoped, tag = 'scoped memory for tpu_custom_call.1']
    #allocation12 [shape = 's32[1]{0}', space=sflag, size = 0x4, scoped, tag = 'scoped memory for tpu_custom_call.1']
    #allocation13 [shape = 'u8[262144]{0}', space=vmem, size = 0x40000, scoped, tag = 'input window, operand 5, single buffered']
    #allocation14 [shape = 's32[1]{0}', space=sflag, size = 0x4, scoped, tag = 'scoped memory for tpu_custom_call.1']
    #allocation15 [shape = 'u8[1024]{0}', space=vmem, size = 0x400, scoped, tag = 'input window, operand 6, single buffered']
    #allocation16 [shape = 'u8[1024]{0}', space=vmem, size = 0x400, scoped, tag = 'input window, operand 7, single buffered']
    #allocation17 [shape = 's32[1]{0}', space=sflag, size = 0x4, scoped, tag = 'scoped memory for tpu_custom_call.1']
    #allocation18 [shape = 'u8[1024]{0}', space=vmem, size = 0x400, scoped, tag = 'input window, operand 8, single buffered']
    #allocation19 [shape = 'u8[4096]{0}', space=vmem, size = 0x1000, scoped, tag = 'input window, operand 9, single buffered']
    #allocation20 [shape = 's32[1]{0}', space=sflag, size = 0x4, scoped, tag = 'scoped memory for tpu_custom_call.1']
    #allocation21 [shape = 'u8[512]{0}', space=vmem, size = 0x400, scoped, tag = 'input window, operand 10, single buffered']
    #allocation22 [shape = 'u8[32768]{0}', space=vmem, size = 0x8000, scoped, tag = 'input window, operand 11, single buffered']
    #allocation23 [shape = 's32[1]{0}', space=sflag, size = 0x4, scoped, tag = 'scoped memory for tpu_custom_call.1']
    #allocation24 [shape = 'u8[512]{0}', space=vmem, size = 0x400, scoped, tag = 'input window, operand 12, single buffered']
    #allocation25 [shape = 'u8[512]{0}', space=vmem, size = 0x400, scoped, tag = 'input window, operand 13, single buffered']
    #allocation26 [shape = 's32[1]{0}', space=sflag, size = 0x4, scoped, tag = 'scoped memory for tpu_custom_call.1']
    #allocation27 [shape = 'u8[512]{0}', space=vmem, size = 0x400, scoped, tag = 'input window, operand 14, single buffered']
    #allocation28 [shape = 'u8[2048]{0}', space=vmem, size = 0x800, scoped, tag = 'input window, operand 16, single buffered']
    #allocation29 [shape = 's32[1]{0}', space=sflag, size = 0x4, scoped, tag = 'scoped memory for tpu_custom_call.1']
    #allocation30 [shape = 'u8[512]{0}', space=vmem, size = 0x400, scoped, tag = 'input window, operand 18, single buffered']
    #allocation31 [shape = 'u8[512]{0}', space=vmem, size = 0x400, scoped, tag = 'input window, operand 19, single buffered']
    #allocation32 [shape = 's32[1]{0}', space=sflag, size = 0x4, scoped, tag = 'scoped memory for tpu_custom_call.1']
    #allocation33 [shape = 'u8[4096]{0}', space=vmem, size = 0x1000, scoped, tag = 'output window, operand 0, single buffered']
    %64 = vsyncpa [#allocation11], 0
    %65 = vsyncpa [#allocation14], 0
    %66 = vsyncpa [#allocation17], 0
    %67 = vsyncpa [#allocation20], 0
    %68 = vsyncpa [#allocation23], 0
    %69 = vsyncpa [#allocation26], 0
    %70 = vsyncpa [#allocation29], 0
    %71 = vsyncpa [#allocation32], 0
    %72 = vsyncpa [#allocation12], 0
    // Predicated region
    $region2: #{tpu_custom_call.1} parent=1 // pred_check
      _
    $region3: #{tpu_custom_call.1} parent=1 // pred_check_branch
      %74 = sbr.rel (0) target = $region5
    $region4: #{tpu_custom_call.1} parent=1 // pred_region
      _
    $region5: #{tpu_custom_call.1} parent=1 // pred_fallthru
      _
    // Predicated region
    $region6: #{tpu_custom_call.1} parent=1 // pred_check
      _
    $region7: #{tpu_custom_call.1} parent=1 // pred_check_branch
      %76 = sbr.rel (0) target = $region9
    $region8: #{tpu_custom_call.1} parent=1 // pred_region
      _
    $region9: #{tpu_custom_call.1} parent=1 // pred_fallthru
      _
    // Predicated region
    $region10: #{tpu_custom_call.1} parent=1 // pred_check
      _
    $region11: #{tpu_custom_call.1} parent=1 // pred_check_branch
      %78 = sbr.rel (0) target = $region13
    $region12: #{tpu_custom_call.1} parent=1 // pred_region
      _
    $region13: #{tpu_custom_call.1} parent=1 // pred_fallthru
      _
    // Predicated region
    $region14: #{tpu_custom_call.1} parent=1 // pred_check
      _
    $region15: #{tpu_custom_call.1} parent=1 // pred_check_branch
      %80 = sbr.rel (0) target = $region17
    $region16: #{tpu_custom_call.1} parent=1 // pred_region
      %82 = vsyncadd [#allocation11], 0
      %s83 = sshll.u32 %s7, 4
      %s84 = int_to_ptr.hbm [resolvable:$true] %s83
      %s85 = sshll.u32 [#allocation10], 4
      %s86 = int_to_ptr.vmem [resolvable:$true] %s85
      %91 = dma.hbm_to_vmem [thread:$0]  %s84, 1024, %s86, [#allocation11], 256, 256, 16
    $region17: #{tpu_custom_call.1} parent=1 // pred_fallthru
      _
    // Predicated region
    $region18: #{tpu_custom_call.1} parent=1 // pred_check
      _
    $region19: #{tpu_custom_call.1} parent=1 // pred_check_branch
      %93 = sbr.rel (0) target = $region21
    $region20: #{tpu_custom_call.1} parent=1 // pred_region
      _
    $region21: #{tpu_custom_call.1} parent=1 // pred_fallthru
      _
    // Predicated region
    $region22: #{tpu_custom_call.1} parent=1 // pred_check
      _
    $region23: #{tpu_custom_call.1} parent=1 // pred_check_branch
      %95 = sbr.rel (0) target = $region25
    $region24: #{tpu_custom_call.1} parent=1 // pred_region
      %97 = vsyncadd [#allocation14], 0
      %s98 = sshll.u32 %s11, 4
      %s99 = int_to_ptr.hbm [resolvable:$true] %s98
      %s100 = sshll.u32 [#allocation13], 4
      %s101 = int_to_ptr.vmem [resolvable:$true] %s100
      %106 = dma.hbm_to_vmem [thread:$0]  %s99, 8192, %s101, [#allocation14], 128, 128, 8
    $region25: #{tpu_custom_call.1} parent=1 // pred_fallthru
      _
    // Predicated region
    $region26: #{tpu_custom_call.1} parent=1 // pred_check
      _
    $region27: #{tpu_custom_call.1} parent=1 // pred_check_branch
      %108 = sbr.rel (0) target = $region29
    $region28: #{tpu_custom_call.1} parent=1 // pred_region
      %110 = vsyncadd [#allocation14], 0
      %s112 = sshll.u32 %s13, 4
      %s113 = int_to_ptr.hbm [resolvable:$true] %s112
      %s114 = sshll.u32 [#allocation15], 4
      %s115 = int_to_ptr.vmem [resolvable:$true] %s114
      %117 = dma.hbm_to_vmem [thread:$0]  %s113, 32, %s115, [#allocation14]
    $region29: #{tpu_custom_call.1} parent=1 // pred_fallthru
      _
    // Predicated region
    $region30: #{tpu_custom_call.1} parent=1 // pred_check
      _
    $region31: #{tpu_custom_call.1} parent=1 // pred_check_branch
      %119 = sbr.rel (0) target = $region33
    $region32: #{tpu_custom_call.1} parent=1 // pred_region
      %121 = vsyncadd [#allocation17], 0
      %s123 = sshll.u32 %s15, 4
      %s124 = int_to_ptr.hbm [resolvable:$true] %s123
      %s125 = sshll.u32 [#allocation16], 4
      %s126 = int_to_ptr.vmem [resolvable:$true] %s125
      %128 = dma.hbm_to_vmem [thread:$0]  %s124, 32, %s126, [#allocation17]
    $region33: #{tpu_custom_call.1} parent=1 // pred_fallthru
      _
    // Predicated region
    $region34: #{tpu_custom_call.1} parent=1 // pred_check
      _
    $region35: #{tpu_custom_call.1} parent=1 // pred_check_branch
      %130 = sbr.rel (0) target = $region37
    $region36: #{tpu_custom_call.1} parent=1 // pred_region
      %132 = vsyncadd [#allocation17], 0
      %s134 = sshll.u32 %s17, 4
      %s135 = int_to_ptr.hbm [resolvable:$true] %s134
      %s136 = sshll.u32 [#allocation18], 4
      %s137 = int_to_ptr.vmem [resolvable:$true] %s136
      %139 = dma.hbm_to_vmem [thread:$0]  %s135, 32, %s137, [#allocation17]
    $region37: #{tpu_custom_call.1} parent=1 // pred_fallthru
      _
    // Predicated region
    $region38: #{tpu_custom_call.1} parent=1 // pred_check
      _
    $region39: #{tpu_custom_call.1} parent=1 // pred_check_branch
      %141 = sbr.rel (0) target = $region41
    $region40: #{tpu_custom_call.1} parent=1 // pred_region
      %143 = vsyncadd [#allocation20], 0
      %s144 = sshll.u32 %s19, 4
      %s145 = int_to_ptr.hbm [resolvable:$true] %s144
      %s146 = sshll.u32 [#allocation19], 4
      %s147 = int_to_ptr.vmem [resolvable:$true] %s146
      %152 = dma.hbm_to_vmem [thread:$0]  %s145, 128, %s147, [#allocation20], 64, 64, 4
    $region41: #{tpu_custom_call.1} parent=1 // pred_fallthru
      _
    // Predicated region
    $region42: #{tpu_custom_call.1} parent=1 // pred_check
      _
    $region43: #{tpu_custom_call.1} parent=1 // pred_check_branch
      %154 = sbr.rel (0) target = $region45
    $region44: #{tpu_custom_call.1} parent=1 // pred_region
      %156 = vsyncadd [#allocation20], 0
      %s158 = sshll.u32 %s21, 4
      %s159 = int_to_ptr.hbm [resolvable:$true] %s158
      %s160 = sshll.u32 [#allocation21], 4
      %s161 = int_to_ptr.vmem [resolvable:$true] %s160
      %163 = dma.hbm_to_vmem [thread:$0]  %s159, 16, %s161, [#allocation20]
    $region45: #{tpu_custom_call.1} parent=1 // pred_fallthru
      _
    // Predicated region
    $region46: #{tpu_custom_call.1} parent=1 // pred_check
      _
    $region47: #{tpu_custom_call.1} parent=1 // pred_check_branch
      %165 = sbr.rel (0) target = $region49
    $region48: #{tpu_custom_call.1} parent=1 // pred_region
      %167 = vsyncadd [#allocation23], 0
      %s168 = sshll.u32 %s23, 4
      %s169 = int_to_ptr.hbm [resolvable:$true] %s168
      %s170 = sshll.u32 [#allocation22], 4
      %s171 = int_to_ptr.vmem [resolvable:$true] %s170
      %176 = dma.hbm_to_vmem [thread:$0]  %s169, 1024, %s171, [#allocation23], 64, 64, 4
    $region49: #{tpu_custom_call.1} parent=1 // pred_fallthru
      _
    // Predicated region
    $region50: #{tpu_custom_call.1} parent=1 // pred_check
      _
    $region51: #{tpu_custom_call.1} parent=1 // pred_check_branch
      %178 = sbr.rel (0) target = $region53
    $region52: #{tpu_custom_call.1} parent=1 // pred_region
      %180 = vsyncadd [#allocation23], 0
      %s182 = sshll.u32 %s25, 4
      %s183 = int_to_ptr.hbm [resolvable:$true] %s182
      %s184 = sshll.u32 [#allocation24], 4
      %s185 = int_to_ptr.vmem [resolvable:$true] %s184
      %187 = dma.hbm_to_vmem [thread:$0]  %s183, 16, %s185, [#allocation23]
    $region53: #{tpu_custom_call.1} parent=1 // pred_fallthru
      _
    // Predicated region
    $region54: #{tpu_custom_call.1} parent=1 // pred_check
      _
    $region55: #{tpu_custom_call.1} parent=1 // pred_check_branch
      %189 = sbr.rel (0) target = $region57
    $region56: #{tpu_custom_call.1} parent=1 // pred_region
      %191 = vsyncadd [#allocation26], 0
      %s193 = sshll.u32 %s27, 4
      %s194 = int_to_ptr.hbm [resolvable:$true] %s193
      %s195 = sshll.u32 [#allocation25], 4
      %s196 = int_to_ptr.vmem [resolvable:$true] %s195
      %198 = dma.hbm_to_vmem [thread:$0]  %s194, 16, %s196, [#allocation26]
    $region57: #{tpu_custom_call.1} parent=1 // pred_fallthru
      _
    // Predicated region
    $region58: #{tpu_custom_call.1} parent=1 // pred_check
      _
    $region59: #{tpu_custom_call.1} parent=1 // pred_check_branch
      %200 = sbr.rel (0) target = $region61
    $region60: #{tpu_custom_call.1} parent=1 // pred_region
      %202 = vsyncadd [#allocation26], 0
      %s204 = sshll.u32 %s29, 4
      %s205 = int_to_ptr.hbm [resolvable:$true] %s204
      %s206 = sshll.u32 [#allocation27], 4
      %s207 = int_to_ptr.vmem [resolvable:$true] %s206
      %209 = dma.hbm_to_vmem [thread:$0]  %s205, 16, %s207, [#allocation26]
    $region61: #{tpu_custom_call.1} parent=1 // pred_fallthru
      _
    // Predicated region
    $region62: #{tpu_custom_call.1} parent=1 // pred_check
      _
    $region63: #{tpu_custom_call.1} parent=1 // pred_check_branch
      %211 = sbr.rel (0) target = $region65
    $region64: #{tpu_custom_call.1} parent=1 // pred_region
      _
    $region65: #{tpu_custom_call.1} parent=1 // pred_fallthru
      _
    // Predicated region
    $region66: #{tpu_custom_call.1} parent=1 // pred_check
      _
    $region67: #{tpu_custom_call.1} parent=1 // pred_check_branch
      %213 = sbr.rel (0) target = $region69
    $region68: #{tpu_custom_call.1} parent=1 // pred_region
      %215 = vsyncadd [#allocation29], 0
      %s217 = sshll.u32 %s33, 4
      %s218 = int_to_ptr.hbm [resolvable:$true] %s217
      %s219 = sshll.u32 [#allocation28], 4
      %s220 = int_to_ptr.vmem [resolvable:$true] %s219
      %222 = dma.hbm_to_vmem [thread:$0]  %s218, 64, %s220, [#allocation29]
    $region69: #{tpu_custom_call.1} parent=1 // pred_fallthru
      _
    // Predicated region
    $region70: #{tpu_custom_call.1} parent=1 // pred_check
      _
    $region71: #{tpu_custom_call.1} parent=1 // pred_check_branch
      %224 = sbr.rel (0) target = $region73
    $region72: #{tpu_custom_call.1} parent=1 // pred_region
      _
    $region73: #{tpu_custom_call.1} parent=1 // pred_fallthru
      _
    // Predicated region
    $region74: #{tpu_custom_call.1} parent=1 // pred_check
      _
    $region75: #{tpu_custom_call.1} parent=1 // pred_check_branch
      %226 = sbr.rel (0) target = $region77
    $region76: #{tpu_custom_call.1} parent=1 // pred_region
      %228 = vsyncadd [#allocation29], 0
      %s230 = sshll.u32 %s37, 4
      %s231 = int_to_ptr.hbm [resolvable:$true] %s230
      %s232 = sshll.u32 [#allocation30], 4
      %s233 = int_to_ptr.vmem [resolvable:$true] %s232
      %235 = dma.hbm_to_vmem [thread:$0]  %s231, 16, %s233, [#allocation29]
    $region77: #{tpu_custom_call.1} parent=1 // pred_fallthru
      _
    // Predicated region
    $region78: #{tpu_custom_call.1} parent=1 // pred_check
      _
    $region79: #{tpu_custom_call.1} parent=1 // pred_check_branch
      %237 = sbr.rel (0) target = $region81
    $region80: #{tpu_custom_call.1} parent=1 // pred_region
      %239 = vsyncadd [#allocation32], 0
      %s241 = sshll.u32 %s39, 4
      %s242 = int_to_ptr.hbm [resolvable:$true] %s241
      %s243 = sshll.u32 [#allocation31], 4
      %s244 = int_to_ptr.vmem [resolvable:$true] %s243
      %246 = dma.hbm_to_vmem [thread:$0]  %s242, 16, %s244, [#allocation32]
    $region81: #{tpu_custom_call.1} parent=1 // pred_fallthru
      _
    // Predicated region
    $region82: #{tpu_custom_call.1} parent=1 // pred_check
      _
    $region83: #{tpu_custom_call.1} parent=1 // pred_check_branch
      %248 = sbr.rel (0) target = $region85
    $region84: #{tpu_custom_call.1} parent=1 // pred_region
      _
    $region85: #{tpu_custom_call.1} parent=1 // pred_fallthru
      _
    // Predicated region
    $region86: #{tpu_custom_call.1} parent=1 // pred_check
      _
    $region87: #{tpu_custom_call.1} parent=1 // pred_check_branch
      %250 = sbr.rel (0) target = $region89
    $region88: #{tpu_custom_call.1} parent=1 // pred_region
      _
    $region89: #{tpu_custom_call.1} parent=1 // pred_fallthru
      _
    // Predicated region
    $region90: #{tpu_custom_call.1} parent=1 // pred_check
      _
    $region91: #{tpu_custom_call.1} parent=1 // pred_check_branch
      %252 = sbr.rel (0) target = $region93
    $region92: #{tpu_custom_call.1} parent=1 // pred_region
      %254 = dma.done [#allocation11], 1024
    $region93: #{tpu_custom_call.1} parent=1 // pred_fallthru
      _
    // Predicated region
    $region94: #{tpu_custom_call.1} parent=1 // pred_check
      _
    $region95: #{tpu_custom_call.1} parent=1 // pred_check_branch
      %256 = sbr.rel (0) target = $region97
    $region96: #{tpu_custom_call.1} parent=1 // pred_region
      %258 = dma.done [#allocation14], 8192
    $region97: #{tpu_custom_call.1} parent=1 // pred_fallthru
      _
    // Predicated region
    $region98: #{tpu_custom_call.1} parent=1 // pred_check
      _
    $region99: #{tpu_custom_call.1} parent=1 // pred_check_branch
      %260 = sbr.rel (0) target = $region101
    $region100: #{tpu_custom_call.1} parent=1 // pred_region
      %262 = dma.done [#allocation14], 32
    $region101: #{tpu_custom_call.1} parent=1 // pred_fallthru
      _
    // Predicated region
    $region102: #{tpu_custom_call.1} parent=1 // pred_check
      _
    $region103: #{tpu_custom_call.1} parent=1 // pred_check_branch
      %264 = sbr.rel (0) target = $region105
    $region104: #{tpu_custom_call.1} parent=1 // pred_region
      %266 = dma.done [#allocation17], 32
    $region105: #{tpu_custom_call.1} parent=1 // pred_fallthru
      _
    // Predicated region
    $region106: #{tpu_custom_call.1} parent=1 // pred_check
      _
    $region107: #{tpu_custom_call.1} parent=1 // pred_check_branch
      %268 = sbr.rel (0) target = $region109
    $region108: #{tpu_custom_call.1} parent=1 // pred_region
      %270 = dma.done [#allocation17], 32
    $region109: #{tpu_custom_call.1} parent=1 // pred_fallthru
      _
    // Predicated region
    $region110: #{tpu_custom_call.1} parent=1 // pred_check
      _
    $region111: #{tpu_custom_call.1} parent=1 // pred_check_branch
      %272 = sbr.rel (0) target = $region113
    $region112: #{tpu_custom_call.1} parent=1 // pred_region
      %274 = dma.done [#allocation20], 128
    $region113: #{tpu_custom_call.1} parent=1 // pred_fallthru
      _
    // Predicated region
    $region114: #{tpu_custom_call.1} parent=1 // pred_check
      _
    $region115: #{tpu_custom_call.1} parent=1 // pred_check_branch
      %276 = sbr.rel (0) target = $region117
    $region116: #{tpu_custom_call.1} parent=1 // pred_region
      %278 = dma.done [#allocation20], 16
    $region117: #{tpu_custom_call.1} parent=1 // pred_fallthru
      _
    // Predicated region
    $region118: #{tpu_custom_call.1} parent=1 // pred_check
      _
    $region119: #{tpu_custom_call.1} parent=1 // pred_check_branch
      %280 = sbr.rel (0) target = $region121
    $region120: #{tpu_custom_call.1} parent=1 // pred_region
      %282 = dma.done [#allocation23], 1024
    $region121: #{tpu_custom_call.1} parent=1 // pred_fallthru
      _
    // Predicated region
    $region122: #{tpu_custom_call.1} parent=1 // pred_check
      _
    $region123: #{tpu_custom_call.1} parent=1 // pred_check_branch
      %284 = sbr.rel (0) target = $region125
    $region124: #{tpu_custom_call.1} parent=1 // pred_region
      %286 = dma.done [#allocation23], 16
    $region125: #{tpu_custom_call.1} parent=1 // pred_fallthru
      _
    // Predicated region
    $region126: #{tpu_custom_call.1} parent=1 // pred_check
      _
    $region127: #{tpu_custom_call.1} parent=1 // pred_check_branch
      %288 = sbr.rel (0) target = $region129
    $region128: #{tpu_custom_call.1} parent=1 // pred_region
      %290 = dma.done [#allocation26], 16
    $region129: #{tpu_custom_call.1} parent=1 // pred_fallthru
      _
    // Predicated region
    $region130: #{tpu_custom_call.1} parent=1 // pred_check
      _
    $region131: #{tpu_custom_call.1} parent=1 // pred_check_branch
      %292 = sbr.rel (0) target = $region133
    $region132: #{tpu_custom_call.1} parent=1 // pred_region
      %294 = dma.done [#allocation26], 16
    $region133: #{tpu_custom_call.1} parent=1 // pred_fallthru
      _
    // Predicated region
    $region134: #{tpu_custom_call.1} parent=1 // pred_check
      _
    $region135: #{tpu_custom_call.1} parent=1 // pred_check_branch
      %296 = sbr.rel (0) target = $region137
    $region136: #{tpu_custom_call.1} parent=1 // pred_region
      %298 = dma.done [#allocation29], 64
    $region137: #{tpu_custom_call.1} parent=1 // pred_fallthru
      _
    // Predicated region
    $region138: #{tpu_custom_call.1} parent=1 // pred_check
      _
    $region139: #{tpu_custom_call.1} parent=1 // pred_check_branch
      %300 = sbr.rel (0) target = $region141
    $region140: #{tpu_custom_call.1} parent=1 // pred_region
      %302 = dma.done [#allocation29], 16
    $region141: #{tpu_custom_call.1} parent=1 // pred_fallthru
      _
    // Predicated region
    $region142: #{tpu_custom_call.1} parent=1 // pred_check
      _
    $region143: #{tpu_custom_call.1} parent=1 // pred_check_branch
      %304 = sbr.rel (0) target = $region145
    $region144: #{tpu_custom_call.1} parent=1 // pred_region
      %306 = dma.done [#allocation32], 16
    $region145: #{tpu_custom_call.1} parent=1 // pred_fallthru
      _
    // Predicated region
    $region146: #{tpu_custom_call.1} parent=1 // pred_check
      _
    $region147: #{tpu_custom_call.1} parent=1 // pred_check_branch
      %309 = sbr.rel target = $region149
    $region148: #{tpu_custom_call.1} parent=1 // pred_region
      %310 = sst [smem:[#allocation36]] [#allocation35]
      %311 = sst [smem:[#allocation37]] [#allocation34]
    $region149: #{tpu_custom_call.1} parent=1 // pred_fallthru
      _
    %313 = shalt.err (0)
    %s315 = sshll.u32 %s47, 4
    %s316 = int_to_ptr.hbm [resolvable:$true] %s315
    %s317 = sshll.u32 [#allocation3], 4
    %s318 = int_to_ptr.vmem [resolvable:$true] %s317
    %320 = dma.hbm_to_vmem [thread:$0]  %s316, 4096, %s318, [#allocation9]
    %s321 = scalar_lea.sflag [#allocation9], 1
    // Predicated region
    $region150: #{tpu_custom_call.1} parent=1 // pred_check
      _
    $region151: #{tpu_custom_call.1} parent=1 // pred_check_branch
      %323 = sbr.rel target = $region153
    $region152: #{tpu_custom_call.1} parent=1 // pred_region
      %324 = sst [smem:[#allocation36]] [#allocation39]
      %325 = sst [smem:[#allocation37]] [#allocation38]
    $region153: #{tpu_custom_call.1} parent=1 // pred_fallthru
      _
    %327 = shalt.err (0)
    %s329 = sshll.u32 %s45, 4
    %s330 = int_to_ptr.hbm [resolvable:$true] %s329
    %s331 = sshll.u32 [#allocation2], 4
    %s332 = int_to_ptr.vmem [resolvable:$true] %s331
    %334 = dma.hbm_to_vmem [thread:$0]  %s330, 4096, %s332, %s321
    %s335 = scalar_lea.sflag [#allocation9], 2
    // Predicated region
    $region154: #{tpu_custom_call.1} parent=1 // pred_check
      _
    $region155: #{tpu_custom_call.1} parent=1 // pred_check_branch
      %337 = sbr.rel target = $region157
    $region156: #{tpu_custom_call.1} parent=1 // pred_region
      %338 = sst [smem:[#allocation36]] [#allocation41]
      %339 = sst [smem:[#allocation37]] [#allocation40]
    $region157: #{tpu_custom_call.1} parent=1 // pred_fallthru
      _
    %341 = shalt.err (0)
    %s343 = sshll.u32 %s49, 4
    %s344 = int_to_ptr.hbm [resolvable:$true] %s343
    %s345 = sshll.u32 [#allocation4], 4
    %s346 = int_to_ptr.vmem [resolvable:$true] %s345
    %348 = dma.hbm_to_vmem [thread:$0]  %s344, 4096, %s346, %s335
    %s349 = scalar_lea.sflag [#allocation9], 3
    // Predicated region
    $region158: #{tpu_custom_call.1} parent=1 // pred_check
      _
    $region159: #{tpu_custom_call.1} parent=1 // pred_check_branch
      %351 = sbr.rel target = $region161
    $region160: #{tpu_custom_call.1} parent=1 // pred_region
      %352 = sst [smem:[#allocation36]] [#allocation43]
      %353 = sst [smem:[#allocation37]] [#allocation42]
    $region161: #{tpu_custom_call.1} parent=1 // pred_fallthru
      _
    %355 = shalt.err (0)
    %s357 = sshll.u32 %s51, 4
    %s358 = int_to_ptr.hbm [resolvable:$true] %s357
    %s359 = sshll.u32 [#allocation5], 4
    %s360 = int_to_ptr.vmem [resolvable:$true] %s359
    %362 = dma.hbm_to_vmem [thread:$0]  %s358, 4096, %s360, %s349
    %s363 = scalar_lea.sflag [#allocation9], 4
    // Predicated region
    $region162: #{tpu_custom_call.1} parent=1 // pred_check
      _
    $region163: #{tpu_custom_call.1} parent=1 // pred_check_branch
      %365 = sbr.rel target = $region165
    $region164: #{tpu_custom_call.1} parent=1 // pred_region
      %366 = sst [smem:[#allocation36]] [#allocation45]
      %367 = sst [smem:[#allocation37]] [#allocation44]
    $region165: #{tpu_custom_call.1} parent=1 // pred_fallthru
      _
    %369 = shalt.err (0)
    %s371 = sshll.u32 %s53, 4
    %s372 = int_to_ptr.hbm [resolvable:$true] %s371
    %s373 = sshll.u32 [#allocation6], 4
    %s374 = int_to_ptr.vmem [resolvable:$true] %s373
    %376 = dma.hbm_to_vmem [thread:$0]  %s372, 2048, %s374, %s363
    %s377 = scalar_lea.sflag [#allocation9], 5
    // Predicated region
    $region166: #{tpu_custom_call.1} parent=1 // pred_check
      _
    $region167: #{tpu_custom_call.1} parent=1 // pred_check_branch
      %379 = sbr.rel target = $region169
    $region168: #{tpu_custom_call.1} parent=1 // pred_region
      %380 = sst [smem:[#allocation36]] [#allocation47]
      %381 = sst [smem:[#allocation37]] [#allocation46]
    $region169: #{tpu_custom_call.1} parent=1 // pred_fallthru
      _
    %383 = shalt.err (0)
    %s385 = sshll.u32 %s55, 4
    %s386 = int_to_ptr.hbm [resolvable:$true] %s385
    %s387 = sshll.u32 [#allocation7], 4
    %s388 = int_to_ptr.vmem [resolvable:$true] %s387
    %390 = dma.hbm_to_vmem [thread:$0]  %s386, 2048, %s388, %s377
    %s391 = scalar_lea.sflag [#allocation9], 6
    // Predicated region
    $region170: #{tpu_custom_call.1} parent=1 // pred_check
      _
    $region171: #{tpu_custom_call.1} parent=1 // pred_check_branch
      %393 = sbr.rel target = $region173
    $region172: #{tpu_custom_call.1} parent=1 // pred_region
      %394 = sst [smem:[#allocation36]] [#allocation49]
      %395 = sst [smem:[#allocation37]] [#allocation48]
    $region173: #{tpu_custom_call.1} parent=1 // pred_fallthru
      _
    %397 = shalt.err (0)
    %s399 = sshll.u32 %s57, 4
    %s400 = int_to_ptr.hbm [resolvable:$true] %s399
    %s401 = sshll.u32 [#allocation8], 4
    %s402 = int_to_ptr.vmem [resolvable:$true] %s401
    %404 = dma.hbm_to_vmem [thread:$0]  %s400, 2048, %s402, %s391
    %v405 = vld [vmem:[%s3] sm:$0xff]
    %v406 = vpack.c.bf16 %v405, %v405
    %v407 = vld [vmem:[#allocation10] sm:$0xff]
    %v408 = vld [vmem:[#allocation10 + $0x8] sm:$0xff]
    %v409 = vld [vmem:[#allocation10 + $0x10] sm:$0xff]
    %v410 = vld [vmem:[#allocation10 + $0x18] sm:$0xff]
    %v411 = vld [vmem:[#allocation10 + $0x20] sm:$0xff]
    %v412 = vld [vmem:[#allocation10 + $0x28] sm:$0xff]
    %v413 = vld [vmem:[#allocation10 + $0x30] sm:$0xff]
    %v414 = vld [vmem:[#allocation10 + $0x38] sm:$0xff]
    %v415 = vld [vmem:[%s9] sm:$0xf]
    %v417 = vperm.slane %v415, 0
    %v418 = vperm.slane %v415, 1
    %v419 = vperm.slane %v415, 2
    %v420 = vperm.slane %v415, 3
    %v433 = vunpack.c.l.b16 %v407
    %v434 = vunpack.c.h.b16 %v407
    %v435 = vunpack.c.l.b16 %v408
    %v436 = vunpack.c.h.b16 %v408
    %v437 = vunpack.c.l.b16 %v409
    %v438 = vunpack.c.h.b16 %v409
    %v439 = vunpack.c.l.b16 %v410
    %v440 = vunpack.c.h.b16 %v410
    %v441 = vunpack.c.l.b16 %v411
    %v442 = vunpack.c.h.b16 %v411
    %v443 = vunpack.c.l.b16 %v412
    %v444 = vunpack.c.h.b16 %v412
    %v445 = vunpack.c.l.b16 %v413
    %v446 = vunpack.c.h.b16 %v413
    %v447 = vunpack.c.l.b16 %v414
    %v448 = vunpack.c.h.b16 %v414
    %v449 = vpack.c.b16 %v437, %v433
    %v450 = vpack.c.b16 %v438, %v434
    %v451 = vpack.c.b16 %v439, %v435
    %v452 = vpack.c.b16 %v440, %v436
    %v453 = vpack.c.b16 %v445, %v441
    %v454 = vpack.c.b16 %v446, %v442
    %v455 = vpack.c.b16 %v447, %v443
    %v456 = vpack.c.b16 %v448, %v444
    %vm465 = vcmask 261120
    %v467 = vsel %vm465, %v406, 0
    %469 = vmatpush.bf16.msra.mxu0 0
    %470 = vmatpush.bf16.msra.mxu0 0
    %471 = vmatpush.bf16.msra.mxu0 0
    %472 = vmatpush.bf16.msra.mxu0 0
    %473 = vmatpush.bf16.msra.mxu0 0
    %474 = vmatpush.bf16.msra.mxu0 0
    %475 = vmatpush.bf16.msra.mxu0 %v453
    %476 = vmatpush.bf16.msra.mxu0 %v449
    %477 = vmatmul.bf16.gmra.mxu0 %v467
    %v478 = vpop.f32.mrf.mxu0
    %v479 = vadd.f32 %v417, %v478
    %v480 = vpop.f32.mrf.mxu0
    %481 = vdwg.mxu0
    %482 = vmatpush.bf16.msra.mxu0 0
    %483 = vmatpush.bf16.msra.mxu0 0
    %484 = vmatpush.bf16.msra.mxu0 0
    %485 = vmatpush.bf16.msra.mxu0 0
    %486 = vmatpush.bf16.msra.mxu0 0
    %487 = vmatpush.bf16.msra.mxu0 0
    %488 = vmatpush.bf16.msra.mxu0 %v454
    %489 = vmatpush.bf16.msra.mxu0 %v450
    %490 = vmatmul.bf16.gmra.mxu0 %v467
    %v491 = vpop.f32.mrf.mxu0
    %v492 = vadd.f32 %v418, %v491
    %v493 = vpop.f32.mrf.mxu0
    %494 = vdwg.mxu0
    %495 = vmatpush.bf16.msra.mxu0 0
    %496 = vmatpush.bf16.msra.mxu0 0
    %497 = vmatpush.bf16.msra.mxu0 0
    %498 = vmatpush.bf16.msra.mxu0 0
    %499 = vmatpush.bf16.msra.mxu0 0
    %500 = vmatpush.bf16.msra.mxu0 0
    %501 = vmatpush.bf16.msra.mxu0 %v455
    %502 = vmatpush.bf16.msra.mxu0 %v451
    %503 = vmatmul.bf16.gmra.mxu0 %v467
    %v504 = vpop.f32.mrf.mxu0
    %v505 = vadd.f32 %v419, %v504
    %v506 = vpop.f32.mrf.mxu0
    %507 = vdwg.mxu0
    %508 = vmatpush.bf16.msra.mxu0 0
    %509 = vmatpush.bf16.msra.mxu0 0
    %510 = vmatpush.bf16.msra.mxu0 0
    %511 = vmatpush.bf16.msra.mxu0 0
    %512 = vmatpush.bf16.msra.mxu0 0
    %513 = vmatpush.bf16.msra.mxu0 0
    %514 = vmatpush.bf16.msra.mxu0 %v456
    %515 = vmatpush.bf16.msra.mxu0 %v452
    %516 = vmatmul.bf16.gmra.mxu0 %v467
    %v517 = vpop.f32.mrf.mxu0
    %v518 = vadd.f32 %v420, %v517
    %v519 = vpop.f32.mrf.mxu0
    %520 = vdwg.mxu0
    %v521 = vmax.f32 %v479, 0.0
    %v522 = vmax.f32 %v492, 0.0
    %v523 = vmax.f32 %v505, 0.0
    %v524 = vmax.f32 %v518, 0.0
    %v525 = vpack.c.bf16 %v521, %v521
    %v526 = vpack.c.bf16 %v522, %v522
    %v527 = vpack.c.bf16 %v523, %v523
    %v528 = vpack.c.bf16 %v524, %v524
    %v529 = vld [vmem:[#allocation13] sm:$0xff]
    %v530 = vld [vmem:[#allocation13 + $0x8] sm:$0xff]
    %v531 = vld [vmem:[#allocation13 + $0x10] sm:$0xff]
    %v532 = vld [vmem:[#allocation13 + $0x18] sm:$0xff]
    %v533 = vld [vmem:[#allocation13 + $0x20] sm:$0xff]
    %v534 = vld [vmem:[#allocation13 + $0x28] sm:$0xff]
    %v535 = vld [vmem:[#allocation13 + $0x30] sm:$0xff]
    %v536 = vld [vmem:[#allocation13 + $0x38] sm:$0xff]
    %v537 = vld [vmem:[#allocation13 + $0x40] sm:$0xff]
    %v538 = vld [vmem:[#allocation13 + $0x48] sm:$0xff]
    %v539 = vld [vmem:[#allocation13 + $0x50] sm:$0xff]
    %v540 = vld [vmem:[#allocation13 + $0x58] sm:$0xff]
    %v541 = vld [vmem:[#allocation13 + $0x60] sm:$0xff]
    %v542 = vld [vmem:[#allocation13 + $0x68] sm:$0xff]
    %v543 = vld [vmem:[#allocation13 + $0x70] sm:$0xff]
    %v544 = vld [vmem:[#allocation13 + $0x78] sm:$0xff]
    %v545 = vld [vmem:[#allocation13 + $0x80] sm:$0xff]
    %v546 = vld [vmem:[#allocation13 + $0x88] sm:$0xff]
    %v547 = vld [vmem:[#allocation13 + $0x90] sm:$0xff]
    %v548 = vld [vmem:[#allocation13 + $0x98] sm:$0xff]
    %v549 = vld [vmem:[#allocation13 + $0xa0] sm:$0xff]
    %v550 = vld [vmem:[#allocation13 + $0xa8] sm:$0xff]
    %v551 = vld [vmem:[#allocation13 + $0xb0] sm:$0xff]
    %v552 = vld [vmem:[#allocation13 + $0xb8] sm:$0xff]
    %v553 = vld [vmem:[#allocation13 + $0xc0] sm:$0xff]
    %v554 = vld [vmem:[#allocation13 + $0xc8] sm:$0xff]
    %v555 = vld [vmem:[#allocation13 + $0xd0] sm:$0xff]
    %v556 = vld [vmem:[#allocation13 + $0xd8] sm:$0xff]
    %v557 = vld [vmem:[#allocation13 + $0xe0] sm:$0xff]
    %v558 = vld [vmem:[#allocation13 + $0xe8] sm:$0xff]
    %v559 = vld [vmem:[#allocation13 + $0xf0] sm:$0xff]
    %v560 = vld [vmem:[#allocation13 + $0xf8] sm:$0xff]
    %v561 = vld [vmem:[#allocation13 + $0x100] sm:$0xff]
    %v562 = vld [vmem:[#allocation13 + $0x108] sm:$0xff]
    %v563 = vld [vmem:[#allocation13 + $0x110] sm:$0xff]
    %v564 = vld [vmem:[#allocation13 + $0x118] sm:$0xff]
    %v565 = vld [vmem:[#allocation13 + $0x120] sm:$0xff]
    %v566 = vld [vmem:[#allocation13 + $0x128] sm:$0xff]
    %v567 = vld [vmem:[#allocation13 + $0x130] sm:$0xff]
    %v568 = vld [vmem:[#allocation13 + $0x138] sm:$0xff]
    %v569 = vld [vmem:[#allocation13 + $0x140] sm:$0xff]
    %v570 = vld [vmem:[#allocation13 + $0x148] sm:$0xff]
    %v571 = vld [vmem:[#allocation13 + $0x150] sm:$0xff]
    %v572 = vld [vmem:[#allocation13 + $0x158] sm:$0xff]
    %v573 = vld [vmem:[#allocation13 + $0x160] sm:$0xff]
    %v574 = vld [vmem:[#allocation13 + $0x168] sm:$0xff]
    %v575 = vld [vmem:[#allocation13 + $0x170] sm:$0xff]
    %v576 = vld [vmem:[#allocation13 + $0x178] sm:$0xff]
    %v577 = vld [vmem:[#allocation13 + $0x180] sm:$0xff]
    %v578 = vld [vmem:[#allocation13 + $0x188] sm:$0xff]
    %v579 = vld [vmem:[#allocation13 + $0x190] sm:$0xff]
    %v580 = vld [vmem:[#allocation13 + $0x198] sm:$0xff]
    %v581 = vld [vmem:[#allocation13 + $0x1a0] sm:$0xff]
    %v582 = vld [vmem:[#allocation13 + $0x1a8] sm:$0xff]
    %v583 = vld [vmem:[#allocation13 + $0x1b0] sm:$0xff]
    %v584 = vld [vmem:[#allocation13 + $0x1b8] sm:$0xff]
    %v585 = vld [vmem:[#allocation13 + $0x1c0] sm:$0xff]
    %v586 = vld [vmem:[#allocation13 + $0x1c8] sm:$0xff]
    %v587 = vld [vmem:[#allocation13 + $0x1d0] sm:$0xff]
    %v588 = vld [vmem:[#allocation13 + $0x1d8] sm:$0xff]
    %v589 = vld [vmem:[#allocation13 + $0x1e0] sm:$0xff]
    %v590 = vld [vmem:[#allocation13 + $0x1e8] sm:$0xff]
    %v591 = vld [vmem:[#allocation13 + $0x1f0] sm:$0xff]
    %v592 = vld [vmem:[#allocation13 + $0x1f8] sm:$0xff]
    %v593 = vld [vmem:[#allocation15] sm:$0x3]
    %v595 = vperm.slane %v593, 0
    %v596 = vperm.slane %v593, 1
    %v663 = vunpack.c.l.b16 %v529
    %v664 = vunpack.c.h.b16 %v529
    %v665 = vunpack.c.l.b16 %v530
    %v666 = vunpack.c.h.b16 %v530
    %v667 = vunpack.c.l.b16 %v531
    %v668 = vunpack.c.h.b16 %v531
    %v669 = vunpack.c.l.b16 %v532
    %v670 = vunpack.c.h.b16 %v532
    %v671 = vunpack.c.l.b16 %v533
    %v672 = vunpack.c.h.b16 %v533
    %v673 = vunpack.c.l.b16 %v534
    %v674 = vunpack.c.h.b16 %v534
    %v675 = vunpack.c.l.b16 %v535
    %v676 = vunpack.c.h.b16 %v535
    %v677 = vunpack.c.l.b16 %v536
    %v678 = vunpack.c.h.b16 %v536
    %v679 = vunpack.c.l.b16 %v537
    %v680 = vunpack.c.h.b16 %v537
    %v681 = vunpack.c.l.b16 %v538
    %v682 = vunpack.c.h.b16 %v538
    %v683 = vunpack.c.l.b16 %v539
    %v684 = vunpack.c.h.b16 %v539
    %v685 = vunpack.c.l.b16 %v540
    %v686 = vunpack.c.h.b16 %v540
    %v687 = vunpack.c.l.b16 %v541
    %v688 = vunpack.c.h.b16 %v541
    %v689 = vunpack.c.l.b16 %v542
    %v690 = vunpack.c.h.b16 %v542
    %v691 = vunpack.c.l.b16 %v543
    %v692 = vunpack.c.h.b16 %v543
    %v693 = vunpack.c.l.b16 %v544
    %v694 = vunpack.c.h.b16 %v544
    %v695 = vunpack.c.l.b16 %v545
    %v696 = vunpack.c.h.b16 %v545
    %v697 = vunpack.c.l.b16 %v546
    %v698 = vunpack.c.h.b16 %v546
    %v699 = vunpack.c.l.b16 %v547
    %v700 = vunpack.c.h.b16 %v547
    %v701 = vunpack.c.l.b16 %v548
    %v702 = vunpack.c.h.b16 %v548
    %v703 = vunpack.c.l.b16 %v549
    %v704 = vunpack.c.h.b16 %v549
    %v705 = vunpack.c.l.b16 %v550
    %v706 = vunpack.c.h.b16 %v550
    %v707 = vunpack.c.l.b16 %v551
    %v708 = vunpack.c.h.b16 %v551
    %v709 = vunpack.c.l.b16 %v552
    %v710 = vunpack.c.h.b16 %v552
    %v711 = vunpack.c.l.b16 %v553
    %v712 = vunpack.c.h.b16 %v553
    %v713 = vunpack.c.l.b16 %v554
    %v714 = vunpack.c.h.b16 %v554
    %v715 = vunpack.c.l.b16 %v555
    %v716 = vunpack.c.h.b16 %v555
    %v717 = vunpack.c.l.b16 %v556
    %v718 = vunpack.c.h.b16 %v556
    %v719 = vunpack.c.l.b16 %v557
    %v720 = vunpack.c.h.b16 %v557
    %v721 = vunpack.c.l.b16 %v558
    %v722 = vunpack.c.h.b16 %v558
    %v723 = vunpack.c.l.b16 %v559
    %v724 = vunpack.c.h.b16 %v559
    %v725 = vunpack.c.l.b16 %v560
    %v726 = vunpack.c.h.b16 %v560
    %v727 = vunpack.c.l.b16 %v561
    %v728 = vunpack.c.h.b16 %v561
    %v729 = vunpack.c.l.b16 %v562
    %v730 = vunpack.c.h.b16 %v562
    %v731 = vunpack.c.l.b16 %v563
    %v732 = vunpack.c.h.b16 %v563
    %v733 = vunpack.c.l.b16 %v564
    %v734 = vunpack.c.h.b16 %v564
    %v735 = vunpack.c.l.b16 %v565
    %v736 = vunpack.c.h.b16 %v565
    %v737 = vunpack.c.l.b16 %v566
    %v738 = vunpack.c.h.b16 %v566
    %v739 = vunpack.c.l.b16 %v567
    %v740 = vunpack.c.h.b16 %v567
    %v741 = vunpack.c.l.b16 %v568
    %v742 = vunpack.c.h.b16 %v568
    %v743 = vunpack.c.l.b16 %v569
    %v744 = vunpack.c.h.b16 %v569
    %v745 = vunpack.c.l.b16 %v570
    %v746 = vunpack.c.h.b16 %v570
    %v747 = vunpack.c.l.b16 %v571
    %v748 = vunpack.c.h.b16 %v571
    %v749 = vunpack.c.l.b16 %v572
    %v750 = vunpack.c.h.b16 %v572
    %v751 = vunpack.c.l.b16 %v573
    %v752 = vunpack.c.h.b16 %v573
    %v753 = vunpack.c.l.b16 %v574
    %v754 = vunpack.c.h.b16 %v574
    %v755 = vunpack.c.l.b16 %v575
    %v756 = vunpack.c.h.b16 %v575
    %v757 = vunpack.c.l.b16 %v576
    %v758 = vunpack.c.h.b16 %v576
    %v759 = vunpack.c.l.b16 %v577
    %v760 = vunpack.c.h.b16 %v577
    %v761 = vunpack.c.l.b16 %v578
    %v762 = vunpack.c.h.b16 %v578
    %v763 = vunpack.c.l.b16 %v579
    %v764 = vunpack.c.h.b16 %v579
    %v765 = vunpack.c.l.b16 %v580
    %v766 = vunpack.c.h.b16 %v580
    %v767 = vunpack.c.l.b16 %v581
    %v768 = vunpack.c.h.b16 %v581
    %v769 = vunpack.c.l.b16 %v582
    %v770 = vunpack.c.h.b16 %v582
    %v771 = vunpack.c.l.b16 %v583
    %v772 = vunpack.c.h.b16 %v583
    %v773 = vunpack.c.l.b16 %v584
    %v774 = vunpack.c.h.b16 %v584
    %v775 = vunpack.c.l.b16 %v585
    %v776 = vunpack.c.h.b16 %v585
    %v777 = vunpack.c.l.b16 %v586
    %v778 = vunpack.c.h.b16 %v586
    %v779 = vunpack.c.l.b16 %v587
    %v780 = vunpack.c.h.b16 %v587
    %v781 = vunpack.c.l.b16 %v588
    %v782 = vunpack.c.h.b16 %v588
    %v783 = vunpack.c.l.b16 %v589
    %v784 = vunpack.c.h.b16 %v589
    %v785 = vunpack.c.l.b16 %v590
    %v786 = vunpack.c.h.b16 %v590
    %v787 = vunpack.c.l.b16 %v591
    %v788 = vunpack.c.h.b16 %v591
    %v789 = vunpack.c.l.b16 %v592
    %v790 = vunpack.c.h.b16 %v592
    %v791 = vpack.c.b16 %v665, %v663
    %v792 = vpack.c.b16 %v666, %v664
    %v793 = vpack.c.b16 %v669, %v667
    %v794 = vpack.c.b16 %v670, %v668
    %v795 = vpack.c.b16 %v673, %v671
    %v796 = vpack.c.b16 %v674, %v672
    %v797 = vpack.c.b16 %v677, %v675
    %v798 = vpack.c.b16 %v678, %v676
    %v799 = vpack.c.b16 %v681, %v679
    %v800 = vpack.c.b16 %v682, %v680
    %v801 = vpack.c.b16 %v685, %v683
    %v802 = vpack.c.b16 %v686, %v684
    %v803 = vpack.c.b16 %v689, %v687
    %v804 = vpack.c.b16 %v690, %v688
    %v805 = vpack.c.b16 %v693, %v691
    %v806 = vpack.c.b16 %v694, %v692
    %v807 = vpack.c.b16 %v697, %v695
    %v808 = vpack.c.b16 %v698, %v696
    %v809 = vpack.c.b16 %v701, %v699
    %v810 = vpack.c.b16 %v702, %v700
    %v811 = vpack.c.b16 %v705, %v703
    %v812 = vpack.c.b16 %v706, %v704
    %v813 = vpack.c.b16 %v709, %v707
    %v814 = vpack.c.b16 %v710, %v708
    %v815 = vpack.c.b16 %v713, %v711
    %v816 = vpack.c.b16 %v714, %v712
    %v817 = vpack.c.b16 %v717, %v715
    %v818 = vpack.c.b16 %v718, %v716
    %v819 = vpack.c.b16 %v721, %v719
    %v820 = vpack.c.b16 %v722, %v720
    %v821 = vpack.c.b16 %v725, %v723
    %v822 = vpack.c.b16 %v726, %v724
    %v823 = vpack.c.b16 %v729, %v727
    %v824 = vpack.c.b16 %v730, %v728
    %v825 = vpack.c.b16 %v733, %v731
    %v826 = vpack.c.b16 %v734, %v732
    %v827 = vpack.c.b16 %v737, %v735
    %v828 = vpack.c.b16 %v738, %v736
    %v829 = vpack.c.b16 %v741, %v739
    %v830 = vpack.c.b16 %v742, %v740
    %v831 = vpack.c.b16 %v745, %v743
    %v832 = vpack.c.b16 %v746, %v744
    %v833 = vpack.c.b16 %v749, %v747
    %v834 = vpack.c.b16 %v750, %v748
    %v835 = vpack.c.b16 %v753, %v751
    %v836 = vpack.c.b16 %v754, %v752
    %v837 = vpack.c.b16 %v757, %v755
    %v838 = vpack.c.b16 %v758, %v756
    %v839 = vpack.c.b16 %v761, %v759
    %v840 = vpack.c.b16 %v762, %v760
    %v841 = vpack.c.b16 %v765, %v763
    %v842 = vpack.c.b16 %v766, %v764
    %v843 = vpack.c.b16 %v769, %v767
    %v844 = vpack.c.b16 %v770, %v768
    %v845 = vpack.c.b16 %v773, %v771
    %v846 = vpack.c.b16 %v774, %v772
    %v847 = vpack.c.b16 %v777, %v775
    %v848 = vpack.c.b16 %v778, %v776
    %v849 = vpack.c.b16 %v781, %v779
    %v850 = vpack.c.b16 %v782, %v780
    %v851 = vpack.c.b16 %v785, %v783
    %v852 = vpack.c.b16 %v786, %v784
    %v853 = vpack.c.b16 %v789, %v787
    %v854 = vpack.c.b16 %v790, %v788
    %919 = vmatpush.bf16.msra.mxu0 %v805
    %920 = vmatpush.bf16.msra.mxu0 %v803
    %921 = vmatpush.bf16.msra.mxu0 %v801
    %922 = vmatpush.bf16.msra.mxu0 %v799
    %923 = vmatpush.bf16.msra.mxu0 %v797
    %924 = vmatpush.bf16.msra.mxu0 %v795
    %925 = vmatpush.bf16.msra.mxu0 %v793
    %926 = vmatpush.bf16.msra.mxu0 %v791
    %927 = vmatmul.bf16.gmra.mxu0 %v525
    %v928 = vpop.f32.mrf.mxu0
    %v929 = vadd.f32 %v595, %v928
    %v930 = vpop.f32.mrf.mxu0
    %931 = vdwg.mxu0
    %932 = vmatpush.bf16.msra.mxu0 %v821
    %933 = vmatpush.bf16.msra.mxu0 %v819
    %934 = vmatpush.bf16.msra.mxu0 %v817
    %935 = vmatpush.bf16.msra.mxu0 %v815
    %936 = vmatpush.bf16.msra.mxu0 %v813
    %937 = vmatpush.bf16.msra.mxu0 %v811
    %938 = vmatpush.bf16.msra.mxu0 %v809
    %939 = vmatpush.bf16.msra.mxu0 %v807
    %940 = vmatmul.bf16.gmra.mxu0 %v526
    %v941 = vpop.f32.mrf.mxu0
    %v942 = vadd.f32 %v929, %v941
    %v943 = vpop.f32.mrf.mxu0
    %944 = vdwg.mxu0
    %945 = vmatpush.bf16.msra.mxu0 %v837
    %946 = vmatpush.bf16.msra.mxu0 %v835
    %947 = vmatpush.bf16.msra.mxu0 %v833
    %948 = vmatpush.bf16.msra.mxu0 %v831
    %949 = vmatpush.bf16.msra.mxu0 %v829
    %950 = vmatpush.bf16.msra.mxu0 %v827
    %951 = vmatpush.bf16.msra.mxu0 %v825
    %952 = vmatpush.bf16.msra.mxu0 %v823
    %953 = vmatmul.bf16.gmra.mxu0 %v527
    %v954 = vpop.f32.mrf.mxu0
    %v955 = vadd.f32 %v942, %v954
    %v956 = vpop.f32.mrf.mxu0
    %957 = vdwg.mxu0
    %958 = vmatpush.bf16.msra.mxu0 %v853
    %959 = vmatpush.bf16.msra.mxu0 %v851
    %960 = vmatpush.bf16.msra.mxu0 %v849
    %961 = vmatpush.bf16.msra.mxu0 %v847
    %962 = vmatpush.bf16.msra.mxu0 %v845
    %963 = vmatpush.bf16.msra.mxu0 %v843
    %964 = vmatpush.bf16.msra.mxu0 %v841
    %965 = vmatpush.bf16.msra.mxu0 %v839
    %966 = vmatmul.bf16.gmra.mxu0 %v528
    %v967 = vpop.f32.mrf.mxu0
    %v968 = vadd.f32 %v955, %v967
    %v969 = vpop.f32.mrf.mxu0
    %970 = vdwg.mxu0
    %971 = vmatpush.bf16.msra.mxu0 %v806
    %972 = vmatpush.bf16.msra.mxu0 %v804
    %973 = vmatpush.bf16.msra.mxu0 %v802
    %974 = vmatpush.bf16.msra.mxu0 %v800
    %975 = vmatpush.bf16.msra.mxu0 %v798
    %976 = vmatpush.bf16.msra.mxu0 %v796
    %977 = vmatpush.bf16.msra.mxu0 %v794
    %978 = vmatpush.bf16.msra.mxu0 %v792
    %979 = vmatmul.bf16.gmra.mxu0 %v525
    %v980 = vpop.f32.mrf.mxu0
    %v981 = vadd.f32 %v596, %v980
    %v982 = vpop.f32.mrf.mxu0
    %983 = vdwg.mxu0
    %984 = vmatpush.bf16.msra.mxu0 %v822
    %985 = vmatpush.bf16.msra.mxu0 %v820
    %986 = vmatpush.bf16.msra.mxu0 %v818
    %987 = vmatpush.bf16.msra.mxu0 %v816
    %988 = vmatpush.bf16.msra.mxu0 %v814
    %989 = vmatpush.bf16.msra.mxu0 %v812
    %990 = vmatpush.bf16.msra.mxu0 %v810
    %991 = vmatpush.bf16.msra.mxu0 %v808
    %992 = vmatmul.bf16.gmra.mxu0 %v526
    %v993 = vpop.f32.mrf.mxu0
    %v994 = vadd.f32 %v981, %v993
    %v995 = vpop.f32.mrf.mxu0
    %996 = vdwg.mxu0
    %997 = vmatpush.bf16.msra.mxu0 %v838
    %998 = vmatpush.bf16.msra.mxu0 %v836
    %999 = vmatpush.bf16.msra.mxu0 %v834
    %1000 = vmatpush.bf16.msra.mxu0 %v832
    %1001 = vmatpush.bf16.msra.mxu0 %v830
    %1002 = vmatpush.bf16.msra.mxu0 %v828
    %1003 = vmatpush.bf16.msra.mxu0 %v826
    %1004 = vmatpush.bf16.msra.mxu0 %v824
    %1005 = vmatmul.bf16.gmra.mxu0 %v527
    %v1006 = vpop.f32.mrf.mxu0
    %v1007 = vadd.f32 %v994, %v1006
    %v1008 = vpop.f32.mrf.mxu0
    %1009 = vdwg.mxu0
    %1010 = vmatpush.bf16.msra.mxu0 %v854
    %1011 = vmatpush.bf16.msra.mxu0 %v852
    %1012 = vmatpush.bf16.msra.mxu0 %v850
    %1013 = vmatpush.bf16.msra.mxu0 %v848
    %1014 = vmatpush.bf16.msra.mxu0 %v846
    %1015 = vmatpush.bf16.msra.mxu0 %v844
    %1016 = vmatpush.bf16.msra.mxu0 %v842
    %1017 = vmatpush.bf16.msra.mxu0 %v840
    %1018 = vmatmul.bf16.gmra.mxu0 %v528
    %v1019 = vpop.f32.mrf.mxu0
    %v1020 = vadd.f32 %v1007, %v1019
    %v1021 = vpop.f32.mrf.mxu0
    %1022 = vdwg.mxu0
    %v1023 = vmax.f32 %v968, 0.0
    %v1024 = vmax.f32 %v1020, 0.0
    %v1025 = vld [vmem:[#allocation16] sm:$0x3]
    %v1026 = vld [vmem:[#allocation18] sm:$0x3]
    %v1027 = vadd.f32 %v1023, %v1024
    %1028 = vadd.xlane.f32.xlu0 %v1027
    %v1029 = vpop.xlane.xlu0 %1028
    %v1030 = vrcp.pop 256.0
    %v1031 = vmul.f32 256.0, %v1030
    %v1032 = vsub.f32 1.0, %v1031
    %v1033 = vmul.f32 %v1030, %v1032
    %v1034 = vadd.f32 %v1030, %v1033
    %vm1035 = vweird.f32 %v1030
    %v1036 = vsel %vm1035, %v1030, %v1034
    %v1037 = vmul.f32 %v1029, %v1036
    %v1038 = vsub.f32 %v1023, %v1037
    %v1039 = vsub.f32 %v1024, %v1037
    %v1040 = vmul.f32 %v1038, %v1038
    %v1041 = vmul.f32 %v1039, %v1039
    %v1042 = vadd.f32 %v1040, %v1041
    %1043 = vadd.xlane.f32.xlu0 %v1042
    %v1044 = vpop.xlane.xlu0 %1043
    %v1045 = vmul.f32 %v1044, %v1036
    %v1046 = vadd.f32 %v1045, 1e-05
    %v1047 = vrsqrt.pop %v1046
    %v1048 = vmul.f32 %v1047, %v1046
    %v1049 = vmul.f32 %v1048, %v1047
    %v1050 = vmul.f32 0.5, %v1049
    %v1051 = vsub.f32 1.5, %v1050
    %v1052 = vmul.f32 %v1047, %v1051
    %vm1053 = vweird.f32 %v1046
    %vm1054 = vweird.f32 %v1047
    %vm1055 = vmor %vm1053, %vm1054
    %v1056 = vsel %vm1055, %v1047, %v1052
    %v1057 = vmul.f32 %v1038, %v1056
    %v1058 = vmul.f32 %v1039, %v1056
    %v1060 = vperm.slane %v1025, 0
    %v1061 = vperm.slane %v1025, 1
    %v1064 = vmul.f32 %v1057, %v1060
    %v1065 = vmul.f32 %v1058, %v1061
    %v1067 = vperm.slane %v1026, 0
    %v1068 = vperm.slane %v1026, 1
    %v1071 = vadd.f32 %v1064, %v1067
    %v1072 = vadd.f32 %v1065, %v1068
    %v1073 = vld [vmem:[%s5] sm:$0xff]
    %v1074 = vpack.c.bf16 %v1073, %v1073
    %v1075 = vld [vmem:[#allocation19] sm:$0xf]
    %v1076 = vld [vmem:[#allocation19 + $0x4] sm:$0xf]
    %v1077 = vld [vmem:[#allocation21] sm:$0x1]
    %v1079 = vperm.slane %v1077, 0
    %v1083 = vunpack.c.l.b16 %v1075
    %v1084 = vunpack.c.l.b16 %v1076
    %v1085 = vpack.c.b16 %v1084, %v1083
    %vm1087 = vcmask 130048
    %v1089 = vsel %vm1087, %v1074, 0
    %1091 = vmatpush.bf16.msra.mxu0 0
    %1092 = vmatpush.bf16.msra.mxu0 0
    %1093 = vmatpush.bf16.msra.mxu0 0
    %1094 = vmatpush.bf16.msra.mxu0 0
    %1095 = vmatpush.bf16.msra.mxu0 0
    %1096 = vmatpush.bf16.msra.mxu0 0
    %1097 = vmatpush.bf16.msra.mxu0 0
    %1098 = vmatpush.bf16.msra.mxu0 %v1085
    %1099 = vmatmul.bf16.gmra.mxu0 %v1089
    %v1100 = vpop.f32.mrf.mxu0
    %v1101 = vadd.f32 %v1079, %v1100
    %v1102 = vpop.f32.mrf.mxu0
    %1103 = vdwg.mxu0
    %v1104 = vmax.f32 %v1101, 0.0
    %v1105 = vpack.c.bf16 %v1104, %v1104
    %v1106 = vld [vmem:[#allocation22] sm:$0xf]
    %v1107 = vld [vmem:[#allocation22 + $0x4] sm:$0xf]
    %v1108 = vld [vmem:[#allocation22 + $0x8] sm:$0xf]
    %v1109 = vld [vmem:[#allocation22 + $0xc] sm:$0xf]
    %v1110 = vld [vmem:[#allocation22 + $0x10] sm:$0xf]
    %v1111 = vld [vmem:[#allocation22 + $0x14] sm:$0xf]
    %v1112 = vld [vmem:[#allocation22 + $0x18] sm:$0xf]
    %v1113 = vld [vmem:[#allocation22 + $0x1c] sm:$0xf]
    %v1114 = vld [vmem:[#allocation22 + $0x20] sm:$0xf]
    %v1115 = vld [vmem:[#allocation22 + $0x24] sm:$0xf]
    %v1116 = vld [vmem:[#allocation22 + $0x28] sm:$0xf]
    %v1117 = vld [vmem:[#allocation22 + $0x2c] sm:$0xf]
    %v1118 = vld [vmem:[#allocation22 + $0x30] sm:$0xf]
    %v1119 = vld [vmem:[#allocation22 + $0x34] sm:$0xf]
    %v1120 = vld [vmem:[#allocation22 + $0x38] sm:$0xf]
    %v1121 = vld [vmem:[#allocation22 + $0x3c] sm:$0xf]
    %v1122 = vld [vmem:[#allocation24] sm:$0x1]
    %v1124 = vperm.slane %v1122, 0
    %v1142 = vunpack.c.l.b16 %v1106
    %v1143 = vunpack.c.l.b16 %v1107
    %v1144 = vunpack.c.l.b16 %v1108
    %v1145 = vunpack.c.l.b16 %v1109
    %v1146 = vunpack.c.l.b16 %v1110
    %v1147 = vunpack.c.l.b16 %v1111
    %v1148 = vunpack.c.l.b16 %v1112
    %v1149 = vunpack.c.l.b16 %v1113
    %v1150 = vunpack.c.l.b16 %v1114
    %v1151 = vunpack.c.l.b16 %v1115
    %v1152 = vunpack.c.l.b16 %v1116
    %v1153 = vunpack.c.l.b16 %v1117
    %v1154 = vunpack.c.l.b16 %v1118
    %v1155 = vunpack.c.l.b16 %v1119
    %v1156 = vunpack.c.l.b16 %v1120
    %v1157 = vunpack.c.l.b16 %v1121
    %v1158 = vpack.c.b16 %v1143, %v1142
    %v1159 = vpack.c.b16 %v1145, %v1144
    %v1160 = vpack.c.b16 %v1147, %v1146
    %v1161 = vpack.c.b16 %v1149, %v1148
    %v1162 = vpack.c.b16 %v1151, %v1150
    %v1163 = vpack.c.b16 %v1153, %v1152
    %v1164 = vpack.c.b16 %v1155, %v1154
    %v1165 = vpack.c.b16 %v1157, %v1156
    %1174 = vmatpush.bf16.msra.mxu0 %v1165
    %1175 = vmatpush.bf16.msra.mxu0 %v1164
    %1176 = vmatpush.bf16.msra.mxu0 %v1163
    %1177 = vmatpush.bf16.msra.mxu0 %v1162
    %1178 = vmatpush.bf16.msra.mxu0 %v1161
    %1179 = vmatpush.bf16.msra.mxu0 %v1160
    %1180 = vmatpush.bf16.msra.mxu0 %v1159
    %1181 = vmatpush.bf16.msra.mxu0 %v1158
    %1182 = vmatmul.bf16.gmra.mxu0 %v1105
    %v1183 = vpop.f32.mrf.mxu0
    %v1184 = vadd.f32 %v1124, %v1183
    %v1185 = vpop.f32.mrf.mxu0
    %1186 = vdwg.mxu0
    %v1187 = vmax.f32 %v1184, 0.0
    %v1188 = vld [vmem:[#allocation25] sm:$0x1]
    %v1189 = vld [vmem:[#allocation27] sm:$0x1]
    %1190 = vadd.xlane.f32.xlu0 %v1187
    %v1191 = vpop.xlane.xlu0 %1190
    %v1192 = vrcp.pop 128.0
    %v1193 = vmul.f32 128.0, %v1192
    %v1194 = vsub.f32 1.0, %v1193
    %v1195 = vmul.f32 %v1192, %v1194
    %v1196 = vadd.f32 %v1192, %v1195
    %vm1197 = vweird.f32 %v1192
    %v1198 = vsel %vm1197, %v1192, %v1196
    %v1199 = vmul.f32 %v1191, %v1198
    %v1200 = vsub.f32 %v1187, %v1199
    %v1201 = vmul.f32 %v1200, %v1200
    %1202 = vadd.xlane.f32.xlu0 %v1201
    %v1203 = vpop.xlane.xlu0 %1202
    %v1204 = vmul.f32 %v1203, %v1198
    %v1205 = vadd.f32 %v1204, 1e-05
    %v1206 = vrsqrt.pop %v1205
    %v1207 = vmul.f32 %v1206, %v1205
    %v1208 = vmul.f32 %v1207, %v1206
    %v1209 = vmul.f32 0.5, %v1208
    %v1210 = vsub.f32 1.5, %v1209
    %v1211 = vmul.f32 %v1206, %v1210
    %vm1212 = vweird.f32 %v1205
    %vm1213 = vweird.f32 %v1206
    %vm1214 = vmor %vm1212, %vm1213
    %v1215 = vsel %vm1214, %v1206, %v1211
    %v1216 = vmul.f32 %v1200, %v1215
    %v1218 = vperm.slane %v1188, 0
    %v1220 = vmul.f32 %v1216, %v1218
    %v1222 = vperm.slane %v1189, 0
    %v1224 = vadd.f32 %v1220, %v1222
    %v1225 = vld [vmem:[%s1] sm:$0xf]
    %v1226 = vld [vmem:[%s1 + $0x4] sm:$0xf]
    %v1227 = vld [vmem:[%s1 + $0x8] sm:$0xf]
    %v1228 = vld [vmem:[%s1 + $0xc] sm:$0xf]
    %v1229 = vld [vmem:[%s1 + $0x10] sm:$0xf]
    %v1230 = vld [vmem:[%s1 + $0x14] sm:$0xf]
    %v1231 = vld [vmem:[%s1 + $0x18] sm:$0xf]
    %v1232 = vld [vmem:[%s1 + $0x1c] sm:$0xf]
    %v1233 = vld [vmem:[%s31] sm:$0xff]
    %v1234 = vld [vmem:[%s31 + $0x8] sm:$0xff]
    %v1235 = vld [vmem:[%s31 + $0x10] sm:$0xff]
    %v1236 = vld [vmem:[%s31 + $0x18] sm:$0xff]
    %v1245 = vunpack.c.l.b16 %v1225
    %v1246 = vunpack.c.l.b16 %v1226
    %v1247 = vunpack.c.l.b16 %v1227
    %v1248 = vunpack.c.l.b16 %v1228
    %v1249 = vunpack.c.l.b16 %v1229
    %v1250 = vunpack.c.l.b16 %v1230
    %v1251 = vunpack.c.l.b16 %v1231
    %v1252 = vunpack.c.l.b16 %v1232
    %v1253 = vpack.c.b16 %v1246, %v1245
    %v1254 = vpack.c.b16 %v1248, %v1247
    %v1255 = vpack.c.b16 %v1250, %v1249
    %v1256 = vpack.c.b16 %v1252, %v1251
    %v1261 = vunpack.c.l.b16 %v1233
    %v1262 = vunpack.c.h.b16 %v1233
    %v1263 = vunpack.c.l.b16 %v1234
    %v1264 = vunpack.c.h.b16 %v1234
    %v1265 = vunpack.c.l.b16 %v1235
    %v1266 = vunpack.c.h.b16 %v1235
    %v1267 = vunpack.c.l.b16 %v1236
    %v1268 = vunpack.c.h.b16 %v1236
    %v1269 = vpack.c.b16 %v1265, %v1261
    %v1270 = vpack.c.b16 %v1266, %v1262
    %v1271 = vpack.c.b16 %v1267, %v1263
    %v1272 = vpack.c.b16 %v1268, %v1264
    %v1278 = vsel %vm1087, %v1253, 0
    %v1281 = vsel %vm1087, %v1254, 0
    %v1284 = vsel %vm1087, %v1255, 0
    %v1287 = vsel %vm1087, %v1256, 0
    %1289 = vmatpush.bf16.msra.mxu0 0
    %1290 = vmatpush.bf16.msra.mxu0 0
    %1291 = vmatpush.bf16.msra.mxu0 0
    %1292 = vmatpush.bf16.msra.mxu0 0
    %1293 = vmatpush.bf16.msra.mxu0 0
    %1294 = vmatpush.bf16.msra.mxu0 0
    %1295 = vmatpush.bf16.msra.mxu0 0
    %1296 = vmatpush.bf16.msra.mxu0 %v1269
    %1297 = vmatmul.bf16.gmra.mxu0 %v1278
    %v1298 = vpop.f32.mrf.mxu0
    %v1299 = vadd.f32 0.0, %v1298
    %v1300 = vpop.f32.mrf.mxu0
    %v1301 = vadd.f32 0.0, %v1300
    %1302 = vmatmul.bf16.gmra.mxu0 %v1281
    %v1303 = vpop.f32.mrf.mxu0
    %v1304 = vadd.f32 0.0, %v1303
    %v1305 = vpop.f32.mrf.mxu0
    %v1306 = vadd.f32 0.0, %v1305
    %1307 = vmatmul.bf16.gmra.mxu0 %v1284
    %v1308 = vpop.f32.mrf.mxu0
    %v1309 = vadd.f32 0.0, %v1308
    %v1310 = vpop.f32.mrf.mxu0
    %v1311 = vadd.f32 0.0, %v1310
    %1312 = vmatmul.bf16.gmra.mxu0 %v1287
    %v1313 = vpop.f32.mrf.mxu0
    %v1314 = vadd.f32 0.0, %v1313
    %v1315 = vpop.f32.mrf.mxu0
    %v1316 = vadd.f32 0.0, %v1315
    %1317 = vdwg.mxu0
    %1318 = vmatpush.bf16.msra.mxu0 0
    %1319 = vmatpush.bf16.msra.mxu0 0
    %1320 = vmatpush.bf16.msra.mxu0 0
    %1321 = vmatpush.bf16.msra.mxu0 0
    %1322 = vmatpush.bf16.msra.mxu0 0
    %1323 = vmatpush.bf16.msra.mxu0 0
    %1324 = vmatpush.bf16.msra.mxu0 0
    %1325 = vmatpush.bf16.msra.mxu0 %v1270
    %1326 = vmatmul.bf16.gmra.mxu0 %v1278
    %v1327 = vpop.f32.mrf.mxu0
    %v1328 = vpop.f32.mrf.mxu0
    %v1329 = vadd.f32 0.0, %v1328
    %1330 = vmatmul.bf16.gmra.mxu0 %v1281
    %v1331 = vpop.f32.mrf.mxu0
    %v1332 = vadd.f32 0.0, %v1331
    %v1333 = vpop.f32.mrf.mxu0
    %v1334 = vadd.f32 0.0, %v1333
    %1335 = vmatmul.bf16.gmra.mxu0 %v1284
    %v1336 = vpop.f32.mrf.mxu0
    %v1337 = vadd.f32 0.0, %v1336
    %v1338 = vpop.f32.mrf.mxu0
    %v1339 = vadd.f32 0.0, %v1338
    %1340 = vmatmul.bf16.gmra.mxu0 %v1287
    %v1341 = vpop.f32.mrf.mxu0
    %v1342 = vadd.f32 0.0, %v1341
    %v1343 = vpop.f32.mrf.mxu0
    %v1344 = vadd.f32 0.0, %v1343
    %1345 = vdwg.mxu0
    %1346 = vmatpush.bf16.msra.mxu0 0
    %1347 = vmatpush.bf16.msra.mxu0 0
    %1348 = vmatpush.bf16.msra.mxu0 0
    %1349 = vmatpush.bf16.msra.mxu0 0
    %1350 = vmatpush.bf16.msra.mxu0 0
    %1351 = vmatpush.bf16.msra.mxu0 0
    %1352 = vmatpush.bf16.msra.mxu0 0
    %1353 = vmatpush.bf16.msra.mxu0 %v1271
    %1354 = vmatmul.bf16.gmra.mxu0 %v1278
    %v1355 = vpop.f32.mrf.mxu0
    %v1356 = vadd.f32 0.0, %v1355
    %v1357 = vpop.f32.mrf.mxu0
    %v1358 = vadd.f32 0.0, %v1357
    %1359 = vmatmul.bf16.gmra.mxu0 %v1281
    %v1360 = vpop.f32.mrf.mxu0
    %v1361 = vadd.f32 0.0, %v1360
    %v1362 = vpop.f32.mrf.mxu0
    %v1363 = vadd.f32 0.0, %v1362
    %1364 = vmatmul.bf16.gmra.mxu0 %v1284
    %v1365 = vpop.f32.mrf.mxu0
    %v1366 = vadd.f32 0.0, %v1365
    %v1367 = vpop.f32.mrf.mxu0
    %v1368 = vadd.f32 0.0, %v1367
    %1369 = vmatmul.bf16.gmra.mxu0 %v1287
    %v1370 = vpop.f32.mrf.mxu0
    %v1371 = vadd.f32 0.0, %v1370
    %v1372 = vpop.f32.mrf.mxu0
    %v1373 = vadd.f32 0.0, %v1372
    %1374 = vdwg.mxu0
    %1375 = vmatpush.bf16.msra.mxu0 0
    %1376 = vmatpush.bf16.msra.mxu0 0
    %1377 = vmatpush.bf16.msra.mxu0 0
    %1378 = vmatpush.bf16.msra.mxu0 0
    %1379 = vmatpush.bf16.msra.mxu0 0
    %1380 = vmatpush.bf16.msra.mxu0 0
    %1381 = vmatpush.bf16.msra.mxu0 0
    %1382 = vmatpush.bf16.msra.mxu0 %v1272
    %1383 = vmatmul.bf16.gmra.mxu0 %v1278
    %v1384 = vpop.f32.mrf.mxu0
    %v1385 = vadd.f32 0.0, %v1384
    %v1386 = vpop.f32.mrf.mxu0
    %v1387 = vadd.f32 0.0, %v1386
    %1388 = vmatmul.bf16.gmra.mxu0 %v1281
    %v1389 = vpop.f32.mrf.mxu0
    %v1390 = vadd.f32 0.0, %v1389
    %v1391 = vpop.f32.mrf.mxu0
    %v1392 = vadd.f32 0.0, %v1391
    %1393 = vmatmul.bf16.gmra.mxu0 %v1284
    %v1394 = vpop.f32.mrf.mxu0
    %v1395 = vadd.f32 0.0, %v1394
    %v1396 = vpop.f32.mrf.mxu0
    %v1397 = vadd.f32 0.0, %v1396
    %1398 = vmatmul.bf16.gmra.mxu0 %v1287
    %v1399 = vpop.f32.mrf.mxu0
    %v1400 = vadd.f32 0.0, %v1399
    %v1401 = vpop.f32.mrf.mxu0
    %v1402 = vadd.f32 0.0, %v1401
    %1403 = vdwg.mxu0
    %v1404 = vld [vmem:[#allocation28] sm:$0xf]
    %v1405 = vld [vmem:[%s35] sm:$0xf]
    %v1407 = vperm.slane %v1404, 0
    %v1408 = vperm.slane %v1404, 1
    %v1409 = vperm.slane %v1404, 2
    %v1410 = vperm.slane %v1404, 3
    %v1415 = vadd.f32 %v1299, %v1407
    %v1416 = vadd.f32 %v1356, %v1409
    %v1417 = vadd.f32 %v1385, %v1410
    %v1418 = vxor.u32 %v1415, 2147483648
    %v1419 = vmul.f32 %v1418, 1.442695
    %v1420 = vpow.pop %v1419
    %v1421 = vadd.f32 %v1420, 1.0
    %v1422 = vrcp.pop %v1421
    %v1423 = vmul.f32 %v1421, %v1422
    %v1424 = vsub.f32 1.0, %v1423
    %v1425 = vmul.f32 %v1422, %v1424
    %v1426 = vadd.f32 %v1422, %v1425
    %vm1427 = vweird.f32 %v1421
    %vm1428 = vweird.f32 %v1422
    %vm1429 = vmor %vm1427, %vm1428
    %v1430 = vsel %vm1429, %v1422, %v1426
    %v1431 = vand.u32 2147483647, %v1421
    %vm1432 = vcmp.eq.f32.partialorder %v1431, 8.507059e+37
    %v1433 = vand.u32 %v1421, 2147483648
    %v1434 = vor.u32 1.1754944e-38, %v1433
    %v1435 = vsel %vm1432, %v1434, %v1430
    %v1436 = vmul.f32 1.0, %v1435
    %v1437 = vtanh.pop %v1416
    %v1438 = vxor.u32 %v1417, 2147483648
    %v1439 = vmul.f32 %v1438, 1.442695
    %v1440 = vpow.pop %v1439
    %v1441 = vadd.f32 %v1440, 1.0
    %v1442 = vrcp.pop %v1441
    %v1443 = vmul.f32 %v1441, %v1442
    %v1444 = vsub.f32 1.0, %v1443
    %v1445 = vmul.f32 %v1442, %v1444
    %v1446 = vadd.f32 %v1442, %v1445
    %vm1447 = vweird.f32 %v1441
    %vm1448 = vweird.f32 %v1442
    %vm1449 = vmor %vm1447, %vm1448
    %v1450 = vsel %vm1449, %v1442, %v1446
    %v1451 = vand.u32 2147483647, %v1441
    %vm1452 = vcmp.eq.f32.partialorder %v1451, 8.507059e+37
    %v1453 = vand.u32 %v1441, 2147483648
    %v1454 = vor.u32 1.1754944e-38, %v1453
    %v1455 = vsel %vm1452, %v1454, %v1450
    %v1456 = vmul.f32 1.0, %v1455
    %v1457 = vmul.f32 %v1436, %v1437
    %v1458 = vtanh.pop %v1457
    %v1459 = vmul.f32 %v1456, %v1458
    %s1460 = smul.u32 4, 16
    %s1461 = smul.u32 %s1460, 4
    %s1462 = sshll.u32 %s1461, 4
    %1463 = dma.done [#allocation9], %s1462
    %v1464 = vld [vmem:[#allocation3] sm:$0xff]
    %v1465 = vld [vmem:[#allocation3 + $0x8] sm:$0xff]
    %v1466 = vld [vmem:[#allocation3 + $0x10] sm:$0xff]
    %v1467 = vld [vmem:[#allocation3 + $0x18] sm:$0xff]
    %v1468 = vld [vmem:[#allocation3 + $0x20] sm:$0xff]
    %v1469 = vld [vmem:[#allocation3 + $0x28] sm:$0xff]
    %v1470 = vld [vmem:[#allocation3 + $0x30] sm:$0xff]
    %v1471 = vld [vmem:[#allocation3 + $0x38] sm:$0xff]
    %v1472 = vld [vmem:[#allocation3 + $0x40] sm:$0xff]
    %v1473 = vld [vmem:[#allocation3 + $0x48] sm:$0xff]
    %v1474 = vld [vmem:[#allocation3 + $0x50] sm:$0xff]
    %v1475 = vld [vmem:[#allocation3 + $0x58] sm:$0xff]
    %v1476 = vld [vmem:[#allocation3 + $0x60] sm:$0xff]
    %v1477 = vld [vmem:[#allocation3 + $0x68] sm:$0xff]
    %v1478 = vld [vmem:[#allocation3 + $0x70] sm:$0xff]
    %v1479 = vld [vmem:[#allocation3 + $0x78] sm:$0xff]
    %v1480 = vld [vmem:[#allocation3 + $0x80] sm:$0xff]
    %v1481 = vld [vmem:[#allocation3 + $0x88] sm:$0xff]
    %v1482 = vld [vmem:[#allocation3 + $0x90] sm:$0xff]
    %v1483 = vld [vmem:[#allocation3 + $0x98] sm:$0xff]
    %v1484 = vld [vmem:[#allocation3 + $0xa0] sm:$0xff]
    %v1485 = vld [vmem:[#allocation3 + $0xa8] sm:$0xff]
    %v1486 = vld [vmem:[#allocation3 + $0xb0] sm:$0xff]
    %v1487 = vld [vmem:[#allocation3 + $0xb8] sm:$0xff]
    %v1488 = vld [vmem:[#allocation3 + $0xc0] sm:$0xff]
    %v1489 = vld [vmem:[#allocation3 + $0xc8] sm:$0xff]
    %v1490 = vld [vmem:[#allocation3 + $0xd0] sm:$0xff]
    %v1491 = vld [vmem:[#allocation3 + $0xd8] sm:$0xff]
    %v1492 = vld [vmem:[#allocation3 + $0xe0] sm:$0xff]
    %v1493 = vld [vmem:[#allocation3 + $0xe8] sm:$0xff]
    %v1494 = vld [vmem:[#allocation3 + $0xf0] sm:$0xff]
    %v1495 = vld [vmem:[#allocation3 + $0xf8] sm:$0xff]
    %v1496 = vpack.c.bf16 %v1459, %v1459
    %v1498 = vperm.slane %v1405, 0
    %v1499 = vperm.slane %v1405, 1
    %v1500 = vperm.slane %v1405, 2
    %v1501 = vperm.slane %v1405, 3
    %v1538 = vunpack.c.l.b16 %v1464
    %v1539 = vunpack.c.l.b16 %v1465
    %v1540 = vunpack.c.h.b16 %v1465
    %v1541 = vunpack.c.l.b16 %v1466
    %v1542 = vunpack.c.l.b16 %v1467
    %v1543 = vunpack.c.h.b16 %v1467
    %v1544 = vunpack.c.l.b16 %v1468
    %v1545 = vunpack.c.l.b16 %v1469
    %v1546 = vunpack.c.h.b16 %v1469
    %v1547 = vunpack.c.l.b16 %v1470
    %v1548 = vunpack.c.l.b16 %v1471
    %v1549 = vunpack.c.h.b16 %v1471
    %v1550 = vunpack.c.l.b16 %v1472
    %v1551 = vunpack.c.l.b16 %v1473
    %v1552 = vunpack.c.h.b16 %v1473
    %v1553 = vunpack.c.l.b16 %v1474
    %v1554 = vunpack.c.l.b16 %v1475
    %v1555 = vunpack.c.h.b16 %v1475
    %v1556 = vunpack.c.l.b16 %v1476
    %v1557 = vunpack.c.l.b16 %v1477
    %v1558 = vunpack.c.h.b16 %v1477
    %v1559 = vunpack.c.l.b16 %v1478
    %v1560 = vunpack.c.l.b16 %v1479
    %v1561 = vunpack.c.h.b16 %v1479
    %v1562 = vunpack.c.l.b16 %v1480
    %v1563 = vunpack.c.l.b16 %v1481
    %v1564 = vunpack.c.h.b16 %v1481
    %v1565 = vunpack.c.l.b16 %v1482
    %v1566 = vunpack.c.l.b16 %v1483
    %v1567 = vunpack.c.h.b16 %v1483
    %v1568 = vunpack.c.l.b16 %v1484
    %v1569 = vunpack.c.l.b16 %v1485
    %v1570 = vunpack.c.h.b16 %v1485
    %v1571 = vunpack.c.l.b16 %v1486
    %v1572 = vunpack.c.l.b16 %v1487
    %v1573 = vunpack.c.h.b16 %v1487
    %v1574 = vunpack.c.l.b16 %v1488
    %v1575 = vunpack.c.l.b16 %v1489
    %v1576 = vunpack.c.h.b16 %v1489
    %v1577 = vunpack.c.l.b16 %v1490
    %v1578 = vunpack.c.l.b16 %v1491
    %v1579 = vunpack.c.h.b16 %v1491
    %v1580 = vunpack.c.l.b16 %v1492
    %v1581 = vunpack.c.l.b16 %v1493
    %v1582 = vunpack.c.h.b16 %v1493
    %v1583 = vunpack.c.l.b16 %v1494
    %v1584 = vunpack.c.l.b16 %v1495
    %v1585 = vunpack.c.h.b16 %v1495
    %v1586 = vpack.c.b16 %v1541, %v1538
    %v1587 = vpack.c.b16 %v1542, %v1539
    %v1588 = vpack.c.b16 %v1543, %v1540
    %v1589 = vpack.c.b16 %v1547, %v1544
    %v1590 = vpack.c.b16 %v1548, %v1545
    %v1591 = vpack.c.b16 %v1549, %v1546
    %v1592 = vpack.c.b16 %v1553, %v1550
    %v1593 = vpack.c.b16 %v1554, %v1551
    %v1594 = vpack.c.b16 %v1555, %v1552
    %v1595 = vpack.c.b16 %v1559, %v1556
    %v1596 = vpack.c.b16 %v1560, %v1557
    %v1597 = vpack.c.b16 %v1561, %v1558
    %v1598 = vpack.c.b16 %v1565, %v1562
    %v1599 = vpack.c.b16 %v1566, %v1563
    %v1600 = vpack.c.b16 %v1567, %v1564
    %v1601 = vpack.c.b16 %v1571, %v1568
    %v1602 = vpack.c.b16 %v1572, %v1569
    %v1603 = vpack.c.b16 %v1573, %v1570
    %v1604 = vpack.c.b16 %v1577, %v1574
    %v1605 = vpack.c.b16 %v1578, %v1575
    %v1606 = vpack.c.b16 %v1579, %v1576
    %v1607 = vpack.c.b16 %v1583, %v1580
    %v1608 = vpack.c.b16 %v1584, %v1581
    %v1609 = vpack.c.b16 %v1585, %v1582
    %1634 = vmatpush.bf16.msra.mxu0 %v1607
    %1635 = vmatpush.bf16.msra.mxu0 %v1604
    %1636 = vmatpush.bf16.msra.mxu0 %v1601
    %1637 = vmatpush.bf16.msra.mxu0 %v1598
    %1638 = vmatpush.bf16.msra.mxu0 %v1595
    %1639 = vmatpush.bf16.msra.mxu0 %v1592
    %1640 = vmatpush.bf16.msra.mxu0 %v1589
    %1641 = vmatpush.bf16.msra.mxu0 %v1586
    %1642 = vmatmul.bf16.gmra.mxu0 %v1496
    %v1643 = vpop.f32.mrf.mxu0
    %v1644 = vadd.f32 %v1498, %v1643
    %v1645 = vpop.f32.mrf.mxu0
    %1646 = vdwg.mxu0
    %1647 = vmatpush.bf16.msra.mxu0 %v1608
    %1648 = vmatpush.bf16.msra.mxu0 %v1605
    %1649 = vmatpush.bf16.msra.mxu0 %v1602
    %1650 = vmatpush.bf16.msra.mxu0 %v1599
    %1651 = vmatpush.bf16.msra.mxu0 %v1596
    %1652 = vmatpush.bf16.msra.mxu0 %v1593
    %1653 = vmatpush.bf16.msra.mxu0 %v1590
    %1654 = vmatpush.bf16.msra.mxu0 %v1587
    %1655 = vmatmul.bf16.gmra.mxu0 %v1496
    %v1656 = vpop.f32.mrf.mxu0
    %v1657 = vadd.f32 %v1500, %v1656
    %v1658 = vpop.f32.mrf.mxu0
    %1659 = vdwg.mxu0
    %1660 = vmatpush.bf16.msra.mxu0 %v1609
    %1661 = vmatpush.bf16.msra.mxu0 %v1606
    %1662 = vmatpush.bf16.msra.mxu0 %v1603
    %1663 = vmatpush.bf16.msra.mxu0 %v1600
    %1664 = vmatpush.bf16.msra.mxu0 %v1597
    %1665 = vmatpush.bf16.msra.mxu0 %v1594
    %1666 = vmatpush.bf16.msra.mxu0 %v1591
    %1667 = vmatpush.bf16.msra.mxu0 %v1588
    %1668 = vmatmul.bf16.gmra.mxu0 %v1496
    %v1669 = vpop.f32.mrf.mxu0
    %v1670 = vadd.f32 %v1501, %v1669
    %v1671 = vpop.f32.mrf.mxu0
    %1672 = vdwg.mxu0
    %v1673 = vxor.u32 %v1644, 2147483648
    %v1674 = vmul.f32 %v1673, 1.442695
    %v1675 = vpow.pop %v1674
    %v1676 = vadd.f32 %v1675, 1.0
    %v1677 = vrcp.pop %v1676
    %v1678 = vmul.f32 %v1676, %v1677
    %v1679 = vsub.f32 1.0, %v1678
    %v1680 = vmul.f32 %v1677, %v1679
    %v1681 = vadd.f32 %v1677, %v1680
    %vm1682 = vweird.f32 %v1676
    %vm1683 = vweird.f32 %v1677
    %vm1684 = vmor %vm1682, %vm1683
    %v1685 = vsel %vm1684, %v1677, %v1681
    %v1686 = vand.u32 2147483647, %v1676
    %vm1687 = vcmp.eq.f32.partialorder %v1686, 8.507059e+37
    %v1688 = vand.u32 %v1676, 2147483648
    %v1689 = vor.u32 1.1754944e-38, %v1688
    %v1690 = vsel %vm1687, %v1689, %v1685
    %v1691 = vmul.f32 1.0, %v1690
    %v1692 = vtanh.pop %v1657
    %v1693 = vxor.u32 %v1670, 2147483648
    %v1694 = vmul.f32 %v1693, 1.442695
    %v1695 = vpow.pop %v1694
    %v1696 = vadd.f32 %v1695, 1.0
    %v1697 = vrcp.pop %v1696
    %v1698 = vmul.f32 %v1696, %v1697
    %v1699 = vsub.f32 1.0, %v1698
    %v1700 = vmul.f32 %v1697, %v1699
    %v1701 = vadd.f32 %v1697, %v1700
    %vm1702 = vweird.f32 %v1696
    %vm1703 = vweird.f32 %v1697
    %vm1704 = vmor %vm1702, %vm1703
    %v1705 = vsel %vm1704, %v1697, %v1701
    %v1706 = vand.u32 2147483647, %v1696
    %vm1707 = vcmp.eq.f32.partialorder %v1706, 8.507059e+37
    %v1708 = vand.u32 %v1696, 2147483648
    %v1709 = vor.u32 1.1754944e-38, %v1708
    %v1710 = vsel %vm1707, %v1709, %v1705
    %v1711 = vmul.f32 1.0, %v1710
    %v1712 = vmul.f32 %v1691, %v1692
    %v1713 = vtanh.pop %v1712
    %v1714 = vmul.f32 %v1711, %v1713
    %s1715 = sshll.u32 %s1461, 4
    %1716 = dma.done %s321, %s1715
    %s1717 = sshll.u32 %s1461, 4
    %1718 = dma.done %s335, %s1717
    %v1719 = vld [vmem:[#allocation2] sm:$0xff]
    %v1720 = vld [vmem:[#allocation2 + $0x8] sm:$0xff]
    %v1721 = vld [vmem:[#allocation2 + $0x10] sm:$0xff]
    %v1722 = vld [vmem:[#allocation2 + $0x18] sm:$0xff]
    %v1723 = vld [vmem:[#allocation2 + $0x20] sm:$0xff]
    %v1724 = vld [vmem:[#allocation2 + $0x28] sm:$0xff]
    %v1725 = vld [vmem:[#allocation2 + $0x30] sm:$0xff]
    %v1726 = vld [vmem:[#allocation2 + $0x38] sm:$0xff]
    %v1727 = vld [vmem:[#allocation2 + $0x40] sm:$0xff]
    %v1728 = vld [vmem:[#allocation2 + $0x48] sm:$0xff]
    %v1729 = vld [vmem:[#allocation2 + $0x50] sm:$0xff]
    %v1730 = vld [vmem:[#allocation2 + $0x58] sm:$0xff]
    %v1731 = vld [vmem:[#allocation2 + $0x60] sm:$0xff]
    %v1732 = vld [vmem:[#allocation2 + $0x68] sm:$0xff]
    %v1733 = vld [vmem:[#allocation2 + $0x70] sm:$0xff]
    %v1734 = vld [vmem:[#allocation2 + $0x78] sm:$0xff]
    %v1735 = vld [vmem:[#allocation2 + $0x80] sm:$0xff]
    %v1736 = vld [vmem:[#allocation2 + $0x88] sm:$0xff]
    %v1737 = vld [vmem:[#allocation2 + $0x90] sm:$0xff]
    %v1738 = vld [vmem:[#allocation2 + $0x98] sm:$0xff]
    %v1739 = vld [vmem:[#allocation2 + $0xa0] sm:$0xff]
    %v1740 = vld [vmem:[#allocation2 + $0xa8] sm:$0xff]
    %v1741 = vld [vmem:[#allocation2 + $0xb0] sm:$0xff]
    %v1742 = vld [vmem:[#allocation2 + $0xb8] sm:$0xff]
    %v1743 = vld [vmem:[#allocation2 + $0xc0] sm:$0xff]
    %v1744 = vld [vmem:[#allocation2 + $0xc8] sm:$0xff]
    %v1745 = vld [vmem:[#allocation2 + $0xd0] sm:$0xff]
    %v1746 = vld [vmem:[#allocation2 + $0xd8] sm:$0xff]
    %v1747 = vld [vmem:[#allocation2 + $0xe0] sm:$0xff]
    %v1748 = vld [vmem:[#allocation2 + $0xe8] sm:$0xff]
    %v1749 = vld [vmem:[#allocation2 + $0xf0] sm:$0xff]
    %v1750 = vld [vmem:[#allocation2 + $0xf8] sm:$0xff]
    %v1751 = vld [vmem:[#allocation4] sm:$0xff]
    %v1752 = vld [vmem:[#allocation4 + $0x8] sm:$0xff]
    %v1753 = vld [vmem:[#allocation4 + $0x10] sm:$0xff]
    %v1754 = vld [vmem:[#allocation4 + $0x18] sm:$0xff]
    %v1755 = vld [vmem:[#allocation4 + $0x20] sm:$0xff]
    %v1756 = vld [vmem:[#allocation4 + $0x28] sm:$0xff]
    %v1757 = vld [vmem:[#allocation4 + $0x30] sm:$0xff]
    %v1758 = vld [vmem:[#allocation4 + $0x38] sm:$0xff]
    %v1759 = vld [vmem:[#allocation4 + $0x40] sm:$0xff]
    %v1760 = vld [vmem:[#allocation4 + $0x48] sm:$0xff]
    %v1761 = vld [vmem:[#allocation4 + $0x50] sm:$0xff]
    %v1762 = vld [vmem:[#allocation4 + $0x58] sm:$0xff]
    %v1763 = vld [vmem:[#allocation4 + $0x60] sm:$0xff]
    %v1764 = vld [vmem:[#allocation4 + $0x68] sm:$0xff]
    %v1765 = vld [vmem:[#allocation4 + $0x70] sm:$0xff]
    %v1766 = vld [vmem:[#allocation4 + $0x78] sm:$0xff]
    %v1767 = vld [vmem:[#allocation4 + $0x80] sm:$0xff]
    %v1768 = vld [vmem:[#allocation4 + $0x88] sm:$0xff]
    %v1769 = vld [vmem:[#allocation4 + $0x90] sm:$0xff]
    %v1770 = vld [vmem:[#allocation4 + $0x98] sm:$0xff]
    %v1771 = vld [vmem:[#allocation4 + $0xa0] sm:$0xff]
    %v1772 = vld [vmem:[#allocation4 + $0xa8] sm:$0xff]
    %v1773 = vld [vmem:[#allocation4 + $0xb0] sm:$0xff]
    %v1774 = vld [vmem:[#allocation4 + $0xb8] sm:$0xff]
    %v1775 = vld [vmem:[#allocation4 + $0xc0] sm:$0xff]
    %v1776 = vld [vmem:[#allocation4 + $0xc8] sm:$0xff]
    %v1777 = vld [vmem:[#allocation4 + $0xd0] sm:$0xff]
    %v1778 = vld [vmem:[#allocation4 + $0xd8] sm:$0xff]
    %v1779 = vld [vmem:[#allocation4 + $0xe0] sm:$0xff]
    %v1780 = vld [vmem:[#allocation4 + $0xe8] sm:$0xff]
    %v1781 = vld [vmem:[#allocation4 + $0xf0] sm:$0xff]
    %v1782 = vld [vmem:[#allocation4 + $0xf8] sm:$0xff]
    %v1815 = vunpack.c.l.b16 %v1719
    %v1816 = vunpack.c.h.b16 %v1719
    %v1817 = vunpack.c.l.b16 %v1720
    %v1818 = vunpack.c.h.b16 %v1720
    %v1819 = vunpack.c.l.b16 %v1721
    %v1820 = vunpack.c.h.b16 %v1721
    %v1821 = vunpack.c.l.b16 %v1722
    %v1822 = vunpack.c.h.b16 %v1722
    %v1823 = vunpack.c.l.b16 %v1723
    %v1824 = vunpack.c.h.b16 %v1723
    %v1825 = vunpack.c.l.b16 %v1724
    %v1826 = vunpack.c.h.b16 %v1724
    %v1827 = vunpack.c.l.b16 %v1725
    %v1828 = vunpack.c.h.b16 %v1725
    %v1829 = vunpack.c.l.b16 %v1726
    %v1830 = vunpack.c.h.b16 %v1726
    %v1831 = vunpack.c.l.b16 %v1727
    %v1832 = vunpack.c.h.b16 %v1727
    %v1833 = vunpack.c.l.b16 %v1728
    %v1834 = vunpack.c.h.b16 %v1728
    %v1835 = vunpack.c.l.b16 %v1729
    %v1836 = vunpack.c.h.b16 %v1729
    %v1837 = vunpack.c.l.b16 %v1730
    %v1838 = vunpack.c.h.b16 %v1730
    %v1839 = vunpack.c.l.b16 %v1731
    %v1840 = vunpack.c.h.b16 %v1731
    %v1841 = vunpack.c.l.b16 %v1732
    %v1842 = vunpack.c.h.b16 %v1732
    %v1843 = vunpack.c.l.b16 %v1733
    %v1844 = vunpack.c.h.b16 %v1733
    %v1845 = vunpack.c.l.b16 %v1734
    %v1846 = vunpack.c.h.b16 %v1734
    %v1847 = vunpack.c.l.b16 %v1735
    %v1848 = vunpack.c.h.b16 %v1735
    %v1849 = vunpack.c.l.b16 %v1736
    %v1850 = vunpack.c.h.b16 %v1736
    %v1851 = vunpack.c.l.b16 %v1737
    %v1852 = vunpack.c.h.b16 %v1737
    %v1853 = vunpack.c.l.b16 %v1738
    %v1854 = vunpack.c.h.b16 %v1738
    %v1855 = vunpack.c.l.b16 %v1739
    %v1856 = vunpack.c.h.b16 %v1739
    %v1857 = vunpack.c.l.b16 %v1740
    %v1858 = vunpack.c.h.b16 %v1740
    %v1859 = vunpack.c.l.b16 %v1741
    %v1860 = vunpack.c.h.b16 %v1741
    %v1861 = vunpack.c.l.b16 %v1742
    %v1862 = vunpack.c.h.b16 %v1742
    %v1863 = vunpack.c.l.b16 %v1743
    %v1864 = vunpack.c.h.b16 %v1743
    %v1865 = vunpack.c.l.b16 %v1744
    %v1866 = vunpack.c.h.b16 %v1744
    %v1867 = vunpack.c.l.b16 %v1745
    %v1868 = vunpack.c.h.b16 %v1745
    %v1869 = vunpack.c.l.b16 %v1746
    %v1870 = vunpack.c.h.b16 %v1746
    %v1871 = vunpack.c.l.b16 %v1747
    %v1872 = vunpack.c.h.b16 %v1747
    %v1873 = vunpack.c.l.b16 %v1748
    %v1874 = vunpack.c.h.b16 %v1748
    %v1875 = vunpack.c.l.b16 %v1749
    %v1876 = vunpack.c.h.b16 %v1749
    %v1877 = vunpack.c.l.b16 %v1750
    %v1878 = vunpack.c.h.b16 %v1750
    %v1879 = vpack.c.b16 %v1819, %v1815
    %v1880 = vpack.c.b16 %v1820, %v1816
    %v1881 = vpack.c.b16 %v1821, %v1817
    %v1882 = vpack.c.b16 %v1822, %v1818
    %v1883 = vpack.c.b16 %v1827, %v1823
    %v1884 = vpack.c.b16 %v1828, %v1824
    %v1885 = vpack.c.b16 %v1829, %v1825
    %v1886 = vpack.c.b16 %v1830, %v1826
    %v1887 = vpack.c.b16 %v1835, %v1831
    %v1888 = vpack.c.b16 %v1836, %v1832
    %v1889 = vpack.c.b16 %v1837, %v1833
    %v1890 = vpack.c.b16 %v1838, %v1834
    %v1891 = vpack.c.b16 %v1843, %v1839
    %v1892 = vpack.c.b16 %v1844, %v1840
    %v1893 = vpack.c.b16 %v1845, %v1841
    %v1894 = vpack.c.b16 %v1846, %v1842
    %v1895 = vpack.c.b16 %v1851, %v1847
    %v1896 = vpack.c.b16 %v1852, %v1848
    %v1897 = vpack.c.b16 %v1853, %v1849
    %v1898 = vpack.c.b16 %v1854, %v1850
    %v1899 = vpack.c.b16 %v1859, %v1855
    %v1900 = vpack.c.b16 %v1860, %v1856
    %v1901 = vpack.c.b16 %v1861, %v1857
    %v1902 = vpack.c.b16 %v1862, %v1858
    %v1903 = vpack.c.b16 %v1867, %v1863
    %v1904 = vpack.c.b16 %v1868, %v1864
    %v1905 = vpack.c.b16 %v1869, %v1865
    %v1906 = vpack.c.b16 %v1870, %v1866
    %v1907 = vpack.c.b16 %v1875, %v1871
    %v1908 = vpack.c.b16 %v1876, %v1872
    %v1909 = vpack.c.b16 %v1877, %v1873
    %v1910 = vpack.c.b16 %v1878, %v1874
    %1943 = vmatpush.bf16.msra.mxu0 %v1907
    %1944 = vmatpush.bf16.msra.mxu0 %v1903
    %1945 = vmatpush.bf16.msra.mxu0 %v1899
    %1946 = vmatpush.bf16.msra.mxu0 %v1895
    %1947 = vmatpush.bf16.msra.mxu0 %v1891
    %1948 = vmatpush.bf16.msra.mxu0 %v1887
    %1949 = vmatpush.bf16.msra.mxu0 %v1883
    %1950 = vmatpush.bf16.msra.mxu0 %v1879
    %1951 = vmatmul.bf16.gmra.mxu0 %v1496
    %v1952 = vpop.f32.mrf.mxu0
    %v1953 = vadd.f32 0.0, %v1952
    %v1954 = vpop.f32.mrf.mxu0
    %1955 = vdwg.mxu0
    %1956 = vmatpush.bf16.msra.mxu0 %v1908
    %1957 = vmatpush.bf16.msra.mxu0 %v1904
    %1958 = vmatpush.bf16.msra.mxu0 %v1900
    %1959 = vmatpush.bf16.msra.mxu0 %v1896
    %1960 = vmatpush.bf16.msra.mxu0 %v1892
    %1961 = vmatpush.bf16.msra.mxu0 %v1888
    %1962 = vmatpush.bf16.msra.mxu0 %v1884
    %1963 = vmatpush.bf16.msra.mxu0 %v1880
    %1964 = vmatmul.bf16.gmra.mxu0 %v1496
    %v1965 = vpop.f32.mrf.mxu0
    %v1966 = vadd.f32 0.0, %v1965
    %v1967 = vpop.f32.mrf.mxu0
    %1968 = vdwg.mxu0
    %1969 = vmatpush.bf16.msra.mxu0 %v1909
    %1970 = vmatpush.bf16.msra.mxu0 %v1905
    %1971 = vmatpush.bf16.msra.mxu0 %v1901
    %1972 = vmatpush.bf16.msra.mxu0 %v1897
    %1973 = vmatpush.bf16.msra.mxu0 %v1893
    %1974 = vmatpush.bf16.msra.mxu0 %v1889
    %1975 = vmatpush.bf16.msra.mxu0 %v1885
    %1976 = vmatpush.bf16.msra.mxu0 %v1881
    %1977 = vmatmul.bf16.gmra.mxu0 %v1496
    %v1978 = vpop.f32.mrf.mxu0
    %v1979 = vadd.f32 0.0, %v1978
    %v1980 = vpop.f32.mrf.mxu0
    %1981 = vdwg.mxu0
    %1982 = vmatpush.bf16.msra.mxu0 %v1910
    %1983 = vmatpush.bf16.msra.mxu0 %v1906
    %1984 = vmatpush.bf16.msra.mxu0 %v1902
    %1985 = vmatpush.bf16.msra.mxu0 %v1898
    %1986 = vmatpush.bf16.msra.mxu0 %v1894
    %1987 = vmatpush.bf16.msra.mxu0 %v1890
    %1988 = vmatpush.bf16.msra.mxu0 %v1886
    %1989 = vmatpush.bf16.msra.mxu0 %v1882
    %1990 = vmatmul.bf16.gmra.mxu0 %v1496
    %v1991 = vpop.f32.mrf.mxu0
    %v1992 = vadd.f32 0.0, %v1991
    %v1993 = vpop.f32.mrf.mxu0
    %1994 = vdwg.mxu0
    %v1995 = vadd.f32 %v1301, %v1953
    %v1996 = vadd.f32 %v1329, %v1966
    %v1997 = vadd.f32 %v1358, %v1979
    %v1998 = vadd.f32 %v1387, %v1992
    %v1999 = vadd.f32 %v1995, %v1407
    %v2000 = vadd.f32 %v1996, %v1408
    %v2001 = vadd.f32 %v1997, %v1409
    %v2002 = vadd.f32 %v1998, %v1410
    %v2003 = vxor.u32 %v1999, 2147483648
    %v2004 = vmul.f32 %v2003, 1.442695
    %v2005 = vpow.pop %v2004
    %v2006 = vadd.f32 %v2005, 1.0
    %v2007 = vrcp.pop %v2006
    %v2008 = vmul.f32 %v2006, %v2007
    %v2009 = vsub.f32 1.0, %v2008
    %v2010 = vmul.f32 %v2007, %v2009
    %v2011 = vadd.f32 %v2007, %v2010
    %vm2012 = vweird.f32 %v2006
    %vm2013 = vweird.f32 %v2007
    %vm2014 = vmor %vm2012, %vm2013
    %v2015 = vsel %vm2014, %v2007, %v2011
    %v2016 = vand.u32 2147483647, %v2006
    %vm2017 = vcmp.eq.f32.partialorder %v2016, 8.507059e+37
    %v2018 = vand.u32 %v2006, 2147483648
    %v2019 = vor.u32 1.1754944e-38, %v2018
    %v2020 = vsel %vm2017, %v2019, %v2015
    %v2021 = vmul.f32 1.0, %v2020
    %v2022 = vxor.u32 %v2000, 2147483648
    %v2023 = vmul.f32 %v2022, 1.442695
    %v2024 = vpow.pop %v2023
    %v2025 = vadd.f32 %v2024, 1.0
    %v2026 = vrcp.pop %v2025
    %v2027 = vmul.f32 %v2025, %v2026
    %v2028 = vsub.f32 1.0, %v2027
    %v2029 = vmul.f32 %v2026, %v2028
    %v2030 = vadd.f32 %v2026, %v2029
    %vm2031 = vweird.f32 %v2025
    %vm2032 = vweird.f32 %v2026
    %vm2033 = vmor %vm2031, %vm2032
    %v2034 = vsel %vm2033, %v2026, %v2030
    %v2035 = vand.u32 2147483647, %v2025
    %vm2036 = vcmp.eq.f32.partialorder %v2035, 8.507059e+37
    %v2037 = vand.u32 %v2025, 2147483648
    %v2038 = vor.u32 1.1754944e-38, %v2037
    %v2039 = vsel %vm2036, %v2038, %v2034
    %v2040 = vmul.f32 1.0, %v2039
    %v2041 = vtanh.pop %v2001
    %v2042 = vxor.u32 %v2002, 2147483648
    %v2043 = vmul.f32 %v2042, 1.442695
    %v2044 = vpow.pop %v2043
    %v2045 = vadd.f32 %v2044, 1.0
    %v2046 = vrcp.pop %v2045
    %v2047 = vmul.f32 %v2045, %v2046
    %v2048 = vsub.f32 1.0, %v2047
    %v2049 = vmul.f32 %v2046, %v2048
    %v2050 = vadd.f32 %v2046, %v2049
    %vm2051 = vweird.f32 %v2045
    %vm2052 = vweird.f32 %v2046
    %vm2053 = vmor %vm2051, %vm2052
    %v2054 = vsel %vm2053, %v2046, %v2050
    %v2055 = vand.u32 2147483647, %v2045
    %vm2056 = vcmp.eq.f32.partialorder %v2055, 8.507059e+37
    %v2057 = vand.u32 %v2045, 2147483648
    %v2058 = vor.u32 1.1754944e-38, %v2057
    %v2059 = vsel %vm2056, %v2058, %v2054
    %v2060 = vmul.f32 1.0, %v2059
    %v2061 = vmul.f32 %v2040, %v1457
    %v2062 = vmul.f32 %v2021, %v2041
    %v2063 = vadd.f32 %v2061, %v2062
    %v2064 = vtanh.pop %v2063
    %v2065 = vmul.f32 %v2060, %v2064
    %v2066 = vpack.c.bf16 %v1714, %v1714
    %v2067 = vpack.c.bf16 %v2065, %v2065
    %v2068 = vunpack.c.h.b16 %v1464
    %v2069 = vunpack.c.h.b16 %v1466
    %v2070 = vunpack.c.h.b16 %v1468
    %v2071 = vunpack.c.h.b16 %v1470
    %v2072 = vunpack.c.h.b16 %v1472
    %v2073 = vunpack.c.h.b16 %v1474
    %v2074 = vunpack.c.h.b16 %v1476
    %v2075 = vunpack.c.h.b16 %v1478
    %v2076 = vunpack.c.h.b16 %v1480
    %v2077 = vunpack.c.h.b16 %v1482
    %v2078 = vunpack.c.h.b16 %v1484
    %v2079 = vunpack.c.h.b16 %v1486
    %v2080 = vunpack.c.h.b16 %v1488
    %v2081 = vunpack.c.h.b16 %v1490
    %v2082 = vunpack.c.h.b16 %v1492
    %v2083 = vunpack.c.h.b16 %v1494
    %v2084 = vpack.c.b16 %v2069, %v2068
    %v2085 = vpack.c.b16 %v2071, %v2070
    %v2086 = vpack.c.b16 %v2073, %v2072
    %v2087 = vpack.c.b16 %v2075, %v2074
    %v2088 = vpack.c.b16 %v2077, %v2076
    %v2089 = vpack.c.b16 %v2079, %v2078
    %v2090 = vpack.c.b16 %v2081, %v2080
    %v2091 = vpack.c.b16 %v2083, %v2082
    %2100 = vmatpush.bf16.msra.mxu0 %v1607
    %2101 = vmatpush.bf16.msra.mxu0 %v1604
    %2102 = vmatpush.bf16.msra.mxu0 %v1601
    %2103 = vmatpush.bf16.msra.mxu0 %v1598
    %2104 = vmatpush.bf16.msra.mxu0 %v1595
    %2105 = vmatpush.bf16.msra.mxu0 %v1592
    %2106 = vmatpush.bf16.msra.mxu0 %v1589
    %2107 = vmatpush.bf16.msra.mxu0 %v1586
    %2108 = vmatmul.bf16.gmra.mxu0 %v2067
    %v2109 = vpop.f32.mrf.mxu0
    %v2110 = vadd.f32 0.0, %v2109
    %v2111 = vpop.f32.mrf.mxu0
    %2112 = vdwg.mxu0
    %2113 = vmatpush.bf16.msra.mxu0 %v2091
    %2114 = vmatpush.bf16.msra.mxu0 %v2090
    %2115 = vmatpush.bf16.msra.mxu0 %v2089
    %2116 = vmatpush.bf16.msra.mxu0 %v2088
    %2117 = vmatpush.bf16.msra.mxu0 %v2087
    %2118 = vmatpush.bf16.msra.mxu0 %v2086
    %2119 = vmatpush.bf16.msra.mxu0 %v2085
    %2120 = vmatpush.bf16.msra.mxu0 %v2084
    %2121 = vmatmul.bf16.gmra.mxu0 %v2067
    %v2122 = vpop.f32.mrf.mxu0
    %v2123 = vadd.f32 0.0, %v2122
    %v2124 = vpop.f32.mrf.mxu0
    %2125 = vdwg.mxu0
    %2126 = vmatpush.bf16.msra.mxu0 %v1608
    %2127 = vmatpush.bf16.msra.mxu0 %v1605
    %2128 = vmatpush.bf16.msra.mxu0 %v1602
    %2129 = vmatpush.bf16.msra.mxu0 %v1599
    %2130 = vmatpush.bf16.msra.mxu0 %v1596
    %2131 = vmatpush.bf16.msra.mxu0 %v1593
    %2132 = vmatpush.bf16.msra.mxu0 %v1590
    %2133 = vmatpush.bf16.msra.mxu0 %v1587
    %2134 = vmatmul.bf16.gmra.mxu0 %v2067
    %v2135 = vpop.f32.mrf.mxu0
    %v2136 = vadd.f32 0.0, %v2135
    %v2137 = vpop.f32.mrf.mxu0
    %2138 = vdwg.mxu0
    %2139 = vmatpush.bf16.msra.mxu0 %v1609
    %2140 = vmatpush.bf16.msra.mxu0 %v1606
    %2141 = vmatpush.bf16.msra.mxu0 %v1603
    %2142 = vmatpush.bf16.msra.mxu0 %v1600
    %2143 = vmatpush.bf16.msra.mxu0 %v1597
    %2144 = vmatpush.bf16.msra.mxu0 %v1594
    %2145 = vmatpush.bf16.msra.mxu0 %v1591
    %2146 = vmatpush.bf16.msra.mxu0 %v1588
    %2147 = vmatmul.bf16.gmra.mxu0 %v2067
    %v2148 = vpop.f32.mrf.mxu0
    %v2149 = vadd.f32 0.0, %v2148
    %v2150 = vpop.f32.mrf.mxu0
    %2151 = vdwg.mxu0
    %v2184 = vunpack.c.l.b16 %v1751
    %v2185 = vunpack.c.h.b16 %v1751
    %v2186 = vunpack.c.l.b16 %v1752
    %v2187 = vunpack.c.h.b16 %v1752
    %v2188 = vunpack.c.l.b16 %v1753
    %v2189 = vunpack.c.h.b16 %v1753
    %v2190 = vunpack.c.l.b16 %v1754
    %v2191 = vunpack.c.h.b16 %v1754
    %v2192 = vunpack.c.l.b16 %v1755
    %v2193 = vunpack.c.h.b16 %v1755
    %v2194 = vunpack.c.l.b16 %v1756
    %v2195 = vunpack.c.h.b16 %v1756
    %v2196 = vunpack.c.l.b16 %v1757
    %v2197 = vunpack.c.h.b16 %v1757
    %v2198 = vunpack.c.l.b16 %v1758
    %v2199 = vunpack.c.h.b16 %v1758
    %v2200 = vunpack.c.l.b16 %v1759
    %v2201 = vunpack.c.h.b16 %v1759
    %v2202 = vunpack.c.l.b16 %v1760
    %v2203 = vunpack.c.h.b16 %v1760
    %v2204 = vunpack.c.l.b16 %v1761
    %v2205 = vunpack.c.h.b16 %v1761
    %v2206 = vunpack.c.l.b16 %v1762
    %v2207 = vunpack.c.h.b16 %v1762
    %v2208 = vunpack.c.l.b16 %v1763
    %v2209 = vunpack.c.h.b16 %v1763
    %v2210 = vunpack.c.l.b16 %v1764
    %v2211 = vunpack.c.h.b16 %v1764
    %v2212 = vunpack.c.l.b16 %v1765
    %v2213 = vunpack.c.h.b16 %v1765
    %v2214 = vunpack.c.l.b16 %v1766
    %v2215 = vunpack.c.h.b16 %v1766
    %v2216 = vunpack.c.l.b16 %v1767
    %v2217 = vunpack.c.h.b16 %v1767
    %v2218 = vunpack.c.l.b16 %v1768
    %v2219 = vunpack.c.h.b16 %v1768
    %v2220 = vunpack.c.l.b16 %v1769
    %v2221 = vunpack.c.h.b16 %v1769
    %v2222 = vunpack.c.l.b16 %v1770
    %v2223 = vunpack.c.h.b16 %v1770
    %v2224 = vunpack.c.l.b16 %v1771
    %v2225 = vunpack.c.h.b16 %v1771
    %v2226 = vunpack.c.l.b16 %v1772
    %v2227 = vunpack.c.h.b16 %v1772
    %v2228 = vunpack.c.l.b16 %v1773
    %v2229 = vunpack.c.h.b16 %v1773
    %v2230 = vunpack.c.l.b16 %v1774
    %v2231 = vunpack.c.h.b16 %v1774
    %v2232 = vunpack.c.l.b16 %v1775
    %v2233 = vunpack.c.h.b16 %v1775
    %v2234 = vunpack.c.l.b16 %v1776
    %v2235 = vunpack.c.h.b16 %v1776
    %v2236 = vunpack.c.l.b16 %v1777
    %v2237 = vunpack.c.h.b16 %v1777
    %v2238 = vunpack.c.l.b16 %v1778
    %v2239 = vunpack.c.h.b16 %v1778
    %v2240 = vunpack.c.l.b16 %v1779
    %v2241 = vunpack.c.h.b16 %v1779
    %v2242 = vunpack.c.l.b16 %v1780
    %v2243 = vunpack.c.h.b16 %v1780
    %v2244 = vunpack.c.l.b16 %v1781
    %v2245 = vunpack.c.h.b16 %v1781
    %v2246 = vunpack.c.l.b16 %v1782
    %v2247 = vunpack.c.h.b16 %v1782
    %v2248 = vpack.c.b16 %v2188, %v2184
    %v2249 = vpack.c.b16 %v2189, %v2185
    %v2250 = vpack.c.b16 %v2190, %v2186
    %v2251 = vpack.c.b16 %v2191, %v2187
    %v2252 = vpack.c.b16 %v2196, %v2192
    %v2253 = vpack.c.b16 %v2197, %v2193
    %v2254 = vpack.c.b16 %v2198, %v2194
    %v2255 = vpack.c.b16 %v2199, %v2195
    %v2256 = vpack.c.b16 %v2204, %v2200
    %v2257 = vpack.c.b16 %v2205, %v2201
    %v2258 = vpack.c.b16 %v2206, %v2202
    %v2259 = vpack.c.b16 %v2207, %v2203
    %v2260 = vpack.c.b16 %v2212, %v2208
    %v2261 = vpack.c.b16 %v2213, %v2209
    %v2262 = vpack.c.b16 %v2214, %v2210
    %v2263 = vpack.c.b16 %v2215, %v2211
    %v2264 = vpack.c.b16 %v2220, %v2216
    %v2265 = vpack.c.b16 %v2221, %v2217
    %v2266 = vpack.c.b16 %v2222, %v2218
    %v2267 = vpack.c.b16 %v2223, %v2219
    %v2268 = vpack.c.b16 %v2228, %v2224
    %v2269 = vpack.c.b16 %v2229, %v2225
    %v2270 = vpack.c.b16 %v2230, %v2226
    %v2271 = vpack.c.b16 %v2231, %v2227
    %v2272 = vpack.c.b16 %v2236, %v2232
    %v2273 = vpack.c.b16 %v2237, %v2233
    %v2274 = vpack.c.b16 %v2238, %v2234
    %v2275 = vpack.c.b16 %v2239, %v2235
    %v2276 = vpack.c.b16 %v2244, %v2240
    %v2277 = vpack.c.b16 %v2245, %v2241
    %v2278 = vpack.c.b16 %v2246, %v2242
    %v2279 = vpack.c.b16 %v2247, %v2243
    %2312 = vmatpush.bf16.msra.mxu0 %v2276
    %2313 = vmatpush.bf16.msra.mxu0 %v2272
    %2314 = vmatpush.bf16.msra.mxu0 %v2268
    %2315 = vmatpush.bf16.msra.mxu0 %v2264
    %2316 = vmatpush.bf16.msra.mxu0 %v2260
    %2317 = vmatpush.bf16.msra.mxu0 %v2256
    %2318 = vmatpush.bf16.msra.mxu0 %v2252
    %2319 = vmatpush.bf16.msra.mxu0 %v2248
    %2320 = vmatmul.bf16.gmra.mxu0 %v2066
    %v2321 = vpop.f32.mrf.mxu0
    %v2322 = vadd.f32 %v2110, %v2321
    %v2323 = vpop.f32.mrf.mxu0
    %2324 = vdwg.mxu0
    %2325 = vmatpush.bf16.msra.mxu0 %v2277
    %2326 = vmatpush.bf16.msra.mxu0 %v2273
    %2327 = vmatpush.bf16.msra.mxu0 %v2269
    %2328 = vmatpush.bf16.msra.mxu0 %v2265
    %2329 = vmatpush.bf16.msra.mxu0 %v2261
    %2330 = vmatpush.bf16.msra.mxu0 %v2257
    %2331 = vmatpush.bf16.msra.mxu0 %v2253
    %2332 = vmatpush.bf16.msra.mxu0 %v2249
    %2333 = vmatmul.bf16.gmra.mxu0 %v2066
    %v2334 = vpop.f32.mrf.mxu0
    %v2335 = vadd.f32 %v2123, %v2334
    %v2336 = vpop.f32.mrf.mxu0
    %2337 = vdwg.mxu0
    %2338 = vmatpush.bf16.msra.mxu0 %v2278
    %2339 = vmatpush.bf16.msra.mxu0 %v2274
    %2340 = vmatpush.bf16.msra.mxu0 %v2270
    %2341 = vmatpush.bf16.msra.mxu0 %v2266
    %2342 = vmatpush.bf16.msra.mxu0 %v2262
    %2343 = vmatpush.bf16.msra.mxu0 %v2258
    %2344 = vmatpush.bf16.msra.mxu0 %v2254
    %2345 = vmatpush.bf16.msra.mxu0 %v2250
    %2346 = vmatmul.bf16.gmra.mxu0 %v2066
    %v2347 = vpop.f32.mrf.mxu0
    %v2348 = vadd.f32 %v2136, %v2347
    %v2349 = vpop.f32.mrf.mxu0
    %2350 = vdwg.mxu0
    %2351 = vmatpush.bf16.msra.mxu0 %v2279
    %2352 = vmatpush.bf16.msra.mxu0 %v2275
    %2353 = vmatpush.bf16.msra.mxu0 %v2271
    %2354 = vmatpush.bf16.msra.mxu0 %v2267
    %2355 = vmatpush.bf16.msra.mxu0 %v2263
    %2356 = vmatpush.bf16.msra.mxu0 %v2259
    %2357 = vmatpush.bf16.msra.mxu0 %v2255
    %2358 = vmatpush.bf16.msra.mxu0 %v2251
    %2359 = vmatmul.bf16.gmra.mxu0 %v2066
    %v2360 = vpop.f32.mrf.mxu0
    %v2361 = vadd.f32 %v2149, %v2360
    %v2362 = vpop.f32.mrf.mxu0
    %2363 = vdwg.mxu0
    %v2364 = vadd.f32 %v2322, %v1498
    %v2365 = vadd.f32 %v2335, %v1499
    %v2366 = vadd.f32 %v2348, %v1500
    %v2367 = vadd.f32 %v2361, %v1501
    %v2368 = vxor.u32 %v2364, 2147483648
    %v2369 = vmul.f32 %v2368, 1.442695
    %v2370 = vpow.pop %v2369
    %v2371 = vadd.f32 %v2370, 1.0
    %v2372 = vrcp.pop %v2371
    %v2373 = vmul.f32 %v2371, %v2372
    %v2374 = vsub.f32 1.0, %v2373
    %v2375 = vmul.f32 %v2372, %v2374
    %v2376 = vadd.f32 %v2372, %v2375
    %vm2377 = vweird.f32 %v2371
    %vm2378 = vweird.f32 %v2372
    %vm2379 = vmor %vm2377, %vm2378
    %v2380 = vsel %vm2379, %v2372, %v2376
    %v2381 = vand.u32 2147483647, %v2371
    %vm2382 = vcmp.eq.f32.partialorder %v2381, 8.507059e+37
    %v2383 = vand.u32 %v2371, 2147483648
    %v2384 = vor.u32 1.1754944e-38, %v2383
    %v2385 = vsel %vm2382, %v2384, %v2380
    %v2386 = vmul.f32 1.0, %v2385
    %v2387 = vxor.u32 %v2365, 2147483648
    %v2388 = vmul.f32 %v2387, 1.442695
    %v2389 = vpow.pop %v2388
    %v2390 = vadd.f32 %v2389, 1.0
    %v2391 = vrcp.pop %v2390
    %v2392 = vmul.f32 %v2390, %v2391
    %v2393 = vsub.f32 1.0, %v2392
    %v2394 = vmul.f32 %v2391, %v2393
    %v2395 = vadd.f32 %v2391, %v2394
    %vm2396 = vweird.f32 %v2390
    %vm2397 = vweird.f32 %v2391
    %vm2398 = vmor %vm2396, %vm2397
    %v2399 = vsel %vm2398, %v2391, %v2395
    %v2400 = vand.u32 2147483647, %v2390
    %vm2401 = vcmp.eq.f32.partialorder %v2400, 8.507059e+37
    %v2402 = vand.u32 %v2390, 2147483648
    %v2403 = vor.u32 1.1754944e-38, %v2402
    %v2404 = vsel %vm2401, %v2403, %v2399
    %v2405 = vmul.f32 1.0, %v2404
    %v2406 = vtanh.pop %v2366
    %v2407 = vxor.u32 %v2367, 2147483648
    %v2408 = vmul.f32 %v2407, 1.442695
    %v2409 = vpow.pop %v2408
    %v2410 = vadd.f32 %v2409, 1.0
    %v2411 = vrcp.pop %v2410
    %v2412 = vmul.f32 %v2410, %v2411
    %v2413 = vsub.f32 1.0, %v2412
    %v2414 = vmul.f32 %v2411, %v2413
    %v2415 = vadd.f32 %v2411, %v2414
    %vm2416 = vweird.f32 %v2410
    %vm2417 = vweird.f32 %v2411
    %vm2418 = vmor %vm2416, %vm2417
    %v2419 = vsel %vm2418, %v2411, %v2415
    %v2420 = vand.u32 2147483647, %v2410
    %vm2421 = vcmp.eq.f32.partialorder %v2420, 8.507059e+37
    %v2422 = vand.u32 %v2410, 2147483648
    %v2423 = vor.u32 1.1754944e-38, %v2422
    %v2424 = vsel %vm2421, %v2423, %v2419
    %v2425 = vmul.f32 1.0, %v2424
    %v2426 = vmul.f32 %v2405, %v1712
    %v2427 = vmul.f32 %v2386, %v2406
    %v2428 = vadd.f32 %v2426, %v2427
    %v2429 = vtanh.pop %v2428
    %v2430 = vmul.f32 %v2425, %v2429
    %2431 = vmatpush.bf16.msra.mxu0 %v1907
    %2432 = vmatpush.bf16.msra.mxu0 %v1903
    %2433 = vmatpush.bf16.msra.mxu0 %v1899
    %2434 = vmatpush.bf16.msra.mxu0 %v1895
    %2435 = vmatpush.bf16.msra.mxu0 %v1891
    %2436 = vmatpush.bf16.msra.mxu0 %v1887
    %2437 = vmatpush.bf16.msra.mxu0 %v1883
    %2438 = vmatpush.bf16.msra.mxu0 %v1879
    %2439 = vmatmul.bf16.gmra.mxu0 %v2067
    %v2440 = vpop.f32.mrf.mxu0
    %v2441 = vadd.f32 0.0, %v2440
    %v2442 = vpop.f32.mrf.mxu0
    %2443 = vdwg.mxu0
    %2444 = vmatpush.bf16.msra.mxu0 %v1908
    %2445 = vmatpush.bf16.msra.mxu0 %v1904
    %2446 = vmatpush.bf16.msra.mxu0 %v1900
    %2447 = vmatpush.bf16.msra.mxu0 %v1896
    %2448 = vmatpush.bf16.msra.mxu0 %v1892
    %2449 = vmatpush.bf16.msra.mxu0 %v1888
    %2450 = vmatpush.bf16.msra.mxu0 %v1884
    %2451 = vmatpush.bf16.msra.mxu0 %v1880
    %2452 = vmatmul.bf16.gmra.mxu0 %v2067
    %v2453 = vpop.f32.mrf.mxu0
    %v2454 = vadd.f32 0.0, %v2453
    %v2455 = vpop.f32.mrf.mxu0
    %2456 = vdwg.mxu0
    %2457 = vmatpush.bf16.msra.mxu0 %v1909
    %2458 = vmatpush.bf16.msra.mxu0 %v1905
    %2459 = vmatpush.bf16.msra.mxu0 %v1901
    %2460 = vmatpush.bf16.msra.mxu0 %v1897
    %2461 = vmatpush.bf16.msra.mxu0 %v1893
    %2462 = vmatpush.bf16.msra.mxu0 %v1889
    %2463 = vmatpush.bf16.msra.mxu0 %v1885
    %2464 = vmatpush.bf16.msra.mxu0 %v1881
    %2465 = vmatmul.bf16.gmra.mxu0 %v2067
    %v2466 = vpop.f32.mrf.mxu0
    %v2467 = vadd.f32 0.0, %v2466
    %v2468 = vpop.f32.mrf.mxu0
    %2469 = vdwg.mxu0
    %2470 = vmatpush.bf16.msra.mxu0 %v1910
    %2471 = vmatpush.bf16.msra.mxu0 %v1906
    %2472 = vmatpush.bf16.msra.mxu0 %v1902
    %2473 = vmatpush.bf16.msra.mxu0 %v1898
    %2474 = vmatpush.bf16.msra.mxu0 %v1894
    %2475 = vmatpush.bf16.msra.mxu0 %v1890
    %2476 = vmatpush.bf16.msra.mxu0 %v1886
    %2477 = vmatpush.bf16.msra.mxu0 %v1882
    %2478 = vmatmul.bf16.gmra.mxu0 %v2067
    %v2479 = vpop.f32.mrf.mxu0
    %v2480 = vadd.f32 0.0, %v2479
    %v2481 = vpop.f32.mrf.mxu0
    %2482 = vdwg.mxu0
    %v2483 = vadd.f32 %v1304, %v2441
    %v2484 = vadd.f32 %v1332, %v2454
    %v2485 = vadd.f32 %v1361, %v2467
    %v2486 = vadd.f32 %v1390, %v2480
    %v2487 = vadd.f32 %v2483, %v1407
    %v2488 = vadd.f32 %v2484, %v1408
    %v2489 = vadd.f32 %v2485, %v1409
    %v2490 = vadd.f32 %v2486, %v1410
    %v2491 = vxor.u32 %v2487, 2147483648
    %v2492 = vmul.f32 %v2491, 1.442695
    %v2493 = vpow.pop %v2492
    %v2494 = vadd.f32 %v2493, 1.0
    %v2495 = vrcp.pop %v2494
    %v2496 = vmul.f32 %v2494, %v2495
    %v2497 = vsub.f32 1.0, %v2496
    %v2498 = vmul.f32 %v2495, %v2497
    %v2499 = vadd.f32 %v2495, %v2498
    %vm2500 = vweird.f32 %v2494
    %vm2501 = vweird.f32 %v2495
    %vm2502 = vmor %vm2500, %vm2501
    %v2503 = vsel %vm2502, %v2495, %v2499
    %v2504 = vand.u32 2147483647, %v2494
    %vm2505 = vcmp.eq.f32.partialorder %v2504, 8.507059e+37
    %v2506 = vand.u32 %v2494, 2147483648
    %v2507 = vor.u32 1.1754944e-38, %v2506
    %v2508 = vsel %vm2505, %v2507, %v2503
    %v2509 = vmul.f32 1.0, %v2508
    %v2510 = vxor.u32 %v2488, 2147483648
    %v2511 = vmul.f32 %v2510, 1.442695
    %v2512 = vpow.pop %v2511
    %v2513 = vadd.f32 %v2512, 1.0
    %v2514 = vrcp.pop %v2513
    %v2515 = vmul.f32 %v2513, %v2514
    %v2516 = vsub.f32 1.0, %v2515
    %v2517 = vmul.f32 %v2514, %v2516
    %v2518 = vadd.f32 %v2514, %v2517
    %vm2519 = vweird.f32 %v2513
    %vm2520 = vweird.f32 %v2514
    %vm2521 = vmor %vm2519, %vm2520
    %v2522 = vsel %vm2521, %v2514, %v2518
    %v2523 = vand.u32 2147483647, %v2513
    %vm2524 = vcmp.eq.f32.partialorder %v2523, 8.507059e+37
    %v2525 = vand.u32 %v2513, 2147483648
    %v2526 = vor.u32 1.1754944e-38, %v2525
    %v2527 = vsel %vm2524, %v2526, %v2522
    %v2528 = vmul.f32 1.0, %v2527
    %v2529 = vtanh.pop %v2489
    %v2530 = vxor.u32 %v2490, 2147483648
    %v2531 = vmul.f32 %v2530, 1.442695
    %v2532 = vpow.pop %v2531
    %v2533 = vadd.f32 %v2532, 1.0
    %v2534 = vrcp.pop %v2533
    %v2535 = vmul.f32 %v2533, %v2534
    %v2536 = vsub.f32 1.0, %v2535
    %v2537 = vmul.f32 %v2534, %v2536
    %v2538 = vadd.f32 %v2534, %v2537
    %vm2539 = vweird.f32 %v2533
    %vm2540 = vweird.f32 %v2534
    %vm2541 = vmor %vm2539, %vm2540
    %v2542 = vsel %vm2541, %v2534, %v2538
    %v2543 = vand.u32 2147483647, %v2533
    %vm2544 = vcmp.eq.f32.partialorder %v2543, 8.507059e+37
    %v2545 = vand.u32 %v2533, 2147483648
    %v2546 = vor.u32 1.1754944e-38, %v2545
    %v2547 = vsel %vm2544, %v2546, %v2542
    %v2548 = vmul.f32 1.0, %v2547
    %v2549 = vmul.f32 %v2528, %v2063
    %v2550 = vmul.f32 %v2509, %v2529
    %v2551 = vadd.f32 %v2549, %v2550
    %v2552 = vtanh.pop %v2551
    %v2553 = vmul.f32 %v2548, %v2552
    %v2554 = vpack.c.bf16 %v2430, %v2430
    %v2555 = vpack.c.bf16 %v2553, %v2553
    %2556 = vmatpush.bf16.msra.mxu0 %v1607
    %2557 = vmatpush.bf16.msra.mxu0 %v1604
    %2558 = vmatpush.bf16.msra.mxu0 %v1601
    %2559 = vmatpush.bf16.msra.mxu0 %v1598
    %2560 = vmatpush.bf16.msra.mxu0 %v1595
    %2561 = vmatpush.bf16.msra.mxu0 %v1592
    %2562 = vmatpush.bf16.msra.mxu0 %v1589
    %2563 = vmatpush.bf16.msra.mxu0 %v1586
    %2564 = vmatmul.bf16.gmra.mxu0 %v2555
    %v2565 = vpop.f32.mrf.mxu0
    %v2566 = vadd.f32 0.0, %v2565
    %v2567 = vpop.f32.mrf.mxu0
    %2568 = vdwg.mxu0
    %2569 = vmatpush.bf16.msra.mxu0 %v2091
    %2570 = vmatpush.bf16.msra.mxu0 %v2090
    %2571 = vmatpush.bf16.msra.mxu0 %v2089
    %2572 = vmatpush.bf16.msra.mxu0 %v2088
    %2573 = vmatpush.bf16.msra.mxu0 %v2087
    %2574 = vmatpush.bf16.msra.mxu0 %v2086
    %2575 = vmatpush.bf16.msra.mxu0 %v2085
    %2576 = vmatpush.bf16.msra.mxu0 %v2084
    %2577 = vmatmul.bf16.gmra.mxu0 %v2555
    %v2578 = vpop.f32.mrf.mxu0
    %v2579 = vadd.f32 0.0, %v2578
    %v2580 = vpop.f32.mrf.mxu0
    %2581 = vdwg.mxu0
    %2582 = vmatpush.bf16.msra.mxu0 %v1608
    %2583 = vmatpush.bf16.msra.mxu0 %v1605
    %2584 = vmatpush.bf16.msra.mxu0 %v1602
    %2585 = vmatpush.bf16.msra.mxu0 %v1599
    %2586 = vmatpush.bf16.msra.mxu0 %v1596
    %2587 = vmatpush.bf16.msra.mxu0 %v1593
    %2588 = vmatpush.bf16.msra.mxu0 %v1590
    %2589 = vmatpush.bf16.msra.mxu0 %v1587
    %2590 = vmatmul.bf16.gmra.mxu0 %v2555
    %v2591 = vpop.f32.mrf.mxu0
    %v2592 = vadd.f32 0.0, %v2591
    %v2593 = vpop.f32.mrf.mxu0
    %2594 = vdwg.mxu0
    %2595 = vmatpush.bf16.msra.mxu0 %v1609
    %2596 = vmatpush.bf16.msra.mxu0 %v1606
    %2597 = vmatpush.bf16.msra.mxu0 %v1603
    %2598 = vmatpush.bf16.msra.mxu0 %v1600
    %2599 = vmatpush.bf16.msra.mxu0 %v1597
    %2600 = vmatpush.bf16.msra.mxu0 %v1594
    %2601 = vmatpush.bf16.msra.mxu0 %v1591
    %2602 = vmatpush.bf16.msra.mxu0 %v1588
    %2603 = vmatmul.bf16.gmra.mxu0 %v2555
    %v2604 = vpop.f32.mrf.mxu0
    %v2605 = vadd.f32 0.0, %v2604
    %v2606 = vpop.f32.mrf.mxu0
    %2607 = vdwg.mxu0
    %2608 = vmatpush.bf16.msra.mxu0 %v2276
    %2609 = vmatpush.bf16.msra.mxu0 %v2272
    %2610 = vmatpush.bf16.msra.mxu0 %v2268
    %2611 = vmatpush.bf16.msra.mxu0 %v2264
    %2612 = vmatpush.bf16.msra.mxu0 %v2260
    %2613 = vmatpush.bf16.msra.mxu0 %v2256
    %2614 = vmatpush.bf16.msra.mxu0 %v2252
    %2615 = vmatpush.bf16.msra.mxu0 %v2248
    %2616 = vmatmul.bf16.gmra.mxu0 %v2554
    %v2617 = vpop.f32.mrf.mxu0
    %v2618 = vadd.f32 %v2566, %v2617
    %v2619 = vpop.f32.mrf.mxu0
    %2620 = vdwg.mxu0
    %2621 = vmatpush.bf16.msra.mxu0 %v2277
    %2622 = vmatpush.bf16.msra.mxu0 %v2273
    %2623 = vmatpush.bf16.msra.mxu0 %v2269
    %2624 = vmatpush.bf16.msra.mxu0 %v2265
    %2625 = vmatpush.bf16.msra.mxu0 %v2261
    %2626 = vmatpush.bf16.msra.mxu0 %v2257
    %2627 = vmatpush.bf16.msra.mxu0 %v2253
    %2628 = vmatpush.bf16.msra.mxu0 %v2249
    %2629 = vmatmul.bf16.gmra.mxu0 %v2554
    %v2630 = vpop.f32.mrf.mxu0
    %v2631 = vadd.f32 %v2579, %v2630
    %v2632 = vpop.f32.mrf.mxu0
    %2633 = vdwg.mxu0
    %2634 = vmatpush.bf16.msra.mxu0 %v2278
    %2635 = vmatpush.bf16.msra.mxu0 %v2274
    %2636 = vmatpush.bf16.msra.mxu0 %v2270
    %2637 = vmatpush.bf16.msra.mxu0 %v2266
    %2638 = vmatpush.bf16.msra.mxu0 %v2262
    %2639 = vmatpush.bf16.msra.mxu0 %v2258
    %2640 = vmatpush.bf16.msra.mxu0 %v2254
    %2641 = vmatpush.bf16.msra.mxu0 %v2250
    %2642 = vmatmul.bf16.gmra.mxu0 %v2554
    %v2643 = vpop.f32.mrf.mxu0
    %v2644 = vadd.f32 %v2592, %v2643
    %v2645 = vpop.f32.mrf.mxu0
    %2646 = vdwg.mxu0
    %2647 = vmatpush.bf16.msra.mxu0 %v2279
    %2648 = vmatpush.bf16.msra.mxu0 %v2275
    %2649 = vmatpush.bf16.msra.mxu0 %v2271
    %2650 = vmatpush.bf16.msra.mxu0 %v2267
    %2651 = vmatpush.bf16.msra.mxu0 %v2263
    %2652 = vmatpush.bf16.msra.mxu0 %v2259
    %2653 = vmatpush.bf16.msra.mxu0 %v2255
    %2654 = vmatpush.bf16.msra.mxu0 %v2251
    %2655 = vmatmul.bf16.gmra.mxu0 %v2554
    %v2656 = vpop.f32.mrf.mxu0
    %v2657 = vadd.f32 %v2605, %v2656
    %v2658 = vpop.f32.mrf.mxu0
    %2659 = vdwg.mxu0
    %v2660 = vadd.f32 %v2618, %v1498
    %v2661 = vadd.f32 %v2631, %v1499
    %v2662 = vadd.f32 %v2644, %v1500
    %v2663 = vadd.f32 %v2657, %v1501
    %v2664 = vxor.u32 %v2660, 2147483648
    %v2665 = vmul.f32 %v2664, 1.442695
    %v2666 = vpow.pop %v2665
    %v2667 = vadd.f32 %v2666, 1.0
    %v2668 = vrcp.pop %v2667
    %v2669 = vmul.f32 %v2667, %v2668
    %v2670 = vsub.f32 1.0, %v2669
    %v2671 = vmul.f32 %v2668, %v2670
    %v2672 = vadd.f32 %v2668, %v2671
    %vm2673 = vweird.f32 %v2667
    %vm2674 = vweird.f32 %v2668
    %vm2675 = vmor %vm2673, %vm2674
    %v2676 = vsel %vm2675, %v2668, %v2672
    %v2677 = vand.u32 2147483647, %v2667
    %vm2678 = vcmp.eq.f32.partialorder %v2677, 8.507059e+37
    %v2679 = vand.u32 %v2667, 2147483648
    %v2680 = vor.u32 1.1754944e-38, %v2679
    %v2681 = vsel %vm2678, %v2680, %v2676
    %v2682 = vmul.f32 1.0, %v2681
    %v2683 = vxor.u32 %v2661, 2147483648
    %v2684 = vmul.f32 %v2683, 1.442695
    %v2685 = vpow.pop %v2684
    %v2686 = vadd.f32 %v2685, 1.0
    %v2687 = vrcp.pop %v2686
    %v2688 = vmul.f32 %v2686, %v2687
    %v2689 = vsub.f32 1.0, %v2688
    %v2690 = vmul.f32 %v2687, %v2689
    %v2691 = vadd.f32 %v2687, %v2690
    %vm2692 = vweird.f32 %v2686
    %vm2693 = vweird.f32 %v2687
    %vm2694 = vmor %vm2692, %vm2693
    %v2695 = vsel %vm2694, %v2687, %v2691
    %v2696 = vand.u32 2147483647, %v2686
    %vm2697 = vcmp.eq.f32.partialorder %v2696, 8.507059e+37
    %v2698 = vand.u32 %v2686, 2147483648
    %v2699 = vor.u32 1.1754944e-38, %v2698
    %v2700 = vsel %vm2697, %v2699, %v2695
    %v2701 = vmul.f32 1.0, %v2700
    %v2702 = vtanh.pop %v2662
    %v2703 = vxor.u32 %v2663, 2147483648
    %v2704 = vmul.f32 %v2703, 1.442695
    %v2705 = vpow.pop %v2704
    %v2706 = vadd.f32 %v2705, 1.0
    %v2707 = vrcp.pop %v2706
    %v2708 = vmul.f32 %v2706, %v2707
    %v2709 = vsub.f32 1.0, %v2708
    %v2710 = vmul.f32 %v2707, %v2709
    %v2711 = vadd.f32 %v2707, %v2710
    %vm2712 = vweird.f32 %v2706
    %vm2713 = vweird.f32 %v2707
    %vm2714 = vmor %vm2712, %vm2713
    %v2715 = vsel %vm2714, %v2707, %v2711
    %v2716 = vand.u32 2147483647, %v2706
    %vm2717 = vcmp.eq.f32.partialorder %v2716, 8.507059e+37
    %v2718 = vand.u32 %v2706, 2147483648
    %v2719 = vor.u32 1.1754944e-38, %v2718
    %v2720 = vsel %vm2717, %v2719, %v2715
    %v2721 = vmul.f32 1.0, %v2720
    %v2722 = vmul.f32 %v2701, %v2428
    %v2723 = vmul.f32 %v2682, %v2702
    %v2724 = vadd.f32 %v2722, %v2723
    %v2725 = vtanh.pop %v2724
    %v2726 = vmul.f32 %v2721, %v2725
    %2727 = vmatpush.bf16.msra.mxu0 %v1907
    %2728 = vmatpush.bf16.msra.mxu0 %v1903
    %2729 = vmatpush.bf16.msra.mxu0 %v1899
    %2730 = vmatpush.bf16.msra.mxu0 %v1895
    %2731 = vmatpush.bf16.msra.mxu0 %v1891
    %2732 = vmatpush.bf16.msra.mxu0 %v1887
    %2733 = vmatpush.bf16.msra.mxu0 %v1883
    %2734 = vmatpush.bf16.msra.mxu0 %v1879
    %2735 = vmatmul.bf16.gmra.mxu0 %v2555
    %v2736 = vpop.f32.mrf.mxu0
    %v2737 = vadd.f32 0.0, %v2736
    %v2738 = vpop.f32.mrf.mxu0
    %2739 = vdwg.mxu0
    %2740 = vmatpush.bf16.msra.mxu0 %v1908
    %2741 = vmatpush.bf16.msra.mxu0 %v1904
    %2742 = vmatpush.bf16.msra.mxu0 %v1900
    %2743 = vmatpush.bf16.msra.mxu0 %v1896
    %2744 = vmatpush.bf16.msra.mxu0 %v1892
    %2745 = vmatpush.bf16.msra.mxu0 %v1888
    %2746 = vmatpush.bf16.msra.mxu0 %v1884
    %2747 = vmatpush.bf16.msra.mxu0 %v1880
    %2748 = vmatmul.bf16.gmra.mxu0 %v2555
    %v2749 = vpop.f32.mrf.mxu0
    %v2750 = vadd.f32 0.0, %v2749
    %v2751 = vpop.f32.mrf.mxu0
    %2752 = vdwg.mxu0
    %2753 = vmatpush.bf16.msra.mxu0 %v1909
    %2754 = vmatpush.bf16.msra.mxu0 %v1905
    %2755 = vmatpush.bf16.msra.mxu0 %v1901
    %2756 = vmatpush.bf16.msra.mxu0 %v1897
    %2757 = vmatpush.bf16.msra.mxu0 %v1893
    %2758 = vmatpush.bf16.msra.mxu0 %v1889
    %2759 = vmatpush.bf16.msra.mxu0 %v1885
    %2760 = vmatpush.bf16.msra.mxu0 %v1881
    %2761 = vmatmul.bf16.gmra.mxu0 %v2555
    %v2762 = vpop.f32.mrf.mxu0
    %v2763 = vadd.f32 0.0, %v2762
    %v2764 = vpop.f32.mrf.mxu0
    %2765 = vdwg.mxu0
    %2766 = vmatpush.bf16.msra.mxu0 %v1910
    %2767 = vmatpush.bf16.msra.mxu0 %v1906
    %2768 = vmatpush.bf16.msra.mxu0 %v1902
    %2769 = vmatpush.bf16.msra.mxu0 %v1898
    %2770 = vmatpush.bf16.msra.mxu0 %v1894
    %2771 = vmatpush.bf16.msra.mxu0 %v1890
    %2772 = vmatpush.bf16.msra.mxu0 %v1886
    %2773 = vmatpush.bf16.msra.mxu0 %v1882
    %2774 = vmatmul.bf16.gmra.mxu0 %v2555
    %v2775 = vpop.f32.mrf.mxu0
    %v2776 = vadd.f32 0.0, %v2775
    %v2777 = vpop.f32.mrf.mxu0
    %2778 = vdwg.mxu0
    %v2779 = vadd.f32 %v1306, %v2737
    %v2780 = vadd.f32 %v1334, %v2750
    %v2781 = vadd.f32 %v1363, %v2763
    %v2782 = vadd.f32 %v1392, %v2776
    %v2783 = vadd.f32 %v2779, %v1407
    %v2784 = vadd.f32 %v2780, %v1408
    %v2785 = vadd.f32 %v2781, %v1409
    %v2786 = vadd.f32 %v2782, %v1410
    %v2787 = vxor.u32 %v2783, 2147483648
    %v2788 = vmul.f32 %v2787, 1.442695
    %v2789 = vpow.pop %v2788
    %v2790 = vadd.f32 %v2789, 1.0
    %v2791 = vrcp.pop %v2790
    %v2792 = vmul.f32 %v2790, %v2791
    %v2793 = vsub.f32 1.0, %v2792
    %v2794 = vmul.f32 %v2791, %v2793
    %v2795 = vadd.f32 %v2791, %v2794
    %vm2796 = vweird.f32 %v2790
    %vm2797 = vweird.f32 %v2791
    %vm2798 = vmor %vm2796, %vm2797
    %v2799 = vsel %vm2798, %v2791, %v2795
    %v2800 = vand.u32 2147483647, %v2790
    %vm2801 = vcmp.eq.f32.partialorder %v2800, 8.507059e+37
    %v2802 = vand.u32 %v2790, 2147483648
    %v2803 = vor.u32 1.1754944e-38, %v2802
    %v2804 = vsel %vm2801, %v2803, %v2799
    %v2805 = vmul.f32 1.0, %v2804
    %v2806 = vxor.u32 %v2784, 2147483648
    %v2807 = vmul.f32 %v2806, 1.442695
    %v2808 = vpow.pop %v2807
    %v2809 = vadd.f32 %v2808, 1.0
    %v2810 = vrcp.pop %v2809
    %v2811 = vmul.f32 %v2809, %v2810
    %v2812 = vsub.f32 1.0, %v2811
    %v2813 = vmul.f32 %v2810, %v2812
    %v2814 = vadd.f32 %v2810, %v2813
    %vm2815 = vweird.f32 %v2809
    %vm2816 = vweird.f32 %v2810
    %vm2817 = vmor %vm2815, %vm2816
    %v2818 = vsel %vm2817, %v2810, %v2814
    %v2819 = vand.u32 2147483647, %v2809
    %vm2820 = vcmp.eq.f32.partialorder %v2819, 8.507059e+37
    %v2821 = vand.u32 %v2809, 2147483648
    %v2822 = vor.u32 1.1754944e-38, %v2821
    %v2823 = vsel %vm2820, %v2822, %v2818
    %v2824 = vmul.f32 1.0, %v2823
    %v2825 = vtanh.pop %v2785
    %v2826 = vxor.u32 %v2786, 2147483648
    %v2827 = vmul.f32 %v2826, 1.442695
    %v2828 = vpow.pop %v2827
    %v2829 = vadd.f32 %v2828, 1.0
    %v2830 = vrcp.pop %v2829
    %v2831 = vmul.f32 %v2829, %v2830
    %v2832 = vsub.f32 1.0, %v2831
    %v2833 = vmul.f32 %v2830, %v2832
    %v2834 = vadd.f32 %v2830, %v2833
    %vm2835 = vweird.f32 %v2829
    %vm2836 = vweird.f32 %v2830
    %vm2837 = vmor %vm2835, %vm2836
    %v2838 = vsel %vm2837, %v2830, %v2834
    %v2839 = vand.u32 2147483647, %v2829
    %vm2840 = vcmp.eq.f32.partialorder %v2839, 8.507059e+37
    %v2841 = vand.u32 %v2829, 2147483648
    %v2842 = vor.u32 1.1754944e-38, %v2841
    %v2843 = vsel %vm2840, %v2842, %v2838
    %v2844 = vmul.f32 1.0, %v2843
    %v2845 = vmul.f32 %v2824, %v2551
    %v2846 = vmul.f32 %v2805, %v2825
    %v2847 = vadd.f32 %v2845, %v2846
    %v2848 = vtanh.pop %v2847
    %v2849 = vmul.f32 %v2844, %v2848
    %v2850 = vpack.c.bf16 %v2726, %v2726
    %v2851 = vpack.c.bf16 %v2849, %v2849
    %2852 = vmatpush.bf16.msra.mxu0 %v1607
    %2853 = vmatpush.bf16.msra.mxu0 %v1604
    %2854 = vmatpush.bf16.msra.mxu0 %v1601
    %2855 = vmatpush.bf16.msra.mxu0 %v1598
    %2856 = vmatpush.bf16.msra.mxu0 %v1595
    %2857 = vmatpush.bf16.msra.mxu0 %v1592
    %2858 = vmatpush.bf16.msra.mxu0 %v1589
    %2859 = vmatpush.bf16.msra.mxu0 %v1586
    %2860 = vmatmul.bf16.gmra.mxu0 %v2851
    %v2861 = vpop.f32.mrf.mxu0
    %v2862 = vadd.f32 0.0, %v2861
    %v2863 = vpop.f32.mrf.mxu0
    %2864 = vdwg.mxu0
    %2865 = vmatpush.bf16.msra.mxu0 %v2091
    %2866 = vmatpush.bf16.msra.mxu0 %v2090
    %2867 = vmatpush.bf16.msra.mxu0 %v2089
    %2868 = vmatpush.bf16.msra.mxu0 %v2088
    %2869 = vmatpush.bf16.msra.mxu0 %v2087
    %2870 = vmatpush.bf16.msra.mxu0 %v2086
    %2871 = vmatpush.bf16.msra.mxu0 %v2085
    %2872 = vmatpush.bf16.msra.mxu0 %v2084
    %2873 = vmatmul.bf16.gmra.mxu0 %v2851
    %v2874 = vpop.f32.mrf.mxu0
    %v2875 = vadd.f32 0.0, %v2874
    %v2876 = vpop.f32.mrf.mxu0
    %2877 = vdwg.mxu0
    %2878 = vmatpush.bf16.msra.mxu0 %v1608
    %2879 = vmatpush.bf16.msra.mxu0 %v1605
    %2880 = vmatpush.bf16.msra.mxu0 %v1602
    %2881 = vmatpush.bf16.msra.mxu0 %v1599
    %2882 = vmatpush.bf16.msra.mxu0 %v1596
    %2883 = vmatpush.bf16.msra.mxu0 %v1593
    %2884 = vmatpush.bf16.msra.mxu0 %v1590
    %2885 = vmatpush.bf16.msra.mxu0 %v1587
    %2886 = vmatmul.bf16.gmra.mxu0 %v2851
    %v2887 = vpop.f32.mrf.mxu0
    %v2888 = vadd.f32 0.0, %v2887
    %v2889 = vpop.f32.mrf.mxu0
    %2890 = vdwg.mxu0
    %2891 = vmatpush.bf16.msra.mxu0 %v1609
    %2892 = vmatpush.bf16.msra.mxu0 %v1606
    %2893 = vmatpush.bf16.msra.mxu0 %v1603
    %2894 = vmatpush.bf16.msra.mxu0 %v1600
    %2895 = vmatpush.bf16.msra.mxu0 %v1597
    %2896 = vmatpush.bf16.msra.mxu0 %v1594
    %2897 = vmatpush.bf16.msra.mxu0 %v1591
    %2898 = vmatpush.bf16.msra.mxu0 %v1588
    %2899 = vmatmul.bf16.gmra.mxu0 %v2851
    %v2900 = vpop.f32.mrf.mxu0
    %v2901 = vadd.f32 0.0, %v2900
    %v2902 = vpop.f32.mrf.mxu0
    %2903 = vdwg.mxu0
    %2904 = vmatpush.bf16.msra.mxu0 %v2276
    %2905 = vmatpush.bf16.msra.mxu0 %v2272
    %2906 = vmatpush.bf16.msra.mxu0 %v2268
    %2907 = vmatpush.bf16.msra.mxu0 %v2264
    %2908 = vmatpush.bf16.msra.mxu0 %v2260
    %2909 = vmatpush.bf16.msra.mxu0 %v2256
    %2910 = vmatpush.bf16.msra.mxu0 %v2252
    %2911 = vmatpush.bf16.msra.mxu0 %v2248
    %2912 = vmatmul.bf16.gmra.mxu0 %v2850
    %v2913 = vpop.f32.mrf.mxu0
    %v2914 = vadd.f32 %v2862, %v2913
    %v2915 = vpop.f32.mrf.mxu0
    %2916 = vdwg.mxu0
    %2917 = vmatpush.bf16.msra.mxu0 %v2277
    %2918 = vmatpush.bf16.msra.mxu0 %v2273
    %2919 = vmatpush.bf16.msra.mxu0 %v2269
    %2920 = vmatpush.bf16.msra.mxu0 %v2265
    %2921 = vmatpush.bf16.msra.mxu0 %v2261
    %2922 = vmatpush.bf16.msra.mxu0 %v2257
    %2923 = vmatpush.bf16.msra.mxu0 %v2253
    %2924 = vmatpush.bf16.msra.mxu0 %v2249
    %2925 = vmatmul.bf16.gmra.mxu0 %v2850
    %v2926 = vpop.f32.mrf.mxu0
    %v2927 = vadd.f32 %v2875, %v2926
    %v2928 = vpop.f32.mrf.mxu0
    %2929 = vdwg.mxu0
    %2930 = vmatpush.bf16.msra.mxu0 %v2278
    %2931 = vmatpush.bf16.msra.mxu0 %v2274
    %2932 = vmatpush.bf16.msra.mxu0 %v2270
    %2933 = vmatpush.bf16.msra.mxu0 %v2266
    %2934 = vmatpush.bf16.msra.mxu0 %v2262
    %2935 = vmatpush.bf16.msra.mxu0 %v2258
    %2936 = vmatpush.bf16.msra.mxu0 %v2254
    %2937 = vmatpush.bf16.msra.mxu0 %v2250
    %2938 = vmatmul.bf16.gmra.mxu0 %v2850
    %v2939 = vpop.f32.mrf.mxu0
    %v2940 = vadd.f32 %v2888, %v2939
    %v2941 = vpop.f32.mrf.mxu0
    %2942 = vdwg.mxu0
    %2943 = vmatpush.bf16.msra.mxu0 %v2279
    %2944 = vmatpush.bf16.msra.mxu0 %v2275
    %2945 = vmatpush.bf16.msra.mxu0 %v2271
    %2946 = vmatpush.bf16.msra.mxu0 %v2267
    %2947 = vmatpush.bf16.msra.mxu0 %v2263
    %2948 = vmatpush.bf16.msra.mxu0 %v2259
    %2949 = vmatpush.bf16.msra.mxu0 %v2255
    %2950 = vmatpush.bf16.msra.mxu0 %v2251
    %2951 = vmatmul.bf16.gmra.mxu0 %v2850
    %v2952 = vpop.f32.mrf.mxu0
    %v2953 = vadd.f32 %v2901, %v2952
    %v2954 = vpop.f32.mrf.mxu0
    %2955 = vdwg.mxu0
    %v2956 = vadd.f32 %v2914, %v1498
    %v2957 = vadd.f32 %v2927, %v1499
    %v2958 = vadd.f32 %v2940, %v1500
    %v2959 = vadd.f32 %v2953, %v1501
    %v2960 = vxor.u32 %v2956, 2147483648
    %v2961 = vmul.f32 %v2960, 1.442695
    %v2962 = vpow.pop %v2961
    %v2963 = vadd.f32 %v2962, 1.0
    %v2964 = vrcp.pop %v2963
    %v2965 = vmul.f32 %v2963, %v2964
    %v2966 = vsub.f32 1.0, %v2965
    %v2967 = vmul.f32 %v2964, %v2966
    %v2968 = vadd.f32 %v2964, %v2967
    %vm2969 = vweird.f32 %v2963
    %vm2970 = vweird.f32 %v2964
    %vm2971 = vmor %vm2969, %vm2970
    %v2972 = vsel %vm2971, %v2964, %v2968
    %v2973 = vand.u32 2147483647, %v2963
    %vm2974 = vcmp.eq.f32.partialorder %v2973, 8.507059e+37
    %v2975 = vand.u32 %v2963, 2147483648
    %v2976 = vor.u32 1.1754944e-38, %v2975
    %v2977 = vsel %vm2974, %v2976, %v2972
    %v2978 = vmul.f32 1.0, %v2977
    %v2979 = vxor.u32 %v2957, 2147483648
    %v2980 = vmul.f32 %v2979, 1.442695
    %v2981 = vpow.pop %v2980
    %v2982 = vadd.f32 %v2981, 1.0
    %v2983 = vrcp.pop %v2982
    %v2984 = vmul.f32 %v2982, %v2983
    %v2985 = vsub.f32 1.0, %v2984
    %v2986 = vmul.f32 %v2983, %v2985
    %v2987 = vadd.f32 %v2983, %v2986
    %vm2988 = vweird.f32 %v2982
    %vm2989 = vweird.f32 %v2983
    %vm2990 = vmor %vm2988, %vm2989
    %v2991 = vsel %vm2990, %v2983, %v2987
    %v2992 = vand.u32 2147483647, %v2982
    %vm2993 = vcmp.eq.f32.partialorder %v2992, 8.507059e+37
    %v2994 = vand.u32 %v2982, 2147483648
    %v2995 = vor.u32 1.1754944e-38, %v2994
    %v2996 = vsel %vm2993, %v2995, %v2991
    %v2997 = vmul.f32 1.0, %v2996
    %v2998 = vtanh.pop %v2958
    %v2999 = vxor.u32 %v2959, 2147483648
    %v3000 = vmul.f32 %v2999, 1.442695
    %v3001 = vpow.pop %v3000
    %v3002 = vadd.f32 %v3001, 1.0
    %v3003 = vrcp.pop %v3002
    %v3004 = vmul.f32 %v3002, %v3003
    %v3005 = vsub.f32 1.0, %v3004
    %v3006 = vmul.f32 %v3003, %v3005
    %v3007 = vadd.f32 %v3003, %v3006
    %vm3008 = vweird.f32 %v3002
    %vm3009 = vweird.f32 %v3003
    %vm3010 = vmor %vm3008, %vm3009
    %v3011 = vsel %vm3010, %v3003, %v3007
    %v3012 = vand.u32 2147483647, %v3002
    %vm3013 = vcmp.eq.f32.partialorder %v3012, 8.507059e+37
    %v3014 = vand.u32 %v3002, 2147483648
    %v3015 = vor.u32 1.1754944e-38, %v3014
    %v3016 = vsel %vm3013, %v3015, %v3011
    %v3017 = vmul.f32 1.0, %v3016
    %v3018 = vmul.f32 %v2997, %v2724
    %v3019 = vmul.f32 %v2978, %v2998
    %v3020 = vadd.f32 %v3018, %v3019
    %v3021 = vtanh.pop %v3020
    %v3022 = vmul.f32 %v3017, %v3021
    %3023 = vmatpush.bf16.msra.mxu0 %v1907
    %3024 = vmatpush.bf16.msra.mxu0 %v1903
    %3025 = vmatpush.bf16.msra.mxu0 %v1899
    %3026 = vmatpush.bf16.msra.mxu0 %v1895
    %3027 = vmatpush.bf16.msra.mxu0 %v1891
    %3028 = vmatpush.bf16.msra.mxu0 %v1887
    %3029 = vmatpush.bf16.msra.mxu0 %v1883
    %3030 = vmatpush.bf16.msra.mxu0 %v1879
    %3031 = vmatmul.bf16.gmra.mxu0 %v2851
    %v3032 = vpop.f32.mrf.mxu0
    %v3033 = vadd.f32 0.0, %v3032
    %v3034 = vpop.f32.mrf.mxu0
    %3035 = vdwg.mxu0
    %3036 = vmatpush.bf16.msra.mxu0 %v1908
    %3037 = vmatpush.bf16.msra.mxu0 %v1904
    %3038 = vmatpush.bf16.msra.mxu0 %v1900
    %3039 = vmatpush.bf16.msra.mxu0 %v1896
    %3040 = vmatpush.bf16.msra.mxu0 %v1892
    %3041 = vmatpush.bf16.msra.mxu0 %v1888
    %3042 = vmatpush.bf16.msra.mxu0 %v1884
    %3043 = vmatpush.bf16.msra.mxu0 %v1880
    %3044 = vmatmul.bf16.gmra.mxu0 %v2851
    %v3045 = vpop.f32.mrf.mxu0
    %v3046 = vadd.f32 0.0, %v3045
    %v3047 = vpop.f32.mrf.mxu0
    %3048 = vdwg.mxu0
    %3049 = vmatpush.bf16.msra.mxu0 %v1909
    %3050 = vmatpush.bf16.msra.mxu0 %v1905
    %3051 = vmatpush.bf16.msra.mxu0 %v1901
    %3052 = vmatpush.bf16.msra.mxu0 %v1897
    %3053 = vmatpush.bf16.msra.mxu0 %v1893
    %3054 = vmatpush.bf16.msra.mxu0 %v1889
    %3055 = vmatpush.bf16.msra.mxu0 %v1885
    %3056 = vmatpush.bf16.msra.mxu0 %v1881
    %3057 = vmatmul.bf16.gmra.mxu0 %v2851
    %v3058 = vpop.f32.mrf.mxu0
    %v3059 = vadd.f32 0.0, %v3058
    %v3060 = vpop.f32.mrf.mxu0
    %3061 = vdwg.mxu0
    %3062 = vmatpush.bf16.msra.mxu0 %v1910
    %3063 = vmatpush.bf16.msra.mxu0 %v1906
    %3064 = vmatpush.bf16.msra.mxu0 %v1902
    %3065 = vmatpush.bf16.msra.mxu0 %v1898
    %3066 = vmatpush.bf16.msra.mxu0 %v1894
    %3067 = vmatpush.bf16.msra.mxu0 %v1890
    %3068 = vmatpush.bf16.msra.mxu0 %v1886
    %3069 = vmatpush.bf16.msra.mxu0 %v1882
    %3070 = vmatmul.bf16.gmra.mxu0 %v2851
    %v3071 = vpop.f32.mrf.mxu0
    %v3072 = vadd.f32 0.0, %v3071
    %v3073 = vpop.f32.mrf.mxu0
    %3074 = vdwg.mxu0
    %v3075 = vadd.f32 %v1309, %v3033
    %v3076 = vadd.f32 %v1337, %v3046
    %v3077 = vadd.f32 %v1366, %v3059
    %v3078 = vadd.f32 %v1395, %v3072
    %v3079 = vadd.f32 %v3075, %v1407
    %v3080 = vadd.f32 %v3076, %v1408
    %v3081 = vadd.f32 %v3077, %v1409
    %v3082 = vadd.f32 %v3078, %v1410
    %v3083 = vxor.u32 %v3079, 2147483648
    %v3084 = vmul.f32 %v3083, 1.442695
    %v3085 = vpow.pop %v3084
    %v3086 = vadd.f32 %v3085, 1.0
    %v3087 = vrcp.pop %v3086
    %v3088 = vmul.f32 %v3086, %v3087
    %v3089 = vsub.f32 1.0, %v3088
    %v3090 = vmul.f32 %v3087, %v3089
    %v3091 = vadd.f32 %v3087, %v3090
    %vm3092 = vweird.f32 %v3086
    %vm3093 = vweird.f32 %v3087
    %vm3094 = vmor %vm3092, %vm3093
    %v3095 = vsel %vm3094, %v3087, %v3091
    %v3096 = vand.u32 2147483647, %v3086
    %vm3097 = vcmp.eq.f32.partialorder %v3096, 8.507059e+37
    %v3098 = vand.u32 %v3086, 2147483648
    %v3099 = vor.u32 1.1754944e-38, %v3098
    %v3100 = vsel %vm3097, %v3099, %v3095
    %v3101 = vmul.f32 1.0, %v3100
    %v3102 = vxor.u32 %v3080, 2147483648
    %v3103 = vmul.f32 %v3102, 1.442695
    %v3104 = vpow.pop %v3103
    %v3105 = vadd.f32 %v3104, 1.0
    %v3106 = vrcp.pop %v3105
    %v3107 = vmul.f32 %v3105, %v3106
    %v3108 = vsub.f32 1.0, %v3107
    %v3109 = vmul.f32 %v3106, %v3108
    %v3110 = vadd.f32 %v3106, %v3109
    %vm3111 = vweird.f32 %v3105
    %vm3112 = vweird.f32 %v3106
    %vm3113 = vmor %vm3111, %vm3112
    %v3114 = vsel %vm3113, %v3106, %v3110
    %v3115 = vand.u32 2147483647, %v3105
    %vm3116 = vcmp.eq.f32.partialorder %v3115, 8.507059e+37
    %v3117 = vand.u32 %v3105, 2147483648
    %v3118 = vor.u32 1.1754944e-38, %v3117
    %v3119 = vsel %vm3116, %v3118, %v3114
    %v3120 = vmul.f32 1.0, %v3119
    %v3121 = vtanh.pop %v3081
    %v3122 = vxor.u32 %v3082, 2147483648
    %v3123 = vmul.f32 %v3122, 1.442695
    %v3124 = vpow.pop %v3123
    %v3125 = vadd.f32 %v3124, 1.0
    %v3126 = vrcp.pop %v3125
    %v3127 = vmul.f32 %v3125, %v3126
    %v3128 = vsub.f32 1.0, %v3127
    %v3129 = vmul.f32 %v3126, %v3128
    %v3130 = vadd.f32 %v3126, %v3129
    %vm3131 = vweird.f32 %v3125
    %vm3132 = vweird.f32 %v3126
    %vm3133 = vmor %vm3131, %vm3132
    %v3134 = vsel %vm3133, %v3126, %v3130
    %v3135 = vand.u32 2147483647, %v3125
    %vm3136 = vcmp.eq.f32.partialorder %v3135, 8.507059e+37
    %v3137 = vand.u32 %v3125, 2147483648
    %v3138 = vor.u32 1.1754944e-38, %v3137
    %v3139 = vsel %vm3136, %v3138, %v3134
    %v3140 = vmul.f32 1.0, %v3139
    %v3141 = vmul.f32 %v3120, %v2847
    %v3142 = vmul.f32 %v3101, %v3121
    %v3143 = vadd.f32 %v3141, %v3142
    %v3144 = vtanh.pop %v3143
    %v3145 = vmul.f32 %v3140, %v3144
    %v3146 = vpack.c.bf16 %v3022, %v3022
    %v3147 = vpack.c.bf16 %v3145, %v3145
    %3148 = vmatpush.bf16.msra.mxu0 %v1607
    %3149 = vmatpush.bf16.msra.mxu0 %v1604
    %3150 = vmatpush.bf16.msra.mxu0 %v1601
    %3151 = vmatpush.bf16.msra.mxu0 %v1598
    %3152 = vmatpush.bf16.msra.mxu0 %v1595
    %3153 = vmatpush.bf16.msra.mxu0 %v1592
    %3154 = vmatpush.bf16.msra.mxu0 %v1589
    %3155 = vmatpush.bf16.msra.mxu0 %v1586
    %3156 = vmatmul.bf16.gmra.mxu0 %v3147
    %v3157 = vpop.f32.mrf.mxu0
    %v3158 = vadd.f32 0.0, %v3157
    %v3159 = vpop.f32.mrf.mxu0
    %3160 = vdwg.mxu0
    %3161 = vmatpush.bf16.msra.mxu0 %v2091
    %3162 = vmatpush.bf16.msra.mxu0 %v2090
    %3163 = vmatpush.bf16.msra.mxu0 %v2089
    %3164 = vmatpush.bf16.msra.mxu0 %v2088
    %3165 = vmatpush.bf16.msra.mxu0 %v2087
    %3166 = vmatpush.bf16.msra.mxu0 %v2086
    %3167 = vmatpush.bf16.msra.mxu0 %v2085
    %3168 = vmatpush.bf16.msra.mxu0 %v2084
    %3169 = vmatmul.bf16.gmra.mxu0 %v3147
    %v3170 = vpop.f32.mrf.mxu0
    %v3171 = vadd.f32 0.0, %v3170
    %v3172 = vpop.f32.mrf.mxu0
    %3173 = vdwg.mxu0
    %3174 = vmatpush.bf16.msra.mxu0 %v1608
    %3175 = vmatpush.bf16.msra.mxu0 %v1605
    %3176 = vmatpush.bf16.msra.mxu0 %v1602
    %3177 = vmatpush.bf16.msra.mxu0 %v1599
    %3178 = vmatpush.bf16.msra.mxu0 %v1596
    %3179 = vmatpush.bf16.msra.mxu0 %v1593
    %3180 = vmatpush.bf16.msra.mxu0 %v1590
    %3181 = vmatpush.bf16.msra.mxu0 %v1587
    %3182 = vmatmul.bf16.gmra.mxu0 %v3147
    %v3183 = vpop.f32.mrf.mxu0
    %v3184 = vadd.f32 0.0, %v3183
    %v3185 = vpop.f32.mrf.mxu0
    %3186 = vdwg.mxu0
    %3187 = vmatpush.bf16.msra.mxu0 %v1609
    %3188 = vmatpush.bf16.msra.mxu0 %v1606
    %3189 = vmatpush.bf16.msra.mxu0 %v1603
    %3190 = vmatpush.bf16.msra.mxu0 %v1600
    %3191 = vmatpush.bf16.msra.mxu0 %v1597
    %3192 = vmatpush.bf16.msra.mxu0 %v1594
    %3193 = vmatpush.bf16.msra.mxu0 %v1591
    %3194 = vmatpush.bf16.msra.mxu0 %v1588
    %3195 = vmatmul.bf16.gmra.mxu0 %v3147
    %v3196 = vpop.f32.mrf.mxu0
    %v3197 = vadd.f32 0.0, %v3196
    %v3198 = vpop.f32.mrf.mxu0
    %3199 = vdwg.mxu0
    %3200 = vmatpush.bf16.msra.mxu0 %v2276
    %3201 = vmatpush.bf16.msra.mxu0 %v2272
    %3202 = vmatpush.bf16.msra.mxu0 %v2268
    %3203 = vmatpush.bf16.msra.mxu0 %v2264
    %3204 = vmatpush.bf16.msra.mxu0 %v2260
    %3205 = vmatpush.bf16.msra.mxu0 %v2256
    %3206 = vmatpush.bf16.msra.mxu0 %v2252
    %3207 = vmatpush.bf16.msra.mxu0 %v2248
    %3208 = vmatmul.bf16.gmra.mxu0 %v3146
    %v3209 = vpop.f32.mrf.mxu0
    %v3210 = vadd.f32 %v3158, %v3209
    %v3211 = vpop.f32.mrf.mxu0
    %3212 = vdwg.mxu0
    %3213 = vmatpush.bf16.msra.mxu0 %v2277
    %3214 = vmatpush.bf16.msra.mxu0 %v2273
    %3215 = vmatpush.bf16.msra.mxu0 %v2269
    %3216 = vmatpush.bf16.msra.mxu0 %v2265
    %3217 = vmatpush.bf16.msra.mxu0 %v2261
    %3218 = vmatpush.bf16.msra.mxu0 %v2257
    %3219 = vmatpush.bf16.msra.mxu0 %v2253
    %3220 = vmatpush.bf16.msra.mxu0 %v2249
    %3221 = vmatmul.bf16.gmra.mxu0 %v3146
    %v3222 = vpop.f32.mrf.mxu0
    %v3223 = vadd.f32 %v3171, %v3222
    %v3224 = vpop.f32.mrf.mxu0
    %3225 = vdwg.mxu0
    %3226 = vmatpush.bf16.msra.mxu0 %v2278
    %3227 = vmatpush.bf16.msra.mxu0 %v2274
    %3228 = vmatpush.bf16.msra.mxu0 %v2270
    %3229 = vmatpush.bf16.msra.mxu0 %v2266
    %3230 = vmatpush.bf16.msra.mxu0 %v2262
    %3231 = vmatpush.bf16.msra.mxu0 %v2258
    %3232 = vmatpush.bf16.msra.mxu0 %v2254
    %3233 = vmatpush.bf16.msra.mxu0 %v2250
    %3234 = vmatmul.bf16.gmra.mxu0 %v3146
    %v3235 = vpop.f32.mrf.mxu0
    %v3236 = vadd.f32 %v3184, %v3235
    %v3237 = vpop.f32.mrf.mxu0
    %3238 = vdwg.mxu0
    %3239 = vmatpush.bf16.msra.mxu0 %v2279
    %3240 = vmatpush.bf16.msra.mxu0 %v2275
    %3241 = vmatpush.bf16.msra.mxu0 %v2271
    %3242 = vmatpush.bf16.msra.mxu0 %v2267
    %3243 = vmatpush.bf16.msra.mxu0 %v2263
    %3244 = vmatpush.bf16.msra.mxu0 %v2259
    %3245 = vmatpush.bf16.msra.mxu0 %v2255
    %3246 = vmatpush.bf16.msra.mxu0 %v2251
    %3247 = vmatmul.bf16.gmra.mxu0 %v3146
    %v3248 = vpop.f32.mrf.mxu0
    %v3249 = vadd.f32 %v3197, %v3248
    %v3250 = vpop.f32.mrf.mxu0
    %3251 = vdwg.mxu0
    %v3252 = vadd.f32 %v3210, %v1498
    %v3253 = vadd.f32 %v3223, %v1499
    %v3254 = vadd.f32 %v3236, %v1500
    %v3255 = vadd.f32 %v3249, %v1501
    %v3256 = vxor.u32 %v3252, 2147483648
    %v3257 = vmul.f32 %v3256, 1.442695
    %v3258 = vpow.pop %v3257
    %v3259 = vadd.f32 %v3258, 1.0
    %v3260 = vrcp.pop %v3259
    %v3261 = vmul.f32 %v3259, %v3260
    %v3262 = vsub.f32 1.0, %v3261
    %v3263 = vmul.f32 %v3260, %v3262
    %v3264 = vadd.f32 %v3260, %v3263
    %vm3265 = vweird.f32 %v3259
    %vm3266 = vweird.f32 %v3260
    %vm3267 = vmor %vm3265, %vm3266
    %v3268 = vsel %vm3267, %v3260, %v3264
    %v3269 = vand.u32 2147483647, %v3259
    %vm3270 = vcmp.eq.f32.partialorder %v3269, 8.507059e+37
    %v3271 = vand.u32 %v3259, 2147483648
    %v3272 = vor.u32 1.1754944e-38, %v3271
    %v3273 = vsel %vm3270, %v3272, %v3268
    %v3274 = vmul.f32 1.0, %v3273
    %v3275 = vxor.u32 %v3253, 2147483648
    %v3276 = vmul.f32 %v3275, 1.442695
    %v3277 = vpow.pop %v3276
    %v3278 = vadd.f32 %v3277, 1.0
    %v3279 = vrcp.pop %v3278
    %v3280 = vmul.f32 %v3278, %v3279
    %v3281 = vsub.f32 1.0, %v3280
    %v3282 = vmul.f32 %v3279, %v3281
    %v3283 = vadd.f32 %v3279, %v3282
    %vm3284 = vweird.f32 %v3278
    %vm3285 = vweird.f32 %v3279
    %vm3286 = vmor %vm3284, %vm3285
    %v3287 = vsel %vm3286, %v3279, %v3283
    %v3288 = vand.u32 2147483647, %v3278
    %vm3289 = vcmp.eq.f32.partialorder %v3288, 8.507059e+37
    %v3290 = vand.u32 %v3278, 2147483648
    %v3291 = vor.u32 1.1754944e-38, %v3290
    %v3292 = vsel %vm3289, %v3291, %v3287
    %v3293 = vmul.f32 1.0, %v3292
    %v3294 = vtanh.pop %v3254
    %v3295 = vxor.u32 %v3255, 2147483648
    %v3296 = vmul.f32 %v3295, 1.442695
    %v3297 = vpow.pop %v3296
    %v3298 = vadd.f32 %v3297, 1.0
    %v3299 = vrcp.pop %v3298
    %v3300 = vmul.f32 %v3298, %v3299
    %v3301 = vsub.f32 1.0, %v3300
    %v3302 = vmul.f32 %v3299, %v3301
    %v3303 = vadd.f32 %v3299, %v3302
    %vm3304 = vweird.f32 %v3298
    %vm3305 = vweird.f32 %v3299
    %vm3306 = vmor %vm3304, %vm3305
    %v3307 = vsel %vm3306, %v3299, %v3303
    %v3308 = vand.u32 2147483647, %v3298
    %vm3309 = vcmp.eq.f32.partialorder %v3308, 8.507059e+37
    %v3310 = vand.u32 %v3298, 2147483648
    %v3311 = vor.u32 1.1754944e-38, %v3310
    %v3312 = vsel %vm3309, %v3311, %v3307
    %v3313 = vmul.f32 1.0, %v3312
    %v3314 = vmul.f32 %v3293, %v3020
    %v3315 = vmul.f32 %v3274, %v3294
    %v3316 = vadd.f32 %v3314, %v3315
    %v3317 = vtanh.pop %v3316
    %v3318 = vmul.f32 %v3313, %v3317
    %3319 = vmatpush.bf16.msra.mxu0 %v1907
    %3320 = vmatpush.bf16.msra.mxu0 %v1903
    %3321 = vmatpush.bf16.msra.mxu0 %v1899
    %3322 = vmatpush.bf16.msra.mxu0 %v1895
    %3323 = vmatpush.bf16.msra.mxu0 %v1891
    %3324 = vmatpush.bf16.msra.mxu0 %v1887
    %3325 = vmatpush.bf16.msra.mxu0 %v1883
    %3326 = vmatpush.bf16.msra.mxu0 %v1879
    %3327 = vmatmul.bf16.gmra.mxu0 %v3147
    %v3328 = vpop.f32.mrf.mxu0
    %v3329 = vadd.f32 0.0, %v3328
    %v3330 = vpop.f32.mrf.mxu0
    %3331 = vdwg.mxu0
    %3332 = vmatpush.bf16.msra.mxu0 %v1908
    %3333 = vmatpush.bf16.msra.mxu0 %v1904
    %3334 = vmatpush.bf16.msra.mxu0 %v1900
    %3335 = vmatpush.bf16.msra.mxu0 %v1896
    %3336 = vmatpush.bf16.msra.mxu0 %v1892
    %3337 = vmatpush.bf16.msra.mxu0 %v1888
    %3338 = vmatpush.bf16.msra.mxu0 %v1884
    %3339 = vmatpush.bf16.msra.mxu0 %v1880
    %3340 = vmatmul.bf16.gmra.mxu0 %v3147
    %v3341 = vpop.f32.mrf.mxu0
    %v3342 = vadd.f32 0.0, %v3341
    %v3343 = vpop.f32.mrf.mxu0
    %3344 = vdwg.mxu0
    %3345 = vmatpush.bf16.msra.mxu0 %v1909
    %3346 = vmatpush.bf16.msra.mxu0 %v1905
    %3347 = vmatpush.bf16.msra.mxu0 %v1901
    %3348 = vmatpush.bf16.msra.mxu0 %v1897
    %3349 = vmatpush.bf16.msra.mxu0 %v1893
    %3350 = vmatpush.bf16.msra.mxu0 %v1889
    %3351 = vmatpush.bf16.msra.mxu0 %v1885
    %3352 = vmatpush.bf16.msra.mxu0 %v1881
    %3353 = vmatmul.bf16.gmra.mxu0 %v3147
    %v3354 = vpop.f32.mrf.mxu0
    %v3355 = vadd.f32 0.0, %v3354
    %v3356 = vpop.f32.mrf.mxu0
    %3357 = vdwg.mxu0
    %3358 = vmatpush.bf16.msra.mxu0 %v1910
    %3359 = vmatpush.bf16.msra.mxu0 %v1906
    %3360 = vmatpush.bf16.msra.mxu0 %v1902
    %3361 = vmatpush.bf16.msra.mxu0 %v1898
    %3362 = vmatpush.bf16.msra.mxu0 %v1894
    %3363 = vmatpush.bf16.msra.mxu0 %v1890
    %3364 = vmatpush.bf16.msra.mxu0 %v1886
    %3365 = vmatpush.bf16.msra.mxu0 %v1882
    %3366 = vmatmul.bf16.gmra.mxu0 %v3147
    %v3367 = vpop.f32.mrf.mxu0
    %v3368 = vadd.f32 0.0, %v3367
    %v3369 = vpop.f32.mrf.mxu0
    %3370 = vdwg.mxu0
    %v3371 = vadd.f32 %v1311, %v3329
    %v3372 = vadd.f32 %v1339, %v3342
    %v3373 = vadd.f32 %v1368, %v3355
    %v3374 = vadd.f32 %v1397, %v3368
    %v3375 = vadd.f32 %v3371, %v1407
    %v3376 = vadd.f32 %v3372, %v1408
    %v3377 = vadd.f32 %v3373, %v1409
    %v3378 = vadd.f32 %v3374, %v1410
    %v3379 = vxor.u32 %v3375, 2147483648
    %v3380 = vmul.f32 %v3379, 1.442695
    %v3381 = vpow.pop %v3380
    %v3382 = vadd.f32 %v3381, 1.0
    %v3383 = vrcp.pop %v3382
    %v3384 = vmul.f32 %v3382, %v3383
    %v3385 = vsub.f32 1.0, %v3384
    %v3386 = vmul.f32 %v3383, %v3385
    %v3387 = vadd.f32 %v3383, %v3386
    %vm3388 = vweird.f32 %v3382
    %vm3389 = vweird.f32 %v3383
    %vm3390 = vmor %vm3388, %vm3389
    %v3391 = vsel %vm3390, %v3383, %v3387
    %v3392 = vand.u32 2147483647, %v3382
    %vm3393 = vcmp.eq.f32.partialorder %v3392, 8.507059e+37
    %v3394 = vand.u32 %v3382, 2147483648
    %v3395 = vor.u32 1.1754944e-38, %v3394
    %v3396 = vsel %vm3393, %v3395, %v3391
    %v3397 = vmul.f32 1.0, %v3396
    %v3398 = vxor.u32 %v3376, 2147483648
    %v3399 = vmul.f32 %v3398, 1.442695
    %v3400 = vpow.pop %v3399
    %v3401 = vadd.f32 %v3400, 1.0
    %v3402 = vrcp.pop %v3401
    %v3403 = vmul.f32 %v3401, %v3402
    %v3404 = vsub.f32 1.0, %v3403
    %v3405 = vmul.f32 %v3402, %v3404
    %v3406 = vadd.f32 %v3402, %v3405
    %vm3407 = vweird.f32 %v3401
    %vm3408 = vweird.f32 %v3402
    %vm3409 = vmor %vm3407, %vm3408
    %v3410 = vsel %vm3409, %v3402, %v3406
    %v3411 = vand.u32 2147483647, %v3401
    %vm3412 = vcmp.eq.f32.partialorder %v3411, 8.507059e+37
    %v3413 = vand.u32 %v3401, 2147483648
    %v3414 = vor.u32 1.1754944e-38, %v3413
    %v3415 = vsel %vm3412, %v3414, %v3410
    %v3416 = vmul.f32 1.0, %v3415
    %v3417 = vtanh.pop %v3377
    %v3418 = vxor.u32 %v3378, 2147483648
    %v3419 = vmul.f32 %v3418, 1.442695
    %v3420 = vpow.pop %v3419
    %v3421 = vadd.f32 %v3420, 1.0
    %v3422 = vrcp.pop %v3421
    %v3423 = vmul.f32 %v3421, %v3422
    %v3424 = vsub.f32 1.0, %v3423
    %v3425 = vmul.f32 %v3422, %v3424
    %v3426 = vadd.f32 %v3422, %v3425
    %vm3427 = vweird.f32 %v3421
    %vm3428 = vweird.f32 %v3422
    %vm3429 = vmor %vm3427, %vm3428
    %v3430 = vsel %vm3429, %v3422, %v3426
    %v3431 = vand.u32 2147483647, %v3421
    %vm3432 = vcmp.eq.f32.partialorder %v3431, 8.507059e+37
    %v3433 = vand.u32 %v3421, 2147483648
    %v3434 = vor.u32 1.1754944e-38, %v3433
    %v3435 = vsel %vm3432, %v3434, %v3430
    %v3436 = vmul.f32 1.0, %v3435
    %v3437 = vmul.f32 %v3416, %v3143
    %v3438 = vmul.f32 %v3397, %v3417
    %v3439 = vadd.f32 %v3437, %v3438
    %v3440 = vtanh.pop %v3439
    %v3441 = vmul.f32 %v3436, %v3440
    %v3442 = vpack.c.bf16 %v3318, %v3318
    %v3443 = vpack.c.bf16 %v3441, %v3441
    %3444 = vmatpush.bf16.msra.mxu0 %v1607
    %3445 = vmatpush.bf16.msra.mxu0 %v1604
    %3446 = vmatpush.bf16.msra.mxu0 %v1601
    %3447 = vmatpush.bf16.msra.mxu0 %v1598
    %3448 = vmatpush.bf16.msra.mxu0 %v1595
    %3449 = vmatpush.bf16.msra.mxu0 %v1592
    %3450 = vmatpush.bf16.msra.mxu0 %v1589
    %3451 = vmatpush.bf16.msra.mxu0 %v1586
    %3452 = vmatmul.bf16.gmra.mxu0 %v3443
    %v3453 = vpop.f32.mrf.mxu0
    %v3454 = vadd.f32 0.0, %v3453
    %v3455 = vpop.f32.mrf.mxu0
    %3456 = vdwg.mxu0
    %3457 = vmatpush.bf16.msra.mxu0 %v2091
    %3458 = vmatpush.bf16.msra.mxu0 %v2090
    %3459 = vmatpush.bf16.msra.mxu0 %v2089
    %3460 = vmatpush.bf16.msra.mxu0 %v2088
    %3461 = vmatpush.bf16.msra.mxu0 %v2087
    %3462 = vmatpush.bf16.msra.mxu0 %v2086
    %3463 = vmatpush.bf16.msra.mxu0 %v2085
    %3464 = vmatpush.bf16.msra.mxu0 %v2084
    %3465 = vmatmul.bf16.gmra.mxu0 %v3443
    %v3466 = vpop.f32.mrf.mxu0
    %v3467 = vadd.f32 0.0, %v3466
    %v3468 = vpop.f32.mrf.mxu0
    %3469 = vdwg.mxu0
    %3470 = vmatpush.bf16.msra.mxu0 %v1608
    %3471 = vmatpush.bf16.msra.mxu0 %v1605
    %3472 = vmatpush.bf16.msra.mxu0 %v1602
    %3473 = vmatpush.bf16.msra.mxu0 %v1599
    %3474 = vmatpush.bf16.msra.mxu0 %v1596
    %3475 = vmatpush.bf16.msra.mxu0 %v1593
    %3476 = vmatpush.bf16.msra.mxu0 %v1590
    %3477 = vmatpush.bf16.msra.mxu0 %v1587
    %3478 = vmatmul.bf16.gmra.mxu0 %v3443
    %v3479 = vpop.f32.mrf.mxu0
    %v3480 = vadd.f32 0.0, %v3479
    %v3481 = vpop.f32.mrf.mxu0
    %3482 = vdwg.mxu0
    %3483 = vmatpush.bf16.msra.mxu0 %v1609
    %3484 = vmatpush.bf16.msra.mxu0 %v1606
    %3485 = vmatpush.bf16.msra.mxu0 %v1603
    %3486 = vmatpush.bf16.msra.mxu0 %v1600
    %3487 = vmatpush.bf16.msra.mxu0 %v1597
    %3488 = vmatpush.bf16.msra.mxu0 %v1594
    %3489 = vmatpush.bf16.msra.mxu0 %v1591
    %3490 = vmatpush.bf16.msra.mxu0 %v1588
    %3491 = vmatmul.bf16.gmra.mxu0 %v3443
    %v3492 = vpop.f32.mrf.mxu0
    %v3493 = vadd.f32 0.0, %v3492
    %v3494 = vpop.f32.mrf.mxu0
    %3495 = vdwg.mxu0
    %3496 = vmatpush.bf16.msra.mxu0 %v2276
    %3497 = vmatpush.bf16.msra.mxu0 %v2272
    %3498 = vmatpush.bf16.msra.mxu0 %v2268
    %3499 = vmatpush.bf16.msra.mxu0 %v2264
    %3500 = vmatpush.bf16.msra.mxu0 %v2260
    %3501 = vmatpush.bf16.msra.mxu0 %v2256
    %3502 = vmatpush.bf16.msra.mxu0 %v2252
    %3503 = vmatpush.bf16.msra.mxu0 %v2248
    %3504 = vmatmul.bf16.gmra.mxu0 %v3442
    %v3505 = vpop.f32.mrf.mxu0
    %v3506 = vadd.f32 %v3454, %v3505
    %v3507 = vpop.f32.mrf.mxu0
    %3508 = vdwg.mxu0
    %3509 = vmatpush.bf16.msra.mxu0 %v2277
    %3510 = vmatpush.bf16.msra.mxu0 %v2273
    %3511 = vmatpush.bf16.msra.mxu0 %v2269
    %3512 = vmatpush.bf16.msra.mxu0 %v2265
    %3513 = vmatpush.bf16.msra.mxu0 %v2261
    %3514 = vmatpush.bf16.msra.mxu0 %v2257
    %3515 = vmatpush.bf16.msra.mxu0 %v2253
    %3516 = vmatpush.bf16.msra.mxu0 %v2249
    %3517 = vmatmul.bf16.gmra.mxu0 %v3442
    %v3518 = vpop.f32.mrf.mxu0
    %v3519 = vadd.f32 %v3467, %v3518
    %v3520 = vpop.f32.mrf.mxu0
    %3521 = vdwg.mxu0
    %3522 = vmatpush.bf16.msra.mxu0 %v2278
    %3523 = vmatpush.bf16.msra.mxu0 %v2274
    %3524 = vmatpush.bf16.msra.mxu0 %v2270
    %3525 = vmatpush.bf16.msra.mxu0 %v2266
    %3526 = vmatpush.bf16.msra.mxu0 %v2262
    %3527 = vmatpush.bf16.msra.mxu0 %v2258
    %3528 = vmatpush.bf16.msra.mxu0 %v2254
    %3529 = vmatpush.bf16.msra.mxu0 %v2250
    %3530 = vmatmul.bf16.gmra.mxu0 %v3442
    %v3531 = vpop.f32.mrf.mxu0
    %v3532 = vadd.f32 %v3480, %v3531
    %v3533 = vpop.f32.mrf.mxu0
    %3534 = vdwg.mxu0
    %3535 = vmatpush.bf16.msra.mxu0 %v2279
    %3536 = vmatpush.bf16.msra.mxu0 %v2275
    %3537 = vmatpush.bf16.msra.mxu0 %v2271
    %3538 = vmatpush.bf16.msra.mxu0 %v2267
    %3539 = vmatpush.bf16.msra.mxu0 %v2263
    %3540 = vmatpush.bf16.msra.mxu0 %v2259
    %3541 = vmatpush.bf16.msra.mxu0 %v2255
    %3542 = vmatpush.bf16.msra.mxu0 %v2251
    %3543 = vmatmul.bf16.gmra.mxu0 %v3442
    %v3544 = vpop.f32.mrf.mxu0
    %v3545 = vadd.f32 %v3493, %v3544
    %v3546 = vpop.f32.mrf.mxu0
    %3547 = vdwg.mxu0
    %v3548 = vadd.f32 %v3506, %v1498
    %v3549 = vadd.f32 %v3519, %v1499
    %v3550 = vadd.f32 %v3532, %v1500
    %v3551 = vadd.f32 %v3545, %v1501
    %v3552 = vxor.u32 %v3548, 2147483648
    %v3553 = vmul.f32 %v3552, 1.442695
    %v3554 = vpow.pop %v3553
    %v3555 = vadd.f32 %v3554, 1.0
    %v3556 = vrcp.pop %v3555
    %v3557 = vmul.f32 %v3555, %v3556
    %v3558 = vsub.f32 1.0, %v3557
    %v3559 = vmul.f32 %v3556, %v3558
    %v3560 = vadd.f32 %v3556, %v3559
    %vm3561 = vweird.f32 %v3555
    %vm3562 = vweird.f32 %v3556
    %vm3563 = vmor %vm3561, %vm3562
    %v3564 = vsel %vm3563, %v3556, %v3560
    %v3565 = vand.u32 2147483647, %v3555
    %vm3566 = vcmp.eq.f32.partialorder %v3565, 8.507059e+37
    %v3567 = vand.u32 %v3555, 2147483648
    %v3568 = vor.u32 1.1754944e-38, %v3567
    %v3569 = vsel %vm3566, %v3568, %v3564
    %v3570 = vmul.f32 1.0, %v3569
    %v3571 = vxor.u32 %v3549, 2147483648
    %v3572 = vmul.f32 %v3571, 1.442695
    %v3573 = vpow.pop %v3572
    %v3574 = vadd.f32 %v3573, 1.0
    %v3575 = vrcp.pop %v3574
    %v3576 = vmul.f32 %v3574, %v3575
    %v3577 = vsub.f32 1.0, %v3576
    %v3578 = vmul.f32 %v3575, %v3577
    %v3579 = vadd.f32 %v3575, %v3578
    %vm3580 = vweird.f32 %v3574
    %vm3581 = vweird.f32 %v3575
    %vm3582 = vmor %vm3580, %vm3581
    %v3583 = vsel %vm3582, %v3575, %v3579
    %v3584 = vand.u32 2147483647, %v3574
    %vm3585 = vcmp.eq.f32.partialorder %v3584, 8.507059e+37
    %v3586 = vand.u32 %v3574, 2147483648
    %v3587 = vor.u32 1.1754944e-38, %v3586
    %v3588 = vsel %vm3585, %v3587, %v3583
    %v3589 = vmul.f32 1.0, %v3588
    %v3590 = vtanh.pop %v3550
    %v3591 = vxor.u32 %v3551, 2147483648
    %v3592 = vmul.f32 %v3591, 1.442695
    %v3593 = vpow.pop %v3592
    %v3594 = vadd.f32 %v3593, 1.0
    %v3595 = vrcp.pop %v3594
    %v3596 = vmul.f32 %v3594, %v3595
    %v3597 = vsub.f32 1.0, %v3596
    %v3598 = vmul.f32 %v3595, %v3597
    %v3599 = vadd.f32 %v3595, %v3598
    %vm3600 = vweird.f32 %v3594
    %vm3601 = vweird.f32 %v3595
    %vm3602 = vmor %vm3600, %vm3601
    %v3603 = vsel %vm3602, %v3595, %v3599
    %v3604 = vand.u32 2147483647, %v3594
    %vm3605 = vcmp.eq.f32.partialorder %v3604, 8.507059e+37
    %v3606 = vand.u32 %v3594, 2147483648
    %v3607 = vor.u32 1.1754944e-38, %v3606
    %v3608 = vsel %vm3605, %v3607, %v3603
    %v3609 = vmul.f32 1.0, %v3608
    %v3610 = vmul.f32 %v3589, %v3316
    %v3611 = vmul.f32 %v3570, %v3590
    %v3612 = vadd.f32 %v3610, %v3611
    %v3613 = vtanh.pop %v3612
    %v3614 = vmul.f32 %v3609, %v3613
    %3615 = vmatpush.bf16.msra.mxu0 %v1907
    %3616 = vmatpush.bf16.msra.mxu0 %v1903
    %3617 = vmatpush.bf16.msra.mxu0 %v1899
    %3618 = vmatpush.bf16.msra.mxu0 %v1895
    %3619 = vmatpush.bf16.msra.mxu0 %v1891
    %3620 = vmatpush.bf16.msra.mxu0 %v1887
    %3621 = vmatpush.bf16.msra.mxu0 %v1883
    %3622 = vmatpush.bf16.msra.mxu0 %v1879
    %3623 = vmatmul.bf16.gmra.mxu0 %v3443
    %v3624 = vpop.f32.mrf.mxu0
    %v3625 = vadd.f32 0.0, %v3624
    %v3626 = vpop.f32.mrf.mxu0
    %3627 = vdwg.mxu0
    %3628 = vmatpush.bf16.msra.mxu0 %v1908
    %3629 = vmatpush.bf16.msra.mxu0 %v1904
    %3630 = vmatpush.bf16.msra.mxu0 %v1900
    %3631 = vmatpush.bf16.msra.mxu0 %v1896
    %3632 = vmatpush.bf16.msra.mxu0 %v1892
    %3633 = vmatpush.bf16.msra.mxu0 %v1888
    %3634 = vmatpush.bf16.msra.mxu0 %v1884
    %3635 = vmatpush.bf16.msra.mxu0 %v1880
    %3636 = vmatmul.bf16.gmra.mxu0 %v3443
    %v3637 = vpop.f32.mrf.mxu0
    %v3638 = vadd.f32 0.0, %v3637
    %v3639 = vpop.f32.mrf.mxu0
    %3640 = vdwg.mxu0
    %3641 = vmatpush.bf16.msra.mxu0 %v1909
    %3642 = vmatpush.bf16.msra.mxu0 %v1905
    %3643 = vmatpush.bf16.msra.mxu0 %v1901
    %3644 = vmatpush.bf16.msra.mxu0 %v1897
    %3645 = vmatpush.bf16.msra.mxu0 %v1893
    %3646 = vmatpush.bf16.msra.mxu0 %v1889
    %3647 = vmatpush.bf16.msra.mxu0 %v1885
    %3648 = vmatpush.bf16.msra.mxu0 %v1881
    %3649 = vmatmul.bf16.gmra.mxu0 %v3443
    %v3650 = vpop.f32.mrf.mxu0
    %v3651 = vadd.f32 0.0, %v3650
    %v3652 = vpop.f32.mrf.mxu0
    %3653 = vdwg.mxu0
    %3654 = vmatpush.bf16.msra.mxu0 %v1910
    %3655 = vmatpush.bf16.msra.mxu0 %v1906
    %3656 = vmatpush.bf16.msra.mxu0 %v1902
    %3657 = vmatpush.bf16.msra.mxu0 %v1898
    %3658 = vmatpush.bf16.msra.mxu0 %v1894
    %3659 = vmatpush.bf16.msra.mxu0 %v1890
    %3660 = vmatpush.bf16.msra.mxu0 %v1886
    %3661 = vmatpush.bf16.msra.mxu0 %v1882
    %3662 = vmatmul.bf16.gmra.mxu0 %v3443
    %v3663 = vpop.f32.mrf.mxu0
    %v3664 = vadd.f32 0.0, %v3663
    %v3665 = vpop.f32.mrf.mxu0
    %3666 = vdwg.mxu0
    %v3667 = vadd.f32 %v1314, %v3625
    %v3668 = vadd.f32 %v1342, %v3638
    %v3669 = vadd.f32 %v1371, %v3651
    %v3670 = vadd.f32 %v1400, %v3664
    %v3671 = vadd.f32 %v3667, %v1407
    %v3672 = vadd.f32 %v3668, %v1408
    %v3673 = vadd.f32 %v3669, %v1409
    %v3674 = vadd.f32 %v3670, %v1410
    %v3675 = vxor.u32 %v3671, 2147483648
    %v3676 = vmul.f32 %v3675, 1.442695
    %v3677 = vpow.pop %v3676
    %v3678 = vadd.f32 %v3677, 1.0
    %v3679 = vrcp.pop %v3678
    %v3680 = vmul.f32 %v3678, %v3679
    %v3681 = vsub.f32 1.0, %v3680
    %v3682 = vmul.f32 %v3679, %v3681
    %v3683 = vadd.f32 %v3679, %v3682
    %vm3684 = vweird.f32 %v3678
    %vm3685 = vweird.f32 %v3679
    %vm3686 = vmor %vm3684, %vm3685
    %v3687 = vsel %vm3686, %v3679, %v3683
    %v3688 = vand.u32 2147483647, %v3678
    %vm3689 = vcmp.eq.f32.partialorder %v3688, 8.507059e+37
    %v3690 = vand.u32 %v3678, 2147483648
    %v3691 = vor.u32 1.1754944e-38, %v3690
    %v3692 = vsel %vm3689, %v3691, %v3687
    %v3693 = vmul.f32 1.0, %v3692
    %v3694 = vxor.u32 %v3672, 2147483648
    %v3695 = vmul.f32 %v3694, 1.442695
    %v3696 = vpow.pop %v3695
    %v3697 = vadd.f32 %v3696, 1.0
    %v3698 = vrcp.pop %v3697
    %v3699 = vmul.f32 %v3697, %v3698
    %v3700 = vsub.f32 1.0, %v3699
    %v3701 = vmul.f32 %v3698, %v3700
    %v3702 = vadd.f32 %v3698, %v3701
    %vm3703 = vweird.f32 %v3697
    %vm3704 = vweird.f32 %v3698
    %vm3705 = vmor %vm3703, %vm3704
    %v3706 = vsel %vm3705, %v3698, %v3702
    %v3707 = vand.u32 2147483647, %v3697
    %vm3708 = vcmp.eq.f32.partialorder %v3707, 8.507059e+37
    %v3709 = vand.u32 %v3697, 2147483648
    %v3710 = vor.u32 1.1754944e-38, %v3709
    %v3711 = vsel %vm3708, %v3710, %v3706
    %v3712 = vmul.f32 1.0, %v3711
    %v3713 = vtanh.pop %v3673
    %v3714 = vxor.u32 %v3674, 2147483648
    %v3715 = vmul.f32 %v3714, 1.442695
    %v3716 = vpow.pop %v3715
    %v3717 = vadd.f32 %v3716, 1.0
    %v3718 = vrcp.pop %v3717
    %v3719 = vmul.f32 %v3717, %v3718
    %v3720 = vsub.f32 1.0, %v3719
    %v3721 = vmul.f32 %v3718, %v3720
    %v3722 = vadd.f32 %v3718, %v3721
    %vm3723 = vweird.f32 %v3717
    %vm3724 = vweird.f32 %v3718
    %vm3725 = vmor %vm3723, %vm3724
    %v3726 = vsel %vm3725, %v3718, %v3722
    %v3727 = vand.u32 2147483647, %v3717
    %vm3728 = vcmp.eq.f32.partialorder %v3727, 8.507059e+37
    %v3729 = vand.u32 %v3717, 2147483648
    %v3730 = vor.u32 1.1754944e-38, %v3729
    %v3731 = vsel %vm3728, %v3730, %v3726
    %v3732 = vmul.f32 1.0, %v3731
    %v3733 = vmul.f32 %v3712, %v3439
    %v3734 = vmul.f32 %v3693, %v3713
    %v3735 = vadd.f32 %v3733, %v3734
    %v3736 = vtanh.pop %v3735
    %v3737 = vmul.f32 %v3732, %v3736
    %v3738 = vpack.c.bf16 %v3614, %v3614
    %v3739 = vpack.c.bf16 %v3737, %v3737
    %3740 = vmatpush.bf16.msra.mxu0 %v1607
    %3741 = vmatpush.bf16.msra.mxu0 %v1604
    %3742 = vmatpush.bf16.msra.mxu0 %v1601
    %3743 = vmatpush.bf16.msra.mxu0 %v1598
    %3744 = vmatpush.bf16.msra.mxu0 %v1595
    %3745 = vmatpush.bf16.msra.mxu0 %v1592
    %3746 = vmatpush.bf16.msra.mxu0 %v1589
    %3747 = vmatpush.bf16.msra.mxu0 %v1586
    %3748 = vmatmul.bf16.gmra.mxu0 %v3739
    %v3749 = vpop.f32.mrf.mxu0
    %v3750 = vadd.f32 0.0, %v3749
    %v3751 = vpop.f32.mrf.mxu0
    %3752 = vdwg.mxu0
    %3753 = vmatpush.bf16.msra.mxu0 %v2091
    %3754 = vmatpush.bf16.msra.mxu0 %v2090
    %3755 = vmatpush.bf16.msra.mxu0 %v2089
    %3756 = vmatpush.bf16.msra.mxu0 %v2088
    %3757 = vmatpush.bf16.msra.mxu0 %v2087
    %3758 = vmatpush.bf16.msra.mxu0 %v2086
    %3759 = vmatpush.bf16.msra.mxu0 %v2085
    %3760 = vmatpush.bf16.msra.mxu0 %v2084
    %3761 = vmatmul.bf16.gmra.mxu0 %v3739
    %v3762 = vpop.f32.mrf.mxu0
    %v3763 = vadd.f32 0.0, %v3762
    %v3764 = vpop.f32.mrf.mxu0
    %3765 = vdwg.mxu0
    %3766 = vmatpush.bf16.msra.mxu0 %v1608
    %3767 = vmatpush.bf16.msra.mxu0 %v1605
    %3768 = vmatpush.bf16.msra.mxu0 %v1602
    %3769 = vmatpush.bf16.msra.mxu0 %v1599
    %3770 = vmatpush.bf16.msra.mxu0 %v1596
    %3771 = vmatpush.bf16.msra.mxu0 %v1593
    %3772 = vmatpush.bf16.msra.mxu0 %v1590
    %3773 = vmatpush.bf16.msra.mxu0 %v1587
    %3774 = vmatmul.bf16.gmra.mxu0 %v3739
    %v3775 = vpop.f32.mrf.mxu0
    %v3776 = vadd.f32 0.0, %v3775
    %v3777 = vpop.f32.mrf.mxu0
    %3778 = vdwg.mxu0
    %3779 = vmatpush.bf16.msra.mxu0 %v1609
    %3780 = vmatpush.bf16.msra.mxu0 %v1606
    %3781 = vmatpush.bf16.msra.mxu0 %v1603
    %3782 = vmatpush.bf16.msra.mxu0 %v1600
    %3783 = vmatpush.bf16.msra.mxu0 %v1597
    %3784 = vmatpush.bf16.msra.mxu0 %v1594
    %3785 = vmatpush.bf16.msra.mxu0 %v1591
    %3786 = vmatpush.bf16.msra.mxu0 %v1588
    %3787 = vmatmul.bf16.gmra.mxu0 %v3739
    %v3788 = vpop.f32.mrf.mxu0
    %v3789 = vadd.f32 0.0, %v3788
    %v3790 = vpop.f32.mrf.mxu0
    %3791 = vdwg.mxu0
    %3792 = vmatpush.bf16.msra.mxu0 %v2276
    %3793 = vmatpush.bf16.msra.mxu0 %v2272
    %3794 = vmatpush.bf16.msra.mxu0 %v2268
    %3795 = vmatpush.bf16.msra.mxu0 %v2264
    %3796 = vmatpush.bf16.msra.mxu0 %v2260
    %3797 = vmatpush.bf16.msra.mxu0 %v2256
    %3798 = vmatpush.bf16.msra.mxu0 %v2252
    %3799 = vmatpush.bf16.msra.mxu0 %v2248
    %3800 = vmatmul.bf16.gmra.mxu0 %v3738
    %v3801 = vpop.f32.mrf.mxu0
    %v3802 = vadd.f32 %v3750, %v3801
    %v3803 = vpop.f32.mrf.mxu0
    %3804 = vdwg.mxu0
    %3805 = vmatpush.bf16.msra.mxu0 %v2277
    %3806 = vmatpush.bf16.msra.mxu0 %v2273
    %3807 = vmatpush.bf16.msra.mxu0 %v2269
    %3808 = vmatpush.bf16.msra.mxu0 %v2265
    %3809 = vmatpush.bf16.msra.mxu0 %v2261
    %3810 = vmatpush.bf16.msra.mxu0 %v2257
    %3811 = vmatpush.bf16.msra.mxu0 %v2253
    %3812 = vmatpush.bf16.msra.mxu0 %v2249
    %3813 = vmatmul.bf16.gmra.mxu0 %v3738
    %v3814 = vpop.f32.mrf.mxu0
    %v3815 = vadd.f32 %v3763, %v3814
    %v3816 = vpop.f32.mrf.mxu0
    %3817 = vdwg.mxu0
    %3818 = vmatpush.bf16.msra.mxu0 %v2278
    %3819 = vmatpush.bf16.msra.mxu0 %v2274
    %3820 = vmatpush.bf16.msra.mxu0 %v2270
    %3821 = vmatpush.bf16.msra.mxu0 %v2266
    %3822 = vmatpush.bf16.msra.mxu0 %v2262
    %3823 = vmatpush.bf16.msra.mxu0 %v2258
    %3824 = vmatpush.bf16.msra.mxu0 %v2254
    %3825 = vmatpush.bf16.msra.mxu0 %v2250
    %3826 = vmatmul.bf16.gmra.mxu0 %v3738
    %v3827 = vpop.f32.mrf.mxu0
    %v3828 = vadd.f32 %v3776, %v3827
    %v3829 = vpop.f32.mrf.mxu0
    %3830 = vdwg.mxu0
    %3831 = vmatpush.bf16.msra.mxu0 %v2279
    %3832 = vmatpush.bf16.msra.mxu0 %v2275
    %3833 = vmatpush.bf16.msra.mxu0 %v2271
    %3834 = vmatpush.bf16.msra.mxu0 %v2267
    %3835 = vmatpush.bf16.msra.mxu0 %v2263
    %3836 = vmatpush.bf16.msra.mxu0 %v2259
    %3837 = vmatpush.bf16.msra.mxu0 %v2255
    %3838 = vmatpush.bf16.msra.mxu0 %v2251
    %3839 = vmatmul.bf16.gmra.mxu0 %v3738
    %v3840 = vpop.f32.mrf.mxu0
    %v3841 = vadd.f32 %v3789, %v3840
    %v3842 = vpop.f32.mrf.mxu0
    %3843 = vdwg.mxu0
    %v3844 = vadd.f32 %v3802, %v1498
    %v3845 = vadd.f32 %v3815, %v1499
    %v3846 = vadd.f32 %v3828, %v1500
    %v3847 = vadd.f32 %v3841, %v1501
    %v3848 = vxor.u32 %v3844, 2147483648
    %v3849 = vmul.f32 %v3848, 1.442695
    %v3850 = vpow.pop %v3849
    %v3851 = vadd.f32 %v3850, 1.0
    %v3852 = vrcp.pop %v3851
    %v3853 = vmul.f32 %v3851, %v3852
    %v3854 = vsub.f32 1.0, %v3853
    %v3855 = vmul.f32 %v3852, %v3854
    %v3856 = vadd.f32 %v3852, %v3855
    %vm3857 = vweird.f32 %v3851
    %vm3858 = vweird.f32 %v3852
    %vm3859 = vmor %vm3857, %vm3858
    %v3860 = vsel %vm3859, %v3852, %v3856
    %v3861 = vand.u32 2147483647, %v3851
    %vm3862 = vcmp.eq.f32.partialorder %v3861, 8.507059e+37
    %v3863 = vand.u32 %v3851, 2147483648
    %v3864 = vor.u32 1.1754944e-38, %v3863
    %v3865 = vsel %vm3862, %v3864, %v3860
    %v3866 = vmul.f32 1.0, %v3865
    %v3867 = vxor.u32 %v3845, 2147483648
    %v3868 = vmul.f32 %v3867, 1.442695
    %v3869 = vpow.pop %v3868
    %v3870 = vadd.f32 %v3869, 1.0
    %v3871 = vrcp.pop %v3870
    %v3872 = vmul.f32 %v3870, %v3871
    %v3873 = vsub.f32 1.0, %v3872
    %v3874 = vmul.f32 %v3871, %v3873
    %v3875 = vadd.f32 %v3871, %v3874
    %vm3876 = vweird.f32 %v3870
    %vm3877 = vweird.f32 %v3871
    %vm3878 = vmor %vm3876, %vm3877
    %v3879 = vsel %vm3878, %v3871, %v3875
    %v3880 = vand.u32 2147483647, %v3870
    %vm3881 = vcmp.eq.f32.partialorder %v3880, 8.507059e+37
    %v3882 = vand.u32 %v3870, 2147483648
    %v3883 = vor.u32 1.1754944e-38, %v3882
    %v3884 = vsel %vm3881, %v3883, %v3879
    %v3885 = vmul.f32 1.0, %v3884
    %v3886 = vtanh.pop %v3846
    %v3887 = vxor.u32 %v3847, 2147483648
    %v3888 = vmul.f32 %v3887, 1.442695
    %v3889 = vpow.pop %v3888
    %v3890 = vadd.f32 %v3889, 1.0
    %v3891 = vrcp.pop %v3890
    %v3892 = vmul.f32 %v3890, %v3891
    %v3893 = vsub.f32 1.0, %v3892
    %v3894 = vmul.f32 %v3891, %v3893
    %v3895 = vadd.f32 %v3891, %v3894
    %vm3896 = vweird.f32 %v3890
    %vm3897 = vweird.f32 %v3891
    %vm3898 = vmor %vm3896, %vm3897
    %v3899 = vsel %vm3898, %v3891, %v3895
    %v3900 = vand.u32 2147483647, %v3890
    %vm3901 = vcmp.eq.f32.partialorder %v3900, 8.507059e+37
    %v3902 = vand.u32 %v3890, 2147483648
    %v3903 = vor.u32 1.1754944e-38, %v3902
    %v3904 = vsel %vm3901, %v3903, %v3899
    %v3905 = vmul.f32 1.0, %v3904
    %v3906 = vmul.f32 %v3885, %v3612
    %v3907 = vmul.f32 %v3866, %v3886
    %v3908 = vadd.f32 %v3906, %v3907
    %v3909 = vtanh.pop %v3908
    %v3910 = vmul.f32 %v3905, %v3909
    %3911 = vmatpush.bf16.msra.mxu0 %v1907
    %3912 = vmatpush.bf16.msra.mxu0 %v1903
    %3913 = vmatpush.bf16.msra.mxu0 %v1899
    %3914 = vmatpush.bf16.msra.mxu0 %v1895
    %3915 = vmatpush.bf16.msra.mxu0 %v1891
    %3916 = vmatpush.bf16.msra.mxu0 %v1887
    %3917 = vmatpush.bf16.msra.mxu0 %v1883
    %3918 = vmatpush.bf16.msra.mxu0 %v1879
    %3919 = vmatmul.bf16.gmra.mxu0 %v3739
    %v3920 = vpop.f32.mrf.mxu0
    %v3921 = vadd.f32 0.0, %v3920
    %v3922 = vpop.f32.mrf.mxu0
    %3923 = vdwg.mxu0
    %3924 = vmatpush.bf16.msra.mxu0 %v1908
    %3925 = vmatpush.bf16.msra.mxu0 %v1904
    %3926 = vmatpush.bf16.msra.mxu0 %v1900
    %3927 = vmatpush.bf16.msra.mxu0 %v1896
    %3928 = vmatpush.bf16.msra.mxu0 %v1892
    %3929 = vmatpush.bf16.msra.mxu0 %v1888
    %3930 = vmatpush.bf16.msra.mxu0 %v1884
    %3931 = vmatpush.bf16.msra.mxu0 %v1880
    %3932 = vmatmul.bf16.gmra.mxu0 %v3739
    %v3933 = vpop.f32.mrf.mxu0
    %v3934 = vadd.f32 0.0, %v3933
    %v3935 = vpop.f32.mrf.mxu0
    %3936 = vdwg.mxu0
    %3937 = vmatpush.bf16.msra.mxu0 %v1909
    %3938 = vmatpush.bf16.msra.mxu0 %v1905
    %3939 = vmatpush.bf16.msra.mxu0 %v1901
    %3940 = vmatpush.bf16.msra.mxu0 %v1897
    %3941 = vmatpush.bf16.msra.mxu0 %v1893
    %3942 = vmatpush.bf16.msra.mxu0 %v1889
    %3943 = vmatpush.bf16.msra.mxu0 %v1885
    %3944 = vmatpush.bf16.msra.mxu0 %v1881
    %3945 = vmatmul.bf16.gmra.mxu0 %v3739
    %v3946 = vpop.f32.mrf.mxu0
    %v3947 = vadd.f32 0.0, %v3946
    %v3948 = vpop.f32.mrf.mxu0
    %3949 = vdwg.mxu0
    %3950 = vmatpush.bf16.msra.mxu0 %v1910
    %3951 = vmatpush.bf16.msra.mxu0 %v1906
    %3952 = vmatpush.bf16.msra.mxu0 %v1902
    %3953 = vmatpush.bf16.msra.mxu0 %v1898
    %3954 = vmatpush.bf16.msra.mxu0 %v1894
    %3955 = vmatpush.bf16.msra.mxu0 %v1890
    %3956 = vmatpush.bf16.msra.mxu0 %v1886
    %3957 = vmatpush.bf16.msra.mxu0 %v1882
    %3958 = vmatmul.bf16.gmra.mxu0 %v3739
    %v3959 = vpop.f32.mrf.mxu0
    %v3960 = vadd.f32 0.0, %v3959
    %v3961 = vpop.f32.mrf.mxu0
    %3962 = vdwg.mxu0
    %v3963 = vadd.f32 %v1316, %v3921
    %v3964 = vadd.f32 %v1344, %v3934
    %v3965 = vadd.f32 %v1373, %v3947
    %v3966 = vadd.f32 %v1402, %v3960
    %v3967 = vadd.f32 %v3963, %v1407
    %v3968 = vadd.f32 %v3964, %v1408
    %v3969 = vadd.f32 %v3965, %v1409
    %v3970 = vadd.f32 %v3966, %v1410
    %v3971 = vxor.u32 %v3967, 2147483648
    %v3972 = vmul.f32 %v3971, 1.442695
    %v3973 = vpow.pop %v3972
    %v3974 = vadd.f32 %v3973, 1.0
    %v3975 = vrcp.pop %v3974
    %v3976 = vmul.f32 %v3974, %v3975
    %v3977 = vsub.f32 1.0, %v3976
    %v3978 = vmul.f32 %v3975, %v3977
    %v3979 = vadd.f32 %v3975, %v3978
    %vm3980 = vweird.f32 %v3974
    %vm3981 = vweird.f32 %v3975
    %vm3982 = vmor %vm3980, %vm3981
    %v3983 = vsel %vm3982, %v3975, %v3979
    %v3984 = vand.u32 2147483647, %v3974
    %vm3985 = vcmp.eq.f32.partialorder %v3984, 8.507059e+37
    %v3986 = vand.u32 %v3974, 2147483648
    %v3987 = vor.u32 1.1754944e-38, %v3986
    %v3988 = vsel %vm3985, %v3987, %v3983
    %v3989 = vmul.f32 1.0, %v3988
    %v3990 = vxor.u32 %v3968, 2147483648
    %v3991 = vmul.f32 %v3990, 1.442695
    %v3992 = vpow.pop %v3991
    %v3993 = vadd.f32 %v3992, 1.0
    %v3994 = vrcp.pop %v3993
    %v3995 = vmul.f32 %v3993, %v3994
    %v3996 = vsub.f32 1.0, %v3995
    %v3997 = vmul.f32 %v3994, %v3996
    %v3998 = vadd.f32 %v3994, %v3997
    %vm3999 = vweird.f32 %v3993
    %vm4000 = vweird.f32 %v3994
    %vm4001 = vmor %vm3999, %vm4000
    %v4002 = vsel %vm4001, %v3994, %v3998
    %v4003 = vand.u32 2147483647, %v3993
    %vm4004 = vcmp.eq.f32.partialorder %v4003, 8.507059e+37
    %v4005 = vand.u32 %v3993, 2147483648
    %v4006 = vor.u32 1.1754944e-38, %v4005
    %v4007 = vsel %vm4004, %v4006, %v4002
    %v4008 = vmul.f32 1.0, %v4007
    %v4009 = vtanh.pop %v3969
    %v4010 = vxor.u32 %v3970, 2147483648
    %v4011 = vmul.f32 %v4010, 1.442695
    %v4012 = vpow.pop %v4011
    %v4013 = vadd.f32 %v4012, 1.0
    %v4014 = vrcp.pop %v4013
    %v4015 = vmul.f32 %v4013, %v4014
    %v4016 = vsub.f32 1.0, %v4015
    %v4017 = vmul.f32 %v4014, %v4016
    %v4018 = vadd.f32 %v4014, %v4017
    %vm4019 = vweird.f32 %v4013
    %vm4020 = vweird.f32 %v4014
    %vm4021 = vmor %vm4019, %vm4020
    %v4022 = vsel %vm4021, %v4014, %v4018
    %v4023 = vand.u32 2147483647, %v4013
    %vm4024 = vcmp.eq.f32.partialorder %v4023, 8.507059e+37
    %v4025 = vand.u32 %v4013, 2147483648
    %v4026 = vor.u32 1.1754944e-38, %v4025
    %v4027 = vsel %vm4024, %v4026, %v4022
    %v4028 = vmul.f32 1.0, %v4027
    %v4029 = vmul.f32 %v4008, %v3735
    %v4030 = vmul.f32 %v3989, %v4009
    %v4031 = vadd.f32 %v4029, %v4030
    %v4032 = vtanh.pop %v4031
    %v4033 = vmul.f32 %v4028, %v4032
    %v4034 = vpack.c.bf16 %v3910, %v3910
    %v4035 = vpack.c.bf16 %v4033, %v4033
    %4036 = vmatpush.bf16.msra.mxu0 %v1607
    %4037 = vmatpush.bf16.msra.mxu0 %v1604
    %4038 = vmatpush.bf16.msra.mxu0 %v1601
    %4039 = vmatpush.bf16.msra.mxu0 %v1598
    %4040 = vmatpush.bf16.msra.mxu0 %v1595
    %4041 = vmatpush.bf16.msra.mxu0 %v1592
    %4042 = vmatpush.bf16.msra.mxu0 %v1589
    %4043 = vmatpush.bf16.msra.mxu0 %v1586
    %4044 = vmatmul.bf16.gmra.mxu0 %v4035
    %v4045 = vpop.f32.mrf.mxu0
    %v4046 = vadd.f32 0.0, %v4045
    %v4047 = vpop.f32.mrf.mxu0
    %4048 = vdwg.mxu0
    %4049 = vmatpush.bf16.msra.mxu0 %v2091
    %4050 = vmatpush.bf16.msra.mxu0 %v2090
    %4051 = vmatpush.bf16.msra.mxu0 %v2089
    %4052 = vmatpush.bf16.msra.mxu0 %v2088
    %4053 = vmatpush.bf16.msra.mxu0 %v2087
    %4054 = vmatpush.bf16.msra.mxu0 %v2086
    %4055 = vmatpush.bf16.msra.mxu0 %v2085
    %4056 = vmatpush.bf16.msra.mxu0 %v2084
    %4057 = vmatmul.bf16.gmra.mxu0 %v4035
    %v4058 = vpop.f32.mrf.mxu0
    %v4059 = vadd.f32 0.0, %v4058
    %v4060 = vpop.f32.mrf.mxu0
    %4061 = vdwg.mxu0
    %4062 = vmatpush.bf16.msra.mxu0 %v1608
    %4063 = vmatpush.bf16.msra.mxu0 %v1605
    %4064 = vmatpush.bf16.msra.mxu0 %v1602
    %4065 = vmatpush.bf16.msra.mxu0 %v1599
    %4066 = vmatpush.bf16.msra.mxu0 %v1596
    %4067 = vmatpush.bf16.msra.mxu0 %v1593
    %4068 = vmatpush.bf16.msra.mxu0 %v1590
    %4069 = vmatpush.bf16.msra.mxu0 %v1587
    %4070 = vmatmul.bf16.gmra.mxu0 %v4035
    %v4071 = vpop.f32.mrf.mxu0
    %v4072 = vadd.f32 0.0, %v4071
    %v4073 = vpop.f32.mrf.mxu0
    %4074 = vdwg.mxu0
    %4075 = vmatpush.bf16.msra.mxu0 %v1609
    %4076 = vmatpush.bf16.msra.mxu0 %v1606
    %4077 = vmatpush.bf16.msra.mxu0 %v1603
    %4078 = vmatpush.bf16.msra.mxu0 %v1600
    %4079 = vmatpush.bf16.msra.mxu0 %v1597
    %4080 = vmatpush.bf16.msra.mxu0 %v1594
    %4081 = vmatpush.bf16.msra.mxu0 %v1591
    %4082 = vmatpush.bf16.msra.mxu0 %v1588
    %4083 = vmatmul.bf16.gmra.mxu0 %v4035
    %v4084 = vpop.f32.mrf.mxu0
    %v4085 = vadd.f32 0.0, %v4084
    %v4086 = vpop.f32.mrf.mxu0
    %4087 = vdwg.mxu0
    %4088 = vmatpush.bf16.msra.mxu0 %v2276
    %4089 = vmatpush.bf16.msra.mxu0 %v2272
    %4090 = vmatpush.bf16.msra.mxu0 %v2268
    %4091 = vmatpush.bf16.msra.mxu0 %v2264
    %4092 = vmatpush.bf16.msra.mxu0 %v2260
    %4093 = vmatpush.bf16.msra.mxu0 %v2256
    %4094 = vmatpush.bf16.msra.mxu0 %v2252
    %4095 = vmatpush.bf16.msra.mxu0 %v2248
    %4096 = vmatmul.bf16.gmra.mxu0 %v4034
    %v4097 = vpop.f32.mrf.mxu0
    %v4098 = vadd.f32 %v4046, %v4097
    %v4099 = vpop.f32.mrf.mxu0
    %4100 = vdwg.mxu0
    %4101 = vmatpush.bf16.msra.mxu0 %v2277
    %4102 = vmatpush.bf16.msra.mxu0 %v2273
    %4103 = vmatpush.bf16.msra.mxu0 %v2269
    %4104 = vmatpush.bf16.msra.mxu0 %v2265
    %4105 = vmatpush.bf16.msra.mxu0 %v2261
    %4106 = vmatpush.bf16.msra.mxu0 %v2257
    %4107 = vmatpush.bf16.msra.mxu0 %v2253
    %4108 = vmatpush.bf16.msra.mxu0 %v2249
    %4109 = vmatmul.bf16.gmra.mxu0 %v4034
    %v4110 = vpop.f32.mrf.mxu0
    %v4111 = vadd.f32 %v4059, %v4110
    %v4112 = vpop.f32.mrf.mxu0
    %4113 = vdwg.mxu0
    %4114 = vmatpush.bf16.msra.mxu0 %v2278
    %4115 = vmatpush.bf16.msra.mxu0 %v2274
    %4116 = vmatpush.bf16.msra.mxu0 %v2270
    %4117 = vmatpush.bf16.msra.mxu0 %v2266
    %4118 = vmatpush.bf16.msra.mxu0 %v2262
    %4119 = vmatpush.bf16.msra.mxu0 %v2258
    %4120 = vmatpush.bf16.msra.mxu0 %v2254
    %4121 = vmatpush.bf16.msra.mxu0 %v2250
    %4122 = vmatmul.bf16.gmra.mxu0 %v4034
    %v4123 = vpop.f32.mrf.mxu0
    %v4124 = vadd.f32 %v4072, %v4123
    %v4125 = vpop.f32.mrf.mxu0
    %4126 = vdwg.mxu0
    %4127 = vmatpush.bf16.msra.mxu0 %v2279
    %4128 = vmatpush.bf16.msra.mxu0 %v2275
    %4129 = vmatpush.bf16.msra.mxu0 %v2271
    %4130 = vmatpush.bf16.msra.mxu0 %v2267
    %4131 = vmatpush.bf16.msra.mxu0 %v2263
    %4132 = vmatpush.bf16.msra.mxu0 %v2259
    %4133 = vmatpush.bf16.msra.mxu0 %v2255
    %4134 = vmatpush.bf16.msra.mxu0 %v2251
    %4135 = vmatmul.bf16.gmra.mxu0 %v4034
    %v4136 = vpop.f32.mrf.mxu0
    %v4137 = vadd.f32 %v4085, %v4136
    %v4138 = vpop.f32.mrf.mxu0
    %4139 = vdwg.mxu0
    %v4140 = vadd.f32 %v4098, %v1498
    %v4141 = vadd.f32 %v4111, %v1499
    %v4142 = vadd.f32 %v4124, %v1500
    %v4143 = vadd.f32 %v4137, %v1501
    %v4144 = vxor.u32 %v4140, 2147483648
    %v4145 = vmul.f32 %v4144, 1.442695
    %v4146 = vpow.pop %v4145
    %v4147 = vadd.f32 %v4146, 1.0
    %v4148 = vrcp.pop %v4147
    %v4149 = vmul.f32 %v4147, %v4148
    %v4150 = vsub.f32 1.0, %v4149
    %v4151 = vmul.f32 %v4148, %v4150
    %v4152 = vadd.f32 %v4148, %v4151
    %vm4153 = vweird.f32 %v4147
    %vm4154 = vweird.f32 %v4148
    %vm4155 = vmor %vm4153, %vm4154
    %v4156 = vsel %vm4155, %v4148, %v4152
    %v4157 = vand.u32 2147483647, %v4147
    %vm4158 = vcmp.eq.f32.partialorder %v4157, 8.507059e+37
    %v4159 = vand.u32 %v4147, 2147483648
    %v4160 = vor.u32 1.1754944e-38, %v4159
    %v4161 = vsel %vm4158, %v4160, %v4156
    %v4162 = vmul.f32 1.0, %v4161
    %v4163 = vxor.u32 %v4141, 2147483648
    %v4164 = vmul.f32 %v4163, 1.442695
    %v4165 = vpow.pop %v4164
    %v4166 = vadd.f32 %v4165, 1.0
    %v4167 = vrcp.pop %v4166
    %v4168 = vmul.f32 %v4166, %v4167
    %v4169 = vsub.f32 1.0, %v4168
    %v4170 = vmul.f32 %v4167, %v4169
    %v4171 = vadd.f32 %v4167, %v4170
    %vm4172 = vweird.f32 %v4166
    %vm4173 = vweird.f32 %v4167
    %vm4174 = vmor %vm4172, %vm4173
    %v4175 = vsel %vm4174, %v4167, %v4171
    %v4176 = vand.u32 2147483647, %v4166
    %vm4177 = vcmp.eq.f32.partialorder %v4176, 8.507059e+37
    %v4178 = vand.u32 %v4166, 2147483648
    %v4179 = vor.u32 1.1754944e-38, %v4178
    %v4180 = vsel %vm4177, %v4179, %v4175
    %v4181 = vmul.f32 1.0, %v4180
    %v4182 = vtanh.pop %v4142
    %v4183 = vxor.u32 %v4143, 2147483648
    %v4184 = vmul.f32 %v4183, 1.442695
    %v4185 = vpow.pop %v4184
    %v4186 = vadd.f32 %v4185, 1.0
    %v4187 = vrcp.pop %v4186
    %v4188 = vmul.f32 %v4186, %v4187
    %v4189 = vsub.f32 1.0, %v4188
    %v4190 = vmul.f32 %v4187, %v4189
    %v4191 = vadd.f32 %v4187, %v4190
    %vm4192 = vweird.f32 %v4186
    %vm4193 = vweird.f32 %v4187
    %vm4194 = vmor %vm4192, %vm4193
    %v4195 = vsel %vm4194, %v4187, %v4191
    %v4196 = vand.u32 2147483647, %v4186
    %vm4197 = vcmp.eq.f32.partialorder %v4196, 8.507059e+37
    %v4198 = vand.u32 %v4186, 2147483648
    %v4199 = vor.u32 1.1754944e-38, %v4198
    %v4200 = vsel %vm4197, %v4199, %v4195
    %v4201 = vmul.f32 1.0, %v4200
    %v4202 = vmul.f32 %v4181, %v3908
    %v4203 = vmul.f32 %v4162, %v4182
    %v4204 = vadd.f32 %v4202, %v4203
    %v4205 = vtanh.pop %v4204
    %v4206 = vmul.f32 %v4201, %v4205
    %v4207 = vld [vmem:[#allocation30] sm:$0x1]
    %v4208 = vld [vmem:[#allocation31] sm:$0x1]
    %4209 = vadd.xlane.f32.xlu0 %v4206
    %v4210 = vpop.xlane.xlu0 %4209
    %v4211 = vmul.f32 %v4210, %v1198
    %v4212 = vsub.f32 %v4206, %v4211
    %v4213 = vmul.f32 %v4212, %v4212
    %4214 = vadd.xlane.f32.xlu0 %v4213
    %v4215 = vpop.xlane.xlu0 %4214
    %v4216 = vmul.f32 %v4215, %v1198
    %v4217 = vadd.f32 %v4216, 1e-05
    %v4218 = vrsqrt.pop %v4217
    %v4219 = vmul.f32 %v4218, %v4217
    %v4220 = vmul.f32 %v4219, %v4218
    %v4221 = vmul.f32 0.5, %v4220
    %v4222 = vsub.f32 1.5, %v4221
    %v4223 = vmul.f32 %v4218, %v4222
    %vm4224 = vweird.f32 %v4217
    %vm4225 = vweird.f32 %v4218
    %vm4226 = vmor %vm4224, %vm4225
    %v4227 = vsel %vm4226, %v4218, %v4223
    %v4228 = vmul.f32 %v4212, %v4227
    %v4230 = vperm.slane %v4207, 0
    %v4232 = vmul.f32 %v4228, %v4230
    %v4234 = vperm.slane %v4208, 0
    %v4236 = vadd.f32 %v4232, %v4234
    %s4237 = smul.u32 4, 32
    %s4238 = smul.u32 %s4237, 2
    %s4239 = sshll.u32 %s4238, 4
    %4240 = dma.done %s349, %s4239
    %s4241 = smul.u32 %s1460, 2
    %s4242 = sshll.u32 %s4241, 4
    %4243 = dma.done %s363, %s4242
    %s4244 = sshll.u32 %s4241, 4
    %4245 = dma.done %s377, %s4244
    %v4246 = vpack.c.bf16 %v1071, %v1071
    %v4247 = vpack.c.bf16 %v1072, %v1072
    %v4248 = vld [vmem:[#allocation5] sm:$0xff]
    %v4249 = vld [vmem:[#allocation5 + $0x8] sm:$0xff]
    %v4250 = vld [vmem:[#allocation5 + $0x10] sm:$0xff]
    %v4251 = vld [vmem:[#allocation5 + $0x18] sm:$0xff]
    %v4252 = vld [vmem:[#allocation5 + $0x20] sm:$0xff]
    %v4253 = vld [vmem:[#allocation5 + $0x28] sm:$0xff]
    %v4254 = vld [vmem:[#allocation5 + $0x30] sm:$0xff]
    %v4255 = vld [vmem:[#allocation5 + $0x38] sm:$0xff]
    %v4256 = vld [vmem:[#allocation5 + $0x40] sm:$0xff]
    %v4257 = vld [vmem:[#allocation5 + $0x48] sm:$0xff]
    %v4258 = vld [vmem:[#allocation5 + $0x50] sm:$0xff]
    %v4259 = vld [vmem:[#allocation5 + $0x58] sm:$0xff]
    %v4260 = vld [vmem:[#allocation5 + $0x60] sm:$0xff]
    %v4261 = vld [vmem:[#allocation5 + $0x68] sm:$0xff]
    %v4262 = vld [vmem:[#allocation5 + $0x70] sm:$0xff]
    %v4263 = vld [vmem:[#allocation5 + $0x78] sm:$0xff]
    %v4264 = vld [vmem:[#allocation5 + $0x80] sm:$0xff]
    %v4265 = vld [vmem:[#allocation5 + $0x88] sm:$0xff]
    %v4266 = vld [vmem:[#allocation5 + $0x90] sm:$0xff]
    %v4267 = vld [vmem:[#allocation5 + $0x98] sm:$0xff]
    %v4268 = vld [vmem:[#allocation5 + $0xa0] sm:$0xff]
    %v4269 = vld [vmem:[#allocation5 + $0xa8] sm:$0xff]
    %v4270 = vld [vmem:[#allocation5 + $0xb0] sm:$0xff]
    %v4271 = vld [vmem:[#allocation5 + $0xb8] sm:$0xff]
    %v4272 = vld [vmem:[#allocation5 + $0xc0] sm:$0xff]
    %v4273 = vld [vmem:[#allocation5 + $0xc8] sm:$0xff]
    %v4274 = vld [vmem:[#allocation5 + $0xd0] sm:$0xff]
    %v4275 = vld [vmem:[#allocation5 + $0xd8] sm:$0xff]
    %v4276 = vld [vmem:[#allocation5 + $0xe0] sm:$0xff]
    %v4277 = vld [vmem:[#allocation5 + $0xe8] sm:$0xff]
    %v4278 = vld [vmem:[#allocation5 + $0xf0] sm:$0xff]
    %v4279 = vld [vmem:[#allocation5 + $0xf8] sm:$0xff]
    %v4280 = vpack.c.bf16 %v1224, %v1224
    %v4281 = vld [vmem:[#allocation6] sm:$0xff]
    %v4282 = vld [vmem:[#allocation6 + $0x8] sm:$0xff]
    %v4283 = vld [vmem:[#allocation6 + $0x10] sm:$0xff]
    %v4284 = vld [vmem:[#allocation6 + $0x18] sm:$0xff]
    %v4285 = vld [vmem:[#allocation6 + $0x20] sm:$0xff]
    %v4286 = vld [vmem:[#allocation6 + $0x28] sm:$0xff]
    %v4287 = vld [vmem:[#allocation6 + $0x30] sm:$0xff]
    %v4288 = vld [vmem:[#allocation6 + $0x38] sm:$0xff]
    %v4289 = vld [vmem:[#allocation6 + $0x40] sm:$0xff]
    %v4290 = vld [vmem:[#allocation6 + $0x48] sm:$0xff]
    %v4291 = vld [vmem:[#allocation6 + $0x50] sm:$0xff]
    %v4292 = vld [vmem:[#allocation6 + $0x58] sm:$0xff]
    %v4293 = vld [vmem:[#allocation6 + $0x60] sm:$0xff]
    %v4294 = vld [vmem:[#allocation6 + $0x68] sm:$0xff]
    %v4295 = vld [vmem:[#allocation6 + $0x70] sm:$0xff]
    %v4296 = vld [vmem:[#allocation6 + $0x78] sm:$0xff]
    %v4313 = vunpack.c.l.b16 %v4281
    %v4314 = vunpack.c.h.b16 %v4281
    %v4315 = vunpack.c.l.b16 %v4282
    %v4316 = vunpack.c.h.b16 %v4282
    %v4317 = vunpack.c.l.b16 %v4283
    %v4318 = vunpack.c.h.b16 %v4283
    %v4319 = vunpack.c.l.b16 %v4284
    %v4320 = vunpack.c.h.b16 %v4284
    %v4321 = vunpack.c.l.b16 %v4285
    %v4322 = vunpack.c.h.b16 %v4285
    %v4323 = vunpack.c.l.b16 %v4286
    %v4324 = vunpack.c.h.b16 %v4286
    %v4325 = vunpack.c.l.b16 %v4287
    %v4326 = vunpack.c.h.b16 %v4287
    %v4327 = vunpack.c.l.b16 %v4288
    %v4328 = vunpack.c.h.b16 %v4288
    %v4329 = vunpack.c.l.b16 %v4289
    %v4330 = vunpack.c.h.b16 %v4289
    %v4331 = vunpack.c.l.b16 %v4290
    %v4332 = vunpack.c.h.b16 %v4290
    %v4333 = vunpack.c.l.b16 %v4291
    %v4334 = vunpack.c.h.b16 %v4291
    %v4335 = vunpack.c.l.b16 %v4292
    %v4336 = vunpack.c.h.b16 %v4292
    %v4337 = vunpack.c.l.b16 %v4293
    %v4338 = vunpack.c.h.b16 %v4293
    %v4339 = vunpack.c.l.b16 %v4294
    %v4340 = vunpack.c.h.b16 %v4294
    %v4341 = vunpack.c.l.b16 %v4295
    %v4342 = vunpack.c.h.b16 %v4295
    %v4343 = vunpack.c.l.b16 %v4296
    %v4344 = vunpack.c.h.b16 %v4296
    %v4345 = vpack.c.b16 %v4315, %v4313
    %v4346 = vpack.c.b16 %v4316, %v4314
    %v4347 = vpack.c.b16 %v4319, %v4317
    %v4348 = vpack.c.b16 %v4320, %v4318
    %v4349 = vpack.c.b16 %v4323, %v4321
    %v4350 = vpack.c.b16 %v4324, %v4322
    %v4351 = vpack.c.b16 %v4327, %v4325
    %v4352 = vpack.c.b16 %v4328, %v4326
    %v4353 = vpack.c.b16 %v4331, %v4329
    %v4354 = vpack.c.b16 %v4332, %v4330
    %v4355 = vpack.c.b16 %v4335, %v4333
    %v4356 = vpack.c.b16 %v4336, %v4334
    %v4357 = vpack.c.b16 %v4339, %v4337
    %v4358 = vpack.c.b16 %v4340, %v4338
    %v4359 = vpack.c.b16 %v4343, %v4341
    %v4360 = vpack.c.b16 %v4344, %v4342
    %4377 = vmatpush.bf16.msra.mxu0 %v4359
    %4378 = vmatpush.bf16.msra.mxu0 %v4357
    %4379 = vmatpush.bf16.msra.mxu0 %v4355
    %4380 = vmatpush.bf16.msra.mxu0 %v4353
    %4381 = vmatpush.bf16.msra.mxu0 %v4351
    %4382 = vmatpush.bf16.msra.mxu0 %v4349
    %4383 = vmatpush.bf16.msra.mxu0 %v4347
    %4384 = vmatpush.bf16.msra.mxu0 %v4345
    %4385 = vmatmul.bf16.gmra.mxu0 %v4280
    %v4386 = vpop.f32.mrf.mxu0
    %v4387 = vadd.f32 0.0, %v4386
    %v4388 = vpop.f32.mrf.mxu0
    %4389 = vdwg.mxu0
    %4390 = vmatpush.bf16.msra.mxu0 %v4360
    %4391 = vmatpush.bf16.msra.mxu0 %v4358
    %4392 = vmatpush.bf16.msra.mxu0 %v4356
    %4393 = vmatpush.bf16.msra.mxu0 %v4354
    %4394 = vmatpush.bf16.msra.mxu0 %v4352
    %4395 = vmatpush.bf16.msra.mxu0 %v4350
    %4396 = vmatpush.bf16.msra.mxu0 %v4348
    %4397 = vmatpush.bf16.msra.mxu0 %v4346
    %4398 = vmatmul.bf16.gmra.mxu0 %v4280
    %v4399 = vpop.f32.mrf.mxu0
    %v4400 = vadd.f32 0.0, %v4399
    %v4401 = vpop.f32.mrf.mxu0
    %4402 = vdwg.mxu0
    %v4435 = vunpack.c.l.b16 %v4248
    %v4436 = vunpack.c.h.b16 %v4248
    %v4437 = vunpack.c.l.b16 %v4249
    %v4438 = vunpack.c.h.b16 %v4249
    %v4439 = vunpack.c.l.b16 %v4250
    %v4440 = vunpack.c.h.b16 %v4250
    %v4441 = vunpack.c.l.b16 %v4251
    %v4442 = vunpack.c.h.b16 %v4251
    %v4443 = vunpack.c.l.b16 %v4252
    %v4444 = vunpack.c.h.b16 %v4252
    %v4445 = vunpack.c.l.b16 %v4253
    %v4446 = vunpack.c.h.b16 %v4253
    %v4447 = vunpack.c.l.b16 %v4254
    %v4448 = vunpack.c.h.b16 %v4254
    %v4449 = vunpack.c.l.b16 %v4255
    %v4450 = vunpack.c.h.b16 %v4255
    %v4451 = vunpack.c.l.b16 %v4256
    %v4452 = vunpack.c.h.b16 %v4256
    %v4453 = vunpack.c.l.b16 %v4257
    %v4454 = vunpack.c.h.b16 %v4257
    %v4455 = vunpack.c.l.b16 %v4258
    %v4456 = vunpack.c.h.b16 %v4258
    %v4457 = vunpack.c.l.b16 %v4259
    %v4458 = vunpack.c.h.b16 %v4259
    %v4459 = vunpack.c.l.b16 %v4260
    %v4460 = vunpack.c.h.b16 %v4260
    %v4461 = vunpack.c.l.b16 %v4261
    %v4462 = vunpack.c.h.b16 %v4261
    %v4463 = vunpack.c.l.b16 %v4262
    %v4464 = vunpack.c.h.b16 %v4262
    %v4465 = vunpack.c.l.b16 %v4263
    %v4466 = vunpack.c.h.b16 %v4263
    %v4467 = vunpack.c.l.b16 %v4264
    %v4468 = vunpack.c.h.b16 %v4264
    %v4469 = vunpack.c.l.b16 %v4265
    %v4470 = vunpack.c.h.b16 %v4265
    %v4471 = vunpack.c.l.b16 %v4266
    %v4472 = vunpack.c.h.b16 %v4266
    %v4473 = vunpack.c.l.b16 %v4267
    %v4474 = vunpack.c.h.b16 %v4267
    %v4475 = vunpack.c.l.b16 %v4268
    %v4476 = vunpack.c.h.b16 %v4268
    %v4477 = vunpack.c.l.b16 %v4269
    %v4478 = vunpack.c.h.b16 %v4269
    %v4479 = vunpack.c.l.b16 %v4270
    %v4480 = vunpack.c.h.b16 %v4270
    %v4481 = vunpack.c.l.b16 %v4271
    %v4482 = vunpack.c.h.b16 %v4271
    %v4483 = vunpack.c.l.b16 %v4272
    %v4484 = vunpack.c.h.b16 %v4272
    %v4485 = vunpack.c.l.b16 %v4273
    %v4486 = vunpack.c.h.b16 %v4273
    %v4487 = vunpack.c.l.b16 %v4274
    %v4488 = vunpack.c.h.b16 %v4274
    %v4489 = vunpack.c.l.b16 %v4275
    %v4490 = vunpack.c.h.b16 %v4275
    %v4491 = vunpack.c.l.b16 %v4276
    %v4492 = vunpack.c.h.b16 %v4276
    %v4493 = vunpack.c.l.b16 %v4277
    %v4494 = vunpack.c.h.b16 %v4277
    %v4495 = vunpack.c.l.b16 %v4278
    %v4496 = vunpack.c.h.b16 %v4278
    %v4497 = vunpack.c.l.b16 %v4279
    %v4498 = vunpack.c.h.b16 %v4279
    %v4499 = vpack.c.b16 %v4437, %v4435
    %v4500 = vpack.c.b16 %v4438, %v4436
    %v4501 = vpack.c.b16 %v4441, %v4439
    %v4502 = vpack.c.b16 %v4442, %v4440
    %v4503 = vpack.c.b16 %v4445, %v4443
    %v4504 = vpack.c.b16 %v4446, %v4444
    %v4505 = vpack.c.b16 %v4449, %v4447
    %v4506 = vpack.c.b16 %v4450, %v4448
    %v4507 = vpack.c.b16 %v4453, %v4451
    %v4508 = vpack.c.b16 %v4454, %v4452
    %v4509 = vpack.c.b16 %v4457, %v4455
    %v4510 = vpack.c.b16 %v4458, %v4456
    %v4511 = vpack.c.b16 %v4461, %v4459
    %v4512 = vpack.c.b16 %v4462, %v4460
    %v4513 = vpack.c.b16 %v4465, %v4463
    %v4514 = vpack.c.b16 %v4466, %v4464
    %v4515 = vpack.c.b16 %v4469, %v4467
    %v4516 = vpack.c.b16 %v4470, %v4468
    %v4517 = vpack.c.b16 %v4473, %v4471
    %v4518 = vpack.c.b16 %v4474, %v4472
    %v4519 = vpack.c.b16 %v4477, %v4475
    %v4520 = vpack.c.b16 %v4478, %v4476
    %v4521 = vpack.c.b16 %v4481, %v4479
    %v4522 = vpack.c.b16 %v4482, %v4480
    %v4523 = vpack.c.b16 %v4485, %v4483
    %v4524 = vpack.c.b16 %v4486, %v4484
    %v4525 = vpack.c.b16 %v4489, %v4487
    %v4526 = vpack.c.b16 %v4490, %v4488
    %v4527 = vpack.c.b16 %v4493, %v4491
    %v4528 = vpack.c.b16 %v4494, %v4492
    %v4529 = vpack.c.b16 %v4497, %v4495
    %v4530 = vpack.c.b16 %v4498, %v4496
    %4563 = vmatpush.bf16.msra.mxu0 %v4513
    %4564 = vmatpush.bf16.msra.mxu0 %v4511
    %4565 = vmatpush.bf16.msra.mxu0 %v4509
    %4566 = vmatpush.bf16.msra.mxu0 %v4507
    %4567 = vmatpush.bf16.msra.mxu0 %v4505
    %4568 = vmatpush.bf16.msra.mxu0 %v4503
    %4569 = vmatpush.bf16.msra.mxu0 %v4501
    %4570 = vmatpush.bf16.msra.mxu0 %v4499
    %4571 = vmatmul.bf16.gmra.mxu0 %v4246
    %v4572 = vpop.f32.mrf.mxu0
    %v4573 = vadd.f32 %v4387, %v4572
    %v4574 = vpop.f32.mrf.mxu0
    %4575 = vdwg.mxu0
    %4576 = vmatpush.bf16.msra.mxu0 %v4529
    %4577 = vmatpush.bf16.msra.mxu0 %v4527
    %4578 = vmatpush.bf16.msra.mxu0 %v4525
    %4579 = vmatpush.bf16.msra.mxu0 %v4523
    %4580 = vmatpush.bf16.msra.mxu0 %v4521
    %4581 = vmatpush.bf16.msra.mxu0 %v4519
    %4582 = vmatpush.bf16.msra.mxu0 %v4517
    %4583 = vmatpush.bf16.msra.mxu0 %v4515
    %4584 = vmatmul.bf16.gmra.mxu0 %v4247
    %v4585 = vpop.f32.mrf.mxu0
    %v4586 = vadd.f32 %v4573, %v4585
    %v4587 = vpop.f32.mrf.mxu0
    %4588 = vdwg.mxu0
    %4589 = vmatpush.bf16.msra.mxu0 %v4514
    %4590 = vmatpush.bf16.msra.mxu0 %v4512
    %4591 = vmatpush.bf16.msra.mxu0 %v4510
    %4592 = vmatpush.bf16.msra.mxu0 %v4508
    %4593 = vmatpush.bf16.msra.mxu0 %v4506
    %4594 = vmatpush.bf16.msra.mxu0 %v4504
    %4595 = vmatpush.bf16.msra.mxu0 %v4502
    %4596 = vmatpush.bf16.msra.mxu0 %v4500
    %4597 = vmatmul.bf16.gmra.mxu0 %v4246
    %v4598 = vpop.f32.mrf.mxu0
    %v4599 = vadd.f32 %v4400, %v4598
    %v4600 = vpop.f32.mrf.mxu0
    %4601 = vdwg.mxu0
    %4602 = vmatpush.bf16.msra.mxu0 %v4530
    %4603 = vmatpush.bf16.msra.mxu0 %v4528
    %4604 = vmatpush.bf16.msra.mxu0 %v4526
    %4605 = vmatpush.bf16.msra.mxu0 %v4524
    %4606 = vmatpush.bf16.msra.mxu0 %v4522
    %4607 = vmatpush.bf16.msra.mxu0 %v4520
    %4608 = vmatpush.bf16.msra.mxu0 %v4518
    %4609 = vmatpush.bf16.msra.mxu0 %v4516
    %4610 = vmatmul.bf16.gmra.mxu0 %v4247
    %v4611 = vpop.f32.mrf.mxu0
    %v4612 = vadd.f32 %v4599, %v4611
    %v4613 = vpop.f32.mrf.mxu0
    %4614 = vdwg.mxu0
    %v4615 = vpack.c.bf16 %v4236, %v4236
    %v4616 = vld [vmem:[#allocation7] sm:$0xff]
    %v4617 = vld [vmem:[#allocation7 + $0x8] sm:$0xff]
    %v4618 = vld [vmem:[#allocation7 + $0x10] sm:$0xff]
    %v4619 = vld [vmem:[#allocation7 + $0x18] sm:$0xff]
    %v4620 = vld [vmem:[#allocation7 + $0x20] sm:$0xff]
    %v4621 = vld [vmem:[#allocation7 + $0x28] sm:$0xff]
    %v4622 = vld [vmem:[#allocation7 + $0x30] sm:$0xff]
    %v4623 = vld [vmem:[#allocation7 + $0x38] sm:$0xff]
    %v4624 = vld [vmem:[#allocation7 + $0x40] sm:$0xff]
    %v4625 = vld [vmem:[#allocation7 + $0x48] sm:$0xff]
    %v4626 = vld [vmem:[#allocation7 + $0x50] sm:$0xff]
    %v4627 = vld [vmem:[#allocation7 + $0x58] sm:$0xff]
    %v4628 = vld [vmem:[#allocation7 + $0x60] sm:$0xff]
    %v4629 = vld [vmem:[#allocation7 + $0x68] sm:$0xff]
    %v4630 = vld [vmem:[#allocation7 + $0x70] sm:$0xff]
    %v4631 = vld [vmem:[#allocation7 + $0x78] sm:$0xff]
    %v4648 = vunpack.c.l.b16 %v4616
    %v4649 = vunpack.c.h.b16 %v4616
    %v4650 = vunpack.c.l.b16 %v4617
    %v4651 = vunpack.c.h.b16 %v4617
    %v4652 = vunpack.c.l.b16 %v4618
    %v4653 = vunpack.c.h.b16 %v4618
    %v4654 = vunpack.c.l.b16 %v4619
    %v4655 = vunpack.c.h.b16 %v4619
    %v4656 = vunpack.c.l.b16 %v4620
    %v4657 = vunpack.c.h.b16 %v4620
    %v4658 = vunpack.c.l.b16 %v4621
    %v4659 = vunpack.c.h.b16 %v4621
    %v4660 = vunpack.c.l.b16 %v4622
    %v4661 = vunpack.c.h.b16 %v4622
    %v4662 = vunpack.c.l.b16 %v4623
    %v4663 = vunpack.c.h.b16 %v4623
    %v4664 = vunpack.c.l.b16 %v4624
    %v4665 = vunpack.c.h.b16 %v4624
    %v4666 = vunpack.c.l.b16 %v4625
    %v4667 = vunpack.c.h.b16 %v4625
    %v4668 = vunpack.c.l.b16 %v4626
    %v4669 = vunpack.c.h.b16 %v4626
    %v4670 = vunpack.c.l.b16 %v4627
    %v4671 = vunpack.c.h.b16 %v4627
    %v4672 = vunpack.c.l.b16 %v4628
    %v4673 = vunpack.c.h.b16 %v4628
    %v4674 = vunpack.c.l.b16 %v4629
    %v4675 = vunpack.c.h.b16 %v4629
    %v4676 = vunpack.c.l.b16 %v4630
    %v4677 = vunpack.c.h.b16 %v4630
    %v4678 = vunpack.c.l.b16 %v4631
    %v4679 = vunpack.c.h.b16 %v4631
    %v4680 = vpack.c.b16 %v4650, %v4648
    %v4681 = vpack.c.b16 %v4651, %v4649
    %v4682 = vpack.c.b16 %v4654, %v4652
    %v4683 = vpack.c.b16 %v4655, %v4653
    %v4684 = vpack.c.b16 %v4658, %v4656
    %v4685 = vpack.c.b16 %v4659, %v4657
    %v4686 = vpack.c.b16 %v4662, %v4660
    %v4687 = vpack.c.b16 %v4663, %v4661
    %v4688 = vpack.c.b16 %v4666, %v4664
    %v4689 = vpack.c.b16 %v4667, %v4665
    %v4690 = vpack.c.b16 %v4670, %v4668
    %v4691 = vpack.c.b16 %v4671, %v4669
    %v4692 = vpack.c.b16 %v4674, %v4672
    %v4693 = vpack.c.b16 %v4675, %v4673
    %v4694 = vpack.c.b16 %v4678, %v4676
    %v4695 = vpack.c.b16 %v4679, %v4677
    %4712 = vmatpush.bf16.msra.mxu0 %v4694
    %4713 = vmatpush.bf16.msra.mxu0 %v4692
    %4714 = vmatpush.bf16.msra.mxu0 %v4690
    %4715 = vmatpush.bf16.msra.mxu0 %v4688
    %4716 = vmatpush.bf16.msra.mxu0 %v4686
    %4717 = vmatpush.bf16.msra.mxu0 %v4684
    %4718 = vmatpush.bf16.msra.mxu0 %v4682
    %4719 = vmatpush.bf16.msra.mxu0 %v4680
    %4720 = vmatmul.bf16.gmra.mxu0 %v4615
    %v4721 = vpop.f32.mrf.mxu0
    %v4722 = vadd.f32 0.0, %v4721
    %v4723 = vpop.f32.mrf.mxu0
    %4724 = vdwg.mxu0
    %4725 = vmatpush.bf16.msra.mxu0 %v4695
    %4726 = vmatpush.bf16.msra.mxu0 %v4693
    %4727 = vmatpush.bf16.msra.mxu0 %v4691
    %4728 = vmatpush.bf16.msra.mxu0 %v4689
    %4729 = vmatpush.bf16.msra.mxu0 %v4687
    %4730 = vmatpush.bf16.msra.mxu0 %v4685
    %4731 = vmatpush.bf16.msra.mxu0 %v4683
    %4732 = vmatpush.bf16.msra.mxu0 %v4681
    %4733 = vmatmul.bf16.gmra.mxu0 %v4615
    %v4734 = vpop.f32.mrf.mxu0
    %v4735 = vadd.f32 0.0, %v4734
    %v4736 = vpop.f32.mrf.mxu0
    %4737 = vdwg.mxu0
    %v4738 = vadd.f32 %v4586, %v4722
    %v4739 = vadd.f32 %v4612, %v4735
    %v4740 = vld [vmem:[%s41] sm:$0x3]
    %v4742 = vperm.slane %v4740, 0
    %v4743 = vperm.slane %v4740, 1
    %v4746 = vadd.f32 %v4738, %v4742
    %v4747 = vadd.f32 %v4739, %v4743
    %v4748 = vmax.f32 %v4746, 0.0
    %v4749 = vmax.f32 %v4747, 0.0
    %s4750 = smul.u32 %s4237, 1
    %s4751 = sshll.u32 %s4750, 4
    %4752 = dma.done %s391, %s4751
    %v4753 = vpack.c.bf16 %v4748, %v4748
    %v4754 = vpack.c.bf16 %v4749, %v4749
    %v4755 = vld [vmem:[#allocation8] sm:$0xf]
    %v4756 = vld [vmem:[#allocation8 + $0x4] sm:$0xf]
    %v4757 = vld [vmem:[#allocation8 + $0x8] sm:$0xf]
    %v4758 = vld [vmem:[#allocation8 + $0xc] sm:$0xf]
    %v4759 = vld [vmem:[#allocation8 + $0x10] sm:$0xf]
    %v4760 = vld [vmem:[#allocation8 + $0x14] sm:$0xf]
    %v4761 = vld [vmem:[#allocation8 + $0x18] sm:$0xf]
    %v4762 = vld [vmem:[#allocation8 + $0x1c] sm:$0xf]
    %v4763 = vld [vmem:[#allocation8 + $0x20] sm:$0xf]
    %v4764 = vld [vmem:[#allocation8 + $0x24] sm:$0xf]
    %v4765 = vld [vmem:[#allocation8 + $0x28] sm:$0xf]
    %v4766 = vld [vmem:[#allocation8 + $0x2c] sm:$0xf]
    %v4767 = vld [vmem:[#allocation8 + $0x30] sm:$0xf]
    %v4768 = vld [vmem:[#allocation8 + $0x34] sm:$0xf]
    %v4769 = vld [vmem:[#allocation8 + $0x38] sm:$0xf]
    %v4770 = vld [vmem:[#allocation8 + $0x3c] sm:$0xf]
    %v4771 = vld [vmem:[#allocation8 + $0x40] sm:$0xf]
    %v4772 = vld [vmem:[#allocation8 + $0x44] sm:$0xf]
    %v4773 = vld [vmem:[#allocation8 + $0x48] sm:$0xf]
    %v4774 = vld [vmem:[#allocation8 + $0x4c] sm:$0xf]
    %v4775 = vld [vmem:[#allocation8 + $0x50] sm:$0xf]
    %v4776 = vld [vmem:[#allocation8 + $0x54] sm:$0xf]
    %v4777 = vld [vmem:[#allocation8 + $0x58] sm:$0xf]
    %v4778 = vld [vmem:[#allocation8 + $0x5c] sm:$0xf]
    %v4779 = vld [vmem:[#allocation8 + $0x60] sm:$0xf]
    %v4780 = vld [vmem:[#allocation8 + $0x64] sm:$0xf]
    %v4781 = vld [vmem:[#allocation8 + $0x68] sm:$0xf]
    %v4782 = vld [vmem:[#allocation8 + $0x6c] sm:$0xf]
    %v4783 = vld [vmem:[#allocation8 + $0x70] sm:$0xf]
    %v4784 = vld [vmem:[#allocation8 + $0x74] sm:$0xf]
    %v4785 = vld [vmem:[#allocation8 + $0x78] sm:$0xf]
    %v4786 = vld [vmem:[#allocation8 + $0x7c] sm:$0xf]
    %v4787 = vld [vmem:[%s43] sm:$0x1]
    %v4789 = vperm.slane %v4787, 0
    %v4823 = vunpack.c.l.b16 %v4755
    %v4824 = vunpack.c.l.b16 %v4756
    %v4825 = vunpack.c.l.b16 %v4757
    %v4826 = vunpack.c.l.b16 %v4758
    %v4827 = vunpack.c.l.b16 %v4759
    %v4828 = vunpack.c.l.b16 %v4760
    %v4829 = vunpack.c.l.b16 %v4761
    %v4830 = vunpack.c.l.b16 %v4762
    %v4831 = vunpack.c.l.b16 %v4763
    %v4832 = vunpack.c.l.b16 %v4764
    %v4833 = vunpack.c.l.b16 %v4765
    %v4834 = vunpack.c.l.b16 %v4766
    %v4835 = vunpack.c.l.b16 %v4767
    %v4836 = vunpack.c.l.b16 %v4768
    %v4837 = vunpack.c.l.b16 %v4769
    %v4838 = vunpack.c.l.b16 %v4770
    %v4839 = vunpack.c.l.b16 %v4771
    %v4840 = vunpack.c.l.b16 %v4772
    %v4841 = vunpack.c.l.b16 %v4773
    %v4842 = vunpack.c.l.b16 %v4774
    %v4843 = vunpack.c.l.b16 %v4775
    %v4844 = vunpack.c.l.b16 %v4776
    %v4845 = vunpack.c.l.b16 %v4777
    %v4846 = vunpack.c.l.b16 %v4778
    %v4847 = vunpack.c.l.b16 %v4779
    %v4848 = vunpack.c.l.b16 %v4780
    %v4849 = vunpack.c.l.b16 %v4781
    %v4850 = vunpack.c.l.b16 %v4782
    %v4851 = vunpack.c.l.b16 %v4783
    %v4852 = vunpack.c.l.b16 %v4784
    %v4853 = vunpack.c.l.b16 %v4785
    %v4854 = vunpack.c.l.b16 %v4786
    %v4855 = vpack.c.b16 %v4824, %v4823
    %v4856 = vpack.c.b16 %v4826, %v4825
    %v4857 = vpack.c.b16 %v4828, %v4827
    %v4858 = vpack.c.b16 %v4830, %v4829
    %v4859 = vpack.c.b16 %v4832, %v4831
    %v4860 = vpack.c.b16 %v4834, %v4833
    %v4861 = vpack.c.b16 %v4836, %v4835
    %v4862 = vpack.c.b16 %v4838, %v4837
    %v4863 = vpack.c.b16 %v4840, %v4839
    %v4864 = vpack.c.b16 %v4842, %v4841
    %v4865 = vpack.c.b16 %v4844, %v4843
    %v4866 = vpack.c.b16 %v4846, %v4845
    %v4867 = vpack.c.b16 %v4848, %v4847
    %v4868 = vpack.c.b16 %v4850, %v4849
    %v4869 = vpack.c.b16 %v4852, %v4851
    %v4870 = vpack.c.b16 %v4854, %v4853
    %4887 = vmatpush.bf16.msra.mxu0 %v4862
    %4888 = vmatpush.bf16.msra.mxu0 %v4861
    %4889 = vmatpush.bf16.msra.mxu0 %v4860
    %4890 = vmatpush.bf16.msra.mxu0 %v4859
    %4891 = vmatpush.bf16.msra.mxu0 %v4858
    %4892 = vmatpush.bf16.msra.mxu0 %v4857
    %4893 = vmatpush.bf16.msra.mxu0 %v4856
    %4894 = vmatpush.bf16.msra.mxu0 %v4855
    %4895 = vmatmul.bf16.gmra.mxu0 %v4753
    %v4896 = vpop.f32.mrf.mxu0
    %v4897 = vadd.f32 %v4789, %v4896
    %v4898 = vpop.f32.mrf.mxu0
    %4899 = vdwg.mxu0
    %4900 = vmatpush.bf16.msra.mxu0 %v4870
    %4901 = vmatpush.bf16.msra.mxu0 %v4869
    %4902 = vmatpush.bf16.msra.mxu0 %v4868
    %4903 = vmatpush.bf16.msra.mxu0 %v4867
    %4904 = vmatpush.bf16.msra.mxu0 %v4866
    %4905 = vmatpush.bf16.msra.mxu0 %v4865
    %4906 = vmatpush.bf16.msra.mxu0 %v4864
    %4907 = vmatpush.bf16.msra.mxu0 %v4863
    %4908 = vmatmul.bf16.gmra.mxu0 %v4754
    %v4909 = vpop.f32.mrf.mxu0
    %v4910 = vadd.f32 %v4897, %v4909
    %v4911 = vpop.f32.mrf.mxu0
    %4912 = vdwg.mxu0
    %4913 = vst [vmem:[#allocation33] sm:$0xff] %v4910
    // Predicated region
    $region174: #{tpu_custom_call.1} parent=1 // pred_check
      _
    $region175: #{tpu_custom_call.1} parent=1 // pred_check_branch
      %4915 = sbr.rel (0) target = $region177
    $region176: #{tpu_custom_call.1} parent=1 // pred_region
      %4917 = vsyncadd [#allocation12], 0
      %s4919 = sshll.u32 [#allocation33], 4
      %s4920 = int_to_ptr.vmem [resolvable:$true] %s4919
      %s4921 = sshll.u32 %s59, 4
      %s4922 = int_to_ptr.hbm [resolvable:$true] %s4921
      %4924 = dma.vmem_to_hbm [thread:$0]  %s4920, 128, %s4922, [#allocation12]
    $region177: #{tpu_custom_call.1} parent=1 // pred_fallthru
      _
    // Predicated region
    $region178: #{tpu_custom_call.1} parent=1 // pred_check
      _
    $region179: #{tpu_custom_call.1} parent=1 // pred_check_branch
      %4926 = sbr.rel (0) target = $region181
    $region180: #{tpu_custom_call.1} parent=1 // pred_region
      %4928 = dma.done [#allocation12], 128
    $region181: #{tpu_custom_call.1} parent=1 // pred_fallthru
      _
    %4929 = vsyncpa [#allocation11], 1
    %4930 = vsyncpa [#allocation14], 1
    %4931 = vsyncpa [#allocation17], 1
    %4932 = vsyncpa [#allocation20], 1
    %4933 = vsyncpa [#allocation23], 1
    %4934 = vsyncpa [#allocation26], 1
    %4935 = vsyncpa [#allocation29], 1
    %4936 = vsyncpa [#allocation32], 1
    %4937 = vsyncpa [#allocation12], 1
  %4938 = vsyncmov [#allocation9]
  %s4939 = vpop.sfrf %4938
  %p4940 = scmp.eq.s32.totalorder %s4939, 0
  %p4941 = pneg %p4940
  %4943 = shalt.err (%p4941)
  %s4944 = scalar_lea.sflag [#allocation9], 1
  %4945 = vsyncmov %s4944
  %s4946 = vpop.sfrf %4945
  %p4947 = scmp.eq.s32.totalorder %s4946, 0
  %p4948 = pneg %p4947
  %4950 = shalt.err (%p4948)
  %s4951 = scalar_lea.sflag [#allocation9], 2
  %4952 = vsyncmov %s4951
  %s4953 = vpop.sfrf %4952
  %p4954 = scmp.eq.s32.totalorder %s4953, 0
  %p4955 = pneg %p4954
  %4957 = shalt.err (%p4955)
  %s4958 = scalar_lea.sflag [#allocation9], 3
  %4959 = vsyncmov %s4958
  %s4960 = vpop.sfrf %4959
  %p4961 = scmp.eq.s32.totalorder %s4960, 0
  %p4962 = pneg %p4961
  %4964 = shalt.err (%p4962)
  %s4965 = scalar_lea.sflag [#allocation9], 4
  %4966 = vsyncmov %s4965
  %s4967 = vpop.sfrf %4966
  %p4968 = scmp.eq.s32.totalorder %s4967, 0
  %p4969 = pneg %p4968
  %4971 = shalt.err (%p4969)
  %s4972 = scalar_lea.sflag [#allocation9], 5
  %4973 = vsyncmov %s4972
  %s4974 = vpop.sfrf %4973
  %p4975 = scmp.eq.s32.totalorder %s4974, 0
  %p4976 = pneg %p4975
  %4978 = shalt.err (%p4976)
  %s4979 = scalar_lea.sflag [#allocation9], 6
  %4980 = vsyncmov %s4979
  %s4981 = vpop.sfrf %4980
  %p4982 = scmp.eq.s32.totalorder %s4981, 0
  %p4983 = pneg %p4982
  %4985 = shalt.err (%p4983)

</llo_original>
